<compile_context>
chip_gen: v6e
topology: v6e:2x2x1
jax: 0.10.0
libtpu: 0.0.40
codegen_flags: <defaults>
</compile_context>

<pallas_src>
import functools

import jax
import jax.numpy as jnp
import numpy as np
from jax.experimental import pallas as pl
from jax.experimental.pallas import tpu as pltpu


def stgnn_kernel(x_ref, adj_ref, abig_ref, wp_ref, bp_ref,
                 wg_ref, bg_ref, wt_ref, bt_ref,
                 bns_ref, bnh_ref, lnw_ref, lnb_ref,
                 wo_ref, bo_ref,
                 out_ref,
                 h_ref, y_ref,
                 *, num_layers, seq_len, num_nodes, dilations, ln_eps):
    T, N = seq_len, num_nodes
    rows = T * N

    lnw = lnw_ref[...]            # [1, H]
    lnb = lnb_ref[...]            # [1, H]

    def layer_norm(z):
        mu = jnp.mean(z, axis=-1, keepdims=True)
        var = jnp.mean(jnp.square(z - mu), axis=-1, keepdims=True)
        return (z - mu) * jax.lax.rsqrt(var + ln_eps) * lnw + lnb

    # ---- input projection: all (t, n) rows in one MXU op ------------------
    h_ref[...] = (jnp.dot(x_ref[0], wp_ref[...],
                          preferred_element_type=jnp.float32) + bp_ref[...])

    # ---- stacked spatio-temporal layers ------------------------------------
    for i in range(num_layers):
        d = dilations[i]
        shift = d * N
        wg = wg_ref[i]            # [H, H]
        bg = bg_ref[i]            # [1, H]
        w0 = wt_ref[i, 0]         # [H, H] tap at t - d
        w1 = wt_ref[i, 1]         # [H, H] tap at t
        w2 = wt_ref[i, 2]         # [H, H] tap at t + d
        bt = bt_ref[i]            # [1, H]
        bns = bns_ref[i]          # [1, H] folded BN scale
        bnh = bnh_ref[i]          # [1, H] folded BN shift

        if i < num_layers - 1:
            hv = h_ref[...]                                     # [T*N, H]
            # spatial graph conv, batched over time via block-diag adjacency
            support = jnp.dot(hv, wg, preferred_element_type=jnp.float32)
            s = (jnp.dot(abig_ref[...], support,
                         preferred_element_type=jnp.float32) + bg)
            # dilated temporal conv (kernel 3, 'same' padding), batched over T
            y_ref[...] = (jnp.dot(s, w1, preferred_element_type=jnp.float32)
                          + bt)
            if shift < rows:
                hi = pl.ds(shift, rows - shift)      # rows with t >= d
                lo = pl.ds(0, rows - shift)          # rows with t <  T - d
                y_ref[hi, :] = y_ref[hi, :] + jnp.dot(
                    s[:rows - shift], w0, preferred_element_type=jnp.float32)
                y_ref[lo, :] = y_ref[lo, :] + jnp.dot(
                    s[shift:], w2, preferred_element_type=jnp.float32)
            # BatchNorm1d (eval, folded) + ReLU  (Dropout = identity)
            y = jnp.maximum(y_ref[...] * bns + bnh, 0.0)
            # residual + LayerNorm on the whole [T*N, H] tile
            h_ref[...] = layer_norm(hv + y)
        else:
            # Final layer: only t = T-1 (and its t-d tap) feeds the output.
            adj = adj_ref[...]
            h_last = h_ref[pl.ds((T - 1) * N, N), :]            # [N, H]
            s_last = (jnp.dot(adj,
                              jnp.dot(h_last, wg,
                                      preferred_element_type=jnp.float32),
                              preferred_element_type=jnp.float32) + bg)
            y = jnp.dot(s_last, w1, preferred_element_type=jnp.float32) + bt
            if d <= T - 1:
                h_tap = h_ref[pl.ds((T - 1 - d) * N, N), :]
                s_tap = (jnp.dot(adj,
                                 jnp.dot(h_tap, wg,
                                         preferred_element_type=jnp.float32),
                                 preferred_element_type=jnp.float32) + bg)
                y = y + jnp.dot(s_tap, w0, preferred_element_type=jnp.float32)
            # tap at t + d never contributes at t = T-1 for dilation >= 1
            y = jnp.maximum(y * bns + bnh, 0.0)
            h_ref[pl.ds((T - 1) * N, N), :] = layer_norm(h_last + y)

    # ---- output projection on the last timestep ----------------------------
    out_ref[0] = (jnp.dot(h_ref[pl.ds((T - 1) * N, N), :], wo_ref[...],
                          preferred_element_type=jnp.float32) + bo_ref[...])


def stgnn_forward(x, adj, params, *, num_layers, dilations):
    """x: [B, N, T, Din] (PyTorch layout), adj: [N, N] -> out: [B, N, Dout]."""
    B, N, T, Din = x.shape
    H = params['wp'].shape[1]
    Dout = params['wo'].shape[1]

    # Time-major, flattened (t, n) rows -> one row-dense 2-D tile per batch.
    x2d = jnp.transpose(x, (0, 2, 1, 3)).reshape(B, T * N, Din)
    # Block-diagonal adjacency: turns T per-timestep [N,N]@[N,H] dots into one
    # [T*N, T*N] @ [T*N, H] matmul per layer (exact, zeros contribute 0.0).
    abig = jnp.kron(jnp.eye(T, dtype=adj.dtype), adj)

    kernel = functools.partial(stgnn_kernel, num_layers=num_layers,
                               seq_len=T, num_nodes=N,
                               dilations=tuple(dilations), ln_eps=1e-5)

    def full_spec(arr):
        nd = arr.ndim
        # Constant index map -> block is revisited in place, not re-DMA'd.
        return pl.BlockSpec(arr.shape, lambda b, _nd=nd: (0,) * _nd)

    ordered = [adj, abig, params['wp'], params['bp'], params['wg'],
               params['bg'], params['wt'], params['bt'], params['bns'],
               params['bnh'], params['lnw'], params['lnb'], params['wo'],
               params['bo']]

    in_specs = [pl.BlockSpec((1, T * N, Din), lambda b: (b, 0, 0))]
    in_specs += [full_spec(a) for a in ordered]

    out = pl.pallas_call(
        kernel,
        out_shape=jax.ShapeDtypeStruct((B, N, Dout), jnp.float32),
        grid_spec=pltpu.PrefetchScalarGridSpec(
            num_scalar_prefetch=0,
            grid=(B,),
            in_specs=in_specs,
            out_specs=pl.BlockSpec((1, N, Dout), lambda b: (b, 0, 0)),
            scratch_shapes=[pltpu.VMEM((T * N, H), jnp.float32),   # h (state)
                            pltpu.VMEM((T * N, H), jnp.float32)],  # y (tconv)
        ),
        compiler_params=pltpu.CompilerParams(
            # batch elements are independent -> shard across v7x's 2 TCs
            dimension_semantics=("parallel",),
            # ample at these shapes; re-derive if H/T/N or batch blocking grow
            # (v7x has only 64 MiB physical VMEM per TensorCore).
            vmem_limit_bytes=32 * 1024 * 1024),
    )(x2d, *ordered)
    return out


def init_params(key, input_dim, hidden_dim, output_dim, num_layers):
    """Deterministic synthetic parameters matching the module's shapes."""
    H = hidden_dim
    ks = jax.random.split(key, 10)

    def u(k, shape, fan_in):
        bound = 1.0 / np.sqrt(fan_in)
        return jax.random.uniform(k, shape, jnp.float32, -bound, bound)

    eps = 1e-5
    gamma = jnp.ones((num_layers, 1, H), jnp.float32)        # BN weight
    beta = jnp.zeros((num_layers, 1, H), jnp.float32)        # BN bias
    r_mean = jnp.zeros((num_layers, 1, H), jnp.float32)      # BN running mean
    r_var = jnp.ones((num_layers, 1, H), jnp.float32)        # BN running var
    bns = gamma * jax.lax.rsqrt(r_var + eps)                 # folded scale
    bnh = beta - r_mean * bns                                # folded shift

    return dict(
        wp=u(ks[0], (input_dim, H), input_dim),              # input_proj.weight^T
        bp=u(ks[1], (1, H), input_dim),                      # input_proj.bias
        wg=u(ks[2], (num_layers, H, H), H),                  # GraphConvolution.weight
        bg=u(ks[3], (num_layers, 1, H), H),                  # GraphConvolution.bias
        wt=u(ks[4], (num_layers, 3, H, H), 3 * H),           # Conv1d weight [k][Cin,Cout]
        bt=u(ks[5], (num_layers, 1, H), 3 * H),              # Conv1d bias
        bns=bns, bnh=bnh,
        lnw=jnp.ones((1, H), jnp.float32),                   # LayerNorm weight
        lnb=jnp.zeros((1, H), jnp.float32),                  # LayerNorm bias
        wo=u(ks[6], (H, output_dim), H),                     # output_proj.weight^T
        bo=u(ks[7], (1, output_dim), H),                     # output_proj.bias
    )


def stgnn_reference(x, adj, p, *, num_layers, dilations, ln_eps=1e-5):
    """Pure-JAX reference (same eval-mode math) for correctness checking."""
    # x: [B, N, T, Din] -> time-major
    x = jnp.transpose(x, (0, 2, 1, 3))                        # [B, T, N, Din]
    T = x.shape[1]
    h = jnp.einsum('btnd,dh->btnh', x, p['wp']) + p['bp'][0]
    for i in range(num_layers):
        d = dilations[i]
        support = jnp.einsum('btnh,hk->btnk', h, p['wg'][i])
        s = jnp.einsum('nm,btmk->btnk', adj, support) + p['bg'][i, 0]
        s_pad = jnp.pad(s, ((0, 0), (d, d), (0, 0), (0, 0)))
        y = (jnp.einsum('btnh,hk->btnk', s_pad[:, 0:T], p['wt'][i, 0])
             + jnp.einsum('btnh,hk->btnk', s_pad[:, d:d + T], p['wt'][i, 1])
             + jnp.einsum('btnh,hk->btnk', s_pad[:, 2 * d:2 * d + T], p['wt'][i, 2])
             + p['bt'][i, 0])
        y = jnp.maximum(y * p['bns'][i, 0] + p['bnh'][i, 0], 0.0)
        z = h + y
        mu = z.mean(-1, keepdims=True)
        var = ((z - mu) ** 2).mean(-1, keepdims=True)
        h = (z - mu) * jax.lax.rsqrt(var + ln_eps) * p['lnw'][0] + p['lnb'][0]
    return h[:, -1] @ p['wo'] + p['bo'][0]                    # [B, N, Dout]


if __name__ == "__main__":
    # Small shapes consistent with the module's forward signature.
    B, N, T = 2, 16, 8
    input_dim, hidden_dim, output_dim = 4, 32, 4
    num_layers = 2
    dilations = tuple(2 ** i for i in range(num_layers))       # (1, 2)

    key = jax.random.PRNGKey(0)
    kx, ka, kp = jax.random.split(key, 3)

    x = jax.random.normal(kx, (B, N, T, input_dim), jnp.float32)
    adj_raw = jax.random.uniform(ka, (N, N), jnp.float32)
    adj = adj_raw / jnp.sum(adj_raw, axis=-1, keepdims=True)   # row-normalized adjacency

    params = init_params(kp, input_dim, hidden_dim, output_dim, num_layers)

    out = stgnn_forward(x, adj, params, num_layers=num_layers,
                        dilations=dilations)
    out = jax.block_until_ready(out)

    ref = stgnn_reference(x, adj, params, num_layers=num_layers,
                          dilations=dilations)
    np.testing.assert_allclose(np.asarray(out), np.asarray(ref),
                               rtol=2e-4, atol=2e-4)

    # TODO(synk): attention_dict (softmax over temporal-output means, used only
    # for visualization) is not produced by the kernel.
    print("KERNEL_OK")
</pallas_src>

<mosaic_0001>
module attributes {stable_mosaic.version = 11 : i64} {
  func.func @stgnn_kernel(%arg0: i32, %arg1: memref<1x128x4xf32, #tpu.memory_space<vmem>>, %arg2: memref<16x16xf32, #tpu.memory_space<vmem>>, %arg3: memref<128x128xf32, #tpu.memory_space<vmem>>, %arg4: memref<4x32xf32, #tpu.memory_space<vmem>>, %arg5: memref<1x32xf32, #tpu.memory_space<vmem>>, %arg6: memref<2x32x32xf32, #tpu.memory_space<vmem>>, %arg7: memref<2x1x32xf32, #tpu.memory_space<vmem>>, %arg8: memref<2x3x32x32xf32, #tpu.memory_space<vmem>>, %arg9: memref<2x1x32xf32, #tpu.memory_space<vmem>>, %arg10: memref<2x1x32xf32, #tpu.memory_space<vmem>>, %arg11: memref<2x1x32xf32, #tpu.memory_space<vmem>>, %arg12: memref<1x32xf32, #tpu.memory_space<vmem>>, %arg13: memref<1x32xf32, #tpu.memory_space<vmem>>, %arg14: memref<32x4xf32, #tpu.memory_space<vmem>>, %arg15: memref<1x4xf32, #tpu.memory_space<vmem>>, %arg16: memref<1x16x4xf32, #tpu.memory_space<vmem>>, %arg17: memref<128x32xf32, #tpu.memory_space<vmem>>, %arg18: memref<128x32xf32, #tpu.memory_space<vmem>>) attributes {dimension_semantics = [#tpu.dimension_semantics<parallel>], iteration_bounds = array<i64: 2>, scalar_prefetch = 0 : i64, scratch_operands = 2 : i64, tpu.core_type = #tpu.core_type<tc>, window_params = [{transform_indices = @transform_0, window_bounds = array<i64: 1, 128, 4>}, {pipeline_mode = #tpu.pipeline_mode<synchronous>, transform_indices = @transform_1, window_bounds = array<i64: 16, 16>}, {pipeline_mode = #tpu.pipeline_mode<synchronous>, transform_indices = @transform_2, window_bounds = array<i64: 128, 128>}, {pipeline_mode = #tpu.pipeline_mode<synchronous>, transform_indices = @transform_3, window_bounds = array<i64: 4, 32>}, {pipeline_mode = #tpu.pipeline_mode<synchronous>, transform_indices = @transform_4, window_bounds = array<i64: 1, 32>}, {pipeline_mode = #tpu.pipeline_mode<synchronous>, transform_indices = @transform_5, window_bounds = array<i64: 2, 32, 32>}, {pipeline_mode = #tpu.pipeline_mode<synchronous>, transform_indices = @transform_6, window_bounds = array<i64: 2, 1, 32>}, {pipeline_mode = #tpu.pipeline_mode<synchronous>, transform_indices = @transform_7, window_bounds = array<i64: 2, 3, 32, 32>}, {pipeline_mode = #tpu.pipeline_mode<synchronous>, transform_indices = @transform_8, window_bounds = array<i64: 2, 1, 32>}, {pipeline_mode = #tpu.pipeline_mode<synchronous>, transform_indices = @transform_9, window_bounds = array<i64: 2, 1, 32>}, {pipeline_mode = #tpu.pipeline_mode<synchronous>, transform_indices = @transform_10, window_bounds = array<i64: 2, 1, 32>}, {pipeline_mode = #tpu.pipeline_mode<synchronous>, transform_indices = @transform_11, window_bounds = array<i64: 1, 32>}, {pipeline_mode = #tpu.pipeline_mode<synchronous>, transform_indices = @transform_12, window_bounds = array<i64: 1, 32>}, {pipeline_mode = #tpu.pipeline_mode<synchronous>, transform_indices = @transform_13, window_bounds = array<i64: 32, 4>}, {pipeline_mode = #tpu.pipeline_mode<synchronous>, transform_indices = @transform_14, window_bounds = array<i64: 1, 4>}, {transform_indices = @transform_15, window_bounds = array<i64: 1, 16, 4>}]} {
    %c0 = arith.constant 0 : index
    %c0_0 = arith.constant 0 : index
    %0 = vector.load %arg12[%c0, %c0_0] : memref<1x32xf32, #tpu.memory_space<vmem>>, vector<1x32xf32>
    %c0_1 = arith.constant 0 : index
    %c0_2 = arith.constant 0 : index
    %1 = vector.load %arg13[%c0_1, %c0_2] : memref<1x32xf32, #tpu.memory_space<vmem>>, vector<1x32xf32>
    %c0_3 = arith.constant 0 : index
    %c0_4 = arith.constant 0 : index
    %c0_5 = arith.constant 0 : index
    %2 = vector.load %arg1[%c0_3, %c0_4, %c0_5] : memref<1x128x4xf32, #tpu.memory_space<vmem>>, vector<1x128x4xf32>
    %3 = vector.shape_cast %2 : vector<1x128x4xf32> to vector<128x4xf32>
    %c0_6 = arith.constant 0 : index
    %c0_7 = arith.constant 0 : index
    %4 = vector.load %arg4[%c0_6, %c0_7] : memref<4x32xf32, #tpu.memory_space<vmem>>, vector<4x32xf32>
    %cst = arith.constant dense<0.000000e+00> : vector<128x32xf32>
    %5 = tpu.matmul %3, %4, %cst {dimension_numbers = #tpu.dot_dimension_numbers<[1], [0], [0], [1], [0, 0, 1, 1], [], []>} : vector<128x4xf32>, vector<4x32xf32>, vector<128x32xf32> -> vector<128x32xf32>
    %c0_8 = arith.constant 0 : index
    %c0_9 = arith.constant 0 : index
    %6 = vector.load %arg5[%c0_8, %c0_9] : memref<1x32xf32, #tpu.memory_space<vmem>>, vector<1x32xf32>
    %7 = vector.broadcast %6 : vector<1x32xf32> to vector<128x32xf32>
    %8 = arith.addf %5, %7 : vector<128x32xf32>
    %c0_10 = arith.constant 0 : index
    %c0_11 = arith.constant 0 : index
    %9 = vector.load %arg17[%c0_10, %c0_11] : memref<128x32xf32, #tpu.memory_space<vmem>>, vector<128x32xf32>
    tpu.vector_store %arg17[%c0_10, %c0_11], %8 {strides = array<i32>} : memref<128x32xf32, #tpu.memory_space<vmem>>, vector<128x32xf32>,
    %c0_12 = arith.constant 0 : index
    %c0_13 = arith.constant 0 : index
    %c0_14 = arith.constant 0 : index
    %10 = vector.load %arg6[%c0_12, %c0_13, %c0_14] : memref<2x32x32xf32, #tpu.memory_space<vmem>>, vector<1x32x32xf32>
    %11 = vector.shape_cast %10 : vector<1x32x32xf32> to vector<32x32xf32>
    %c0_15 = arith.constant 0 : index
    %c0_16 = arith.constant 0 : index
    %c0_17 = arith.constant 0 : index
    %12 = vector.load %arg7[%c0_15, %c0_16, %c0_17] : memref<2x1x32xf32, #tpu.memory_space<vmem>>, vector<1x1x32xf32>
    %13 = vector.shape_cast %12 : vector<1x1x32xf32> to vector<1x32xf32>
    %c0_18 = arith.constant 0 : index
    %c0_19 = arith.constant 0 : index
    %c0_20 = arith.constant 0 : index
    %c0_21 = arith.constant 0 : index
    %14 = vector.load %arg8[%c0_18, %c0_19, %c0_20, %c0_21] : memref<2x3x32x32xf32, #tpu.memory_space<vmem>>, vector<1x1x32x32xf32>
    %15 = vector.shape_cast %14 : vector<1x1x32x32xf32> to vector<32x32xf32>
    %c0_22 = arith.constant 0 : index
    %c1 = arith.constant 1 : index
    %c0_23 = arith.constant 0 : index
    %c0_24 = arith.constant 0 : index
    %16 = vector.load %arg8[%c0_22, %c1, %c0_23, %c0_24] : memref<2x3x32x32xf32, #tpu.memory_space<vmem>>, vector<1x1x32x32xf32>
    %17 = vector.shape_cast %16 : vector<1x1x32x32xf32> to vector<32x32xf32>
    %c0_25 = arith.constant 0 : index
    %c2 = arith.constant 2 : index
    %c0_26 = arith.constant 0 : index
    %c0_27 = arith.constant 0 : index
    %18 = vector.load %arg8[%c0_25, %c2, %c0_26, %c0_27] : memref<2x3x32x32xf32, #tpu.memory_space<vmem>>, vector<1x1x32x32xf32>
    %19 = vector.shape_cast %18 : vector<1x1x32x32xf32> to vector<32x32xf32>
    %c0_28 = arith.constant 0 : index
    %c0_29 = arith.constant 0 : index
    %c0_30 = arith.constant 0 : index
    %20 = vector.load %arg9[%c0_28, %c0_29, %c0_30] : memref<2x1x32xf32, #tpu.memory_space<vmem>>, vector<1x1x32xf32>
    %21 = vector.shape_cast %20 : vector<1x1x32xf32> to vector<1x32xf32>
    %c0_31 = arith.constant 0 : index
    %c0_32 = arith.constant 0 : index
    %c0_33 = arith.constant 0 : index
    %22 = vector.load %arg10[%c0_31, %c0_32, %c0_33] : memref<2x1x32xf32, #tpu.memory_space<vmem>>, vector<1x1x32xf32>
    %23 = vector.shape_cast %22 : vector<1x1x32xf32> to vector<1x32xf32>
    %c0_34 = arith.constant 0 : index
    %c0_35 = arith.constant 0 : index
    %c0_36 = arith.constant 0 : index
    %24 = vector.load %arg11[%c0_34, %c0_35, %c0_36] : memref<2x1x32xf32, #tpu.memory_space<vmem>>, vector<1x1x32xf32>
    %25 = vector.shape_cast %24 : vector<1x1x32xf32> to vector<1x32xf32>
    %c0_37 = arith.constant 0 : index
    %c0_38 = arith.constant 0 : index
    %26 = vector.load %arg17[%c0_37, %c0_38] : memref<128x32xf32, #tpu.memory_space<vmem>>, vector<128x32xf32>
    %cst_39 = arith.constant dense<0.000000e+00> : vector<128x32xf32>
    %27 = tpu.matmul %26, %11, %cst_39 {dimension_numbers = #tpu.dot_dimension_numbers<[1], [0], [0], [1], [0, 0, 1, 1], [], []>} : vector<128x32xf32>, vector<32x32xf32>, vector<128x32xf32> -> vector<128x32xf32>
    %c0_40 = arith.constant 0 : index
    %c0_41 = arith.constant 0 : index
    %28 = vector.load %arg3[%c0_40, %c0_41] : memref<128x128xf32, #tpu.memory_space<vmem>>, vector<128x128xf32>
    %cst_42 = arith.constant dense<0.000000e+00> : vector<128x32xf32>
    %29 = tpu.matmul %28, %27, %cst_42 {dimension_numbers = #tpu.dot_dimension_numbers<[1], [0], [0], [1], [0, 0, 1, 1], [], []>} : vector<128x128xf32>, vector<128x32xf32>, vector<128x32xf32> -> vector<128x32xf32>
    %30 = vector.broadcast %13 : vector<1x32xf32> to vector<128x32xf32>
    %31 = arith.addf %29, %30 : vector<128x32xf32>
    %cst_43 = arith.constant dense<0.000000e+00> : vector<128x32xf32>
    %32 = tpu.matmul %31, %17, %cst_43 {dimension_numbers = #tpu.dot_dimension_numbers<[1], [0], [0], [1], [0, 0, 1, 1], [], []>} : vector<128x32xf32>, vector<32x32xf32>, vector<128x32xf32> -> vector<128x32xf32>
    %33 = vector.broadcast %21 : vector<1x32xf32> to vector<128x32xf32>
    %34 = arith.addf %32, %33 : vector<128x32xf32>
    %c0_44 = arith.constant 0 : index
    %c0_45 = arith.constant 0 : index
    %35 = vector.load %arg18[%c0_44, %c0_45] : memref<128x32xf32, #tpu.memory_space<vmem>>, vector<128x32xf32>
    tpu.vector_store %arg18[%c0_44, %c0_45], %34 {strides = array<i32>} : memref<128x32xf32, #tpu.memory_space<vmem>>, vector<128x32xf32>,
    %c16 = arith.constant 16 : index
    %c0_46 = arith.constant 0 : index
    %36 = vector.load %arg18[%c16, %c0_46] : memref<128x32xf32, #tpu.memory_space<vmem>>, vector<112x32xf32>
    %37 = vector.extract_strided_slice %31 {offsets = [0, 0], sizes = [112, 32], strides = [1, 1]} : vector<128x32xf32> to vector<112x32xf32>
    %cst_47 = arith.constant dense<0.000000e+00> : vector<112x32xf32>
    %38 = tpu.matmul %37, %15, %cst_47 {dimension_numbers = #tpu.dot_dimension_numbers<[1], [0], [0], [1], [0, 0, 1, 1], [], []>} : vector<112x32xf32>, vector<32x32xf32>, vector<112x32xf32> -> vector<112x32xf32>
    %39 = arith.addf %36, %38 : vector<112x32xf32>
    %c16_48 = arith.constant 16 : index
    %c0_49 = arith.constant 0 : index
    %40 = vector.load %arg18[%c16_48, %c0_49] : memref<128x32xf32, #tpu.memory_space<vmem>>, vector<112x32xf32>
    tpu.vector_store %arg18[%c16_48, %c0_49], %39 {strides = array<i32>} : memref<128x32xf32, #tpu.memory_space<vmem>>, vector<112x32xf32>,
    %c0_50 = arith.constant 0 : index
    %c0_51 = arith.constant 0 : index
    %41 = vector.load %arg18[%c0_50, %c0_51] : memref<128x32xf32, #tpu.memory_space<vmem>>, vector<112x32xf32>
    %42 = vector.extract_strided_slice %31 {offsets = [16, 0], sizes = [112, 32], strides = [1, 1]} : vector<128x32xf32> to vector<112x32xf32>
    %cst_52 = arith.constant dense<0.000000e+00> : vector<112x32xf32>
    %43 = tpu.matmul %42, %19, %cst_52 {dimension_numbers = #tpu.dot_dimension_numbers<[1], [0], [0], [1], [0, 0, 1, 1], [], []>} : vector<112x32xf32>, vector<32x32xf32>, vector<112x32xf32> -> vector<112x32xf32>
    %44 = arith.addf %41, %43 : vector<112x32xf32>
    %c0_53 = arith.constant 0 : index
    %c0_54 = arith.constant 0 : index
    %45 = vector.load %arg18[%c0_53, %c0_54] : memref<128x32xf32, #tpu.memory_space<vmem>>, vector<112x32xf32>
    tpu.vector_store %arg18[%c0_53, %c0_54], %44 {strides = array<i32>} : memref<128x32xf32, #tpu.memory_space<vmem>>, vector<112x32xf32>,
    %c0_55 = arith.constant 0 : index
    %c0_56 = arith.constant 0 : index
    %46 = vector.load %arg18[%c0_55, %c0_56] : memref<128x32xf32, #tpu.memory_space<vmem>>, vector<128x32xf32>
    %47 = vector.broadcast %23 : vector<1x32xf32> to vector<128x32xf32>
    %48 = arith.mulf %46, %47 : vector<128x32xf32>
    %49 = vector.broadcast %25 : vector<1x32xf32> to vector<128x32xf32>
    %50 = arith.addf %48, %49 : vector<128x32xf32>
    %cst_57 = arith.constant 0.000000e+00 : f32
    %51 = vector.broadcast %cst_57 : f32 to vector<128x32xf32>
    %52 = arith.maximumf %50, %51 : vector<128x32xf32>
    %53 = arith.addf %26, %52 : vector<128x32xf32>
    %cst_58 = arith.constant dense<0.000000e+00> : vector<128xf32>
    %54 = vector.multi_reduction <add>, %53, %cst_58 [1] : vector<128x32xf32> to vector<128xf32>
    %55 = vector.shape_cast %54 : vector<128xf32> to vector<128x1xf32>
    %cst_59 = arith.constant 3.200000e+01 : f32
    %56 = vector.broadcast %cst_59 : f32 to vector<128x1xf32>
    %57 = arith.divf %55, %56 : vector<128x1xf32>
    %58 = vector.broadcast %57 : vector<128x1xf32> to vector<128x32xf32>
    %59 = arith.subf %53, %58 : vector<128x32xf32>
    %60 = arith.mulf %59, %59 : vector<128x32xf32>
    %cst_60 = arith.constant dense<0.000000e+00> : vector<128xf32>
    %61 = vector.multi_reduction <add>, %60, %cst_60 [1] : vector<128x32xf32> to vector<128xf32>
    %62 = vector.shape_cast %61 : vector<128xf32> to vector<128x1xf32>
    %cst_61 = arith.constant 3.200000e+01 : f32
    %63 = vector.broadcast %cst_61 : f32 to vector<128x1xf32>
    %64 = arith.divf %62, %63 : vector<128x1xf32>
    %65 = vector.broadcast %57 : vector<128x1xf32> to vector<128x32xf32>
    %66 = arith.subf %53, %65 : vector<128x32xf32>
    %cst_62 = arith.constant 9.99999974E-6 : f32
    %67 = vector.broadcast %cst_62 : f32 to vector<128x1xf32>
    %68 = arith.addf %64, %67 : vector<128x1xf32>
    %69 = math.rsqrt %68 : vector<128x1xf32>
    %70 = vector.broadcast %69 : vector<128x1xf32> to vector<128x32xf32>
    %71 = arith.mulf %66, %70 : vector<128x32xf32>
    %72 = vector.broadcast %0 : vector<1x32xf32> to vector<128x32xf32>
    %73 = arith.mulf %71, %72 : vector<128x32xf32>
    %74 = vector.broadcast %1 : vector<1x32xf32> to vector<128x32xf32>
    %75 = arith.addf %73, %74 : vector<128x32xf32>
    %c0_63 = arith.constant 0 : index
    %c0_64 = arith.constant 0 : index
    %76 = vector.load %arg17[%c0_63, %c0_64] : memref<128x32xf32, #tpu.memory_space<vmem>>, vector<128x32xf32>
    tpu.vector_store %arg17[%c0_63, %c0_64], %75 {strides = array<i32>} : memref<128x32xf32, #tpu.memory_space<vmem>>, vector<128x32xf32>,
    %c1_65 = arith.constant 1 : index
    %c0_66 = arith.constant 0 : index
    %c0_67 = arith.constant 0 : index
    %77 = vector.load %arg6[%c1_65, %c0_66, %c0_67] : memref<2x32x32xf32, #tpu.memory_space<vmem>>, vector<1x32x32xf32>
    %78 = vector.shape_cast %77 : vector<1x32x32xf32> to vector<32x32xf32>
    %c1_68 = arith.constant 1 : index
    %c0_69 = arith.constant 0 : index
    %c0_70 = arith.constant 0 : index
    %79 = vector.load %arg7[%c1_68, %c0_69, %c0_70] : memref<2x1x32xf32, #tpu.memory_space<vmem>>, vector<1x1x32xf32>
    %80 = vector.shape_cast %79 : vector<1x1x32xf32> to vector<1x32xf32>
    %c1_71 = arith.constant 1 : index
    %c0_72 = arith.constant 0 : index
    %c0_73 = arith.constant 0 : index
    %c0_74 = arith.constant 0 : index
    %81 = vector.load %arg8[%c1_71, %c0_72, %c0_73, %c0_74] : memref<2x3x32x32xf32, #tpu.memory_space<vmem>>, vector<1x1x32x32xf32>
    %82 = vector.shape_cast %81 : vector<1x1x32x32xf32> to vector<32x32xf32>
    %c1_75 = arith.constant 1 : index
    %c1_76 = arith.constant 1 : index
    %c0_77 = arith.constant 0 : index
    %c0_78 = arith.constant 0 : index
    %83 = vector.load %arg8[%c1_75, %c1_76, %c0_77, %c0_78] : memref<2x3x32x32xf32, #tpu.memory_space<vmem>>, vector<1x1x32x32xf32>
    %84 = vector.shape_cast %83 : vector<1x1x32x32xf32> to vector<32x32xf32>
    %c1_79 = arith.constant 1 : index
    %c0_80 = arith.constant 0 : index
    %c0_81 = arith.constant 0 : index
    %85 = vector.load %arg9[%c1_79, %c0_80, %c0_81] : memref<2x1x32xf32, #tpu.memory_space<vmem>>, vector<1x1x32xf32>
    %86 = vector.shape_cast %85 : vector<1x1x32xf32> to vector<1x32xf32>
    %c1_82 = arith.constant 1 : index
    %c0_83 = arith.constant 0 : index
    %c0_84 = arith.constant 0 : index
    %87 = vector.load %arg10[%c1_82, %c0_83, %c0_84] : memref<2x1x32xf32, #tpu.memory_space<vmem>>, vector<1x1x32xf32>
    %88 = vector.shape_cast %87 : vector<1x1x32xf32> to vector<1x32xf32>
    %c1_85 = arith.constant 1 : index
    %c0_86 = arith.constant 0 : index
    %c0_87 = arith.constant 0 : index
    %89 = vector.load %arg11[%c1_85, %c0_86, %c0_87] : memref<2x1x32xf32, #tpu.memory_space<vmem>>, vector<1x1x32xf32>
    %90 = vector.shape_cast %89 : vector<1x1x32xf32> to vector<1x32xf32>
    %c0_88 = arith.constant 0 : index
    %c0_89 = arith.constant 0 : index
    %91 = vector.load %arg2[%c0_88, %c0_89] : memref<16x16xf32, #tpu.memory_space<vmem>>, vector<16x16xf32>
    %c112 = arith.constant 112 : index
    %c0_90 = arith.constant 0 : index
    %92 = vector.load %arg17[%c112, %c0_90] : memref<128x32xf32, #tpu.memory_space<vmem>>, vector<16x32xf32>
    %cst_91 = arith.constant dense<0.000000e+00> : vector<16x32xf32>
    %93 = tpu.matmul %92, %78, %cst_91 {dimension_numbers = #tpu.dot_dimension_numbers<[1], [0], [0], [1], [0, 0, 1, 1], [], []>} : vector<16x32xf32>, vector<32x32xf32>, vector<16x32xf32> -> vector<16x32xf32>
    %cst_92 = arith.constant dense<0.000000e+00> : vector<16x32xf32>
    %94 = tpu.matmul %91, %93, %cst_92 {dimension_numbers = #tpu.dot_dimension_numbers<[1], [0], [0], [1], [0, 0, 1, 1], [], []>} : vector<16x16xf32>, vector<16x32xf32>, vector<16x32xf32> -> vector<16x32xf32>
    %95 = vector.broadcast %80 : vector<1x32xf32> to vector<16x32xf32>
    %96 = arith.addf %94, %95 : vector<16x32xf32>
    %cst_93 = arith.constant dense<0.000000e+00> : vector<16x32xf32>
    %97 = tpu.matmul %96, %84, %cst_93 {dimension_numbers = #tpu.dot_dimension_numbers<[1], [0], [0], [1], [0, 0, 1, 1], [], []>} : vector<16x32xf32>, vector<32x32xf32>, vector<16x32xf32> -> vector<16x32xf32>
    %98 = vector.broadcast %86 : vector<1x32xf32> to vector<16x32xf32>
    %99 = arith.addf %97, %98 : vector<16x32xf32>
    %c80 = arith.constant 80 : index
    %c0_94 = arith.constant 0 : index
    %100 = vector.load %arg17[%c80, %c0_94] : memref<128x32xf32, #tpu.memory_space<vmem>>, vector<16x32xf32>
    %cst_95 = arith.constant dense<0.000000e+00> : vector<16x32xf32>
    %101 = tpu.matmul %100, %78, %cst_95 {dimension_numbers = #tpu.dot_dimension_numbers<[1], [0], [0], [1], [0, 0, 1, 1], [], []>} : vector<16x32xf32>, vector<32x32xf32>, vector<16x32xf32> -> vector<16x32xf32>
    %cst_96 = arith.constant dense<0.000000e+00> : vector<16x32xf32>
    %102 = tpu.matmul %91, %101, %cst_96 {dimension_numbers = #tpu.dot_dimension_numbers<[1], [0], [0], [1], [0, 0, 1, 1], [], []>} : vector<16x16xf32>, vector<16x32xf32>, vector<16x32xf32> -> vector<16x32xf32>
    %103 = vector.broadcast %80 : vector<1x32xf32> to vector<16x32xf32>
    %104 = arith.addf %102, %103 : vector<16x32xf32>
    %cst_97 = arith.constant dense<0.000000e+00> : vector<16x32xf32>
    %105 = tpu.matmul %104, %82, %cst_97 {dimension_numbers = #tpu.dot_dimension_numbers<[1], [0], [0], [1], [0, 0, 1, 1], [], []>} : vector<16x32xf32>, vector<32x32xf32>, vector<16x32xf32> -> vector<16x32xf32>
    %106 = arith.addf %99, %105 : vector<16x32xf32>
    %107 = vector.broadcast %88 : vector<1x32xf32> to vector<16x32xf32>
    %108 = arith.mulf %106, %107 : vector<16x32xf32>
    %109 = vector.broadcast %90 : vector<1x32xf32> to vector<16x32xf32>
    %110 = arith.addf %108, %109 : vector<16x32xf32>
    %cst_98 = arith.constant 0.000000e+00 : f32
    %111 = vector.broadcast %cst_98 : f32 to vector<16x32xf32>
    %112 = arith.maximumf %110, %111 : vector<16x32xf32>
    %113 = arith.addf %92, %112 : vector<16x32xf32>
    %cst_99 = arith.constant dense<0.000000e+00> : vector<16xf32>
    %114 = vector.multi_reduction <add>, %113, %cst_99 [1] : vector<16x32xf32> to vector<16xf32>
    %115 = vector.shape_cast %114 : vector<16xf32> to vector<16x1xf32>
    %cst_100 = arith.constant 3.200000e+01 : f32
    %116 = vector.broadcast %cst_100 : f32 to vector<16x1xf32>
    %117 = arith.divf %115, %116 : vector<16x1xf32>
    %118 = vector.broadcast %117 : vector<16x1xf32> to vector<16x32xf32>
    %119 = arith.subf %113, %118 : vector<16x32xf32>
    %120 = arith.mulf %119, %119 : vector<16x32xf32>
    %cst_101 = arith.constant dense<0.000000e+00> : vector<16xf32>
    %121 = vector.multi_reduction <add>, %120, %cst_101 [1] : vector<16x32xf32> to vector<16xf32>
    %122 = vector.shape_cast %121 : vector<16xf32> to vector<16x1xf32>
    %cst_102 = arith.constant 3.200000e+01 : f32
    %123 = vector.broadcast %cst_102 : f32 to vector<16x1xf32>
    %124 = arith.divf %122, %123 : vector<16x1xf32>
    %125 = vector.broadcast %117 : vector<16x1xf32> to vector<16x32xf32>
    %126 = arith.subf %113, %125 : vector<16x32xf32>
    %cst_103 = arith.constant 9.99999974E-6 : f32
    %127 = vector.broadcast %cst_103 : f32 to vector<16x1xf32>
    %128 = arith.addf %124, %127 : vector<16x1xf32>
    %129 = math.rsqrt %128 : vector<16x1xf32>
    %130 = vector.broadcast %129 : vector<16x1xf32> to vector<16x32xf32>
    %131 = arith.mulf %126, %130 : vector<16x32xf32>
    %132 = vector.broadcast %0 : vector<1x32xf32> to vector<16x32xf32>
    %133 = arith.mulf %131, %132 : vector<16x32xf32>
    %134 = vector.broadcast %1 : vector<1x32xf32> to vector<16x32xf32>
    %135 = arith.addf %133, %134 : vector<16x32xf32>
    %c112_104 = arith.constant 112 : index
    %c0_105 = arith.constant 0 : index
    %136 = vector.load %arg17[%c112_104, %c0_105] : memref<128x32xf32, #tpu.memory_space<vmem>>, vector<16x32xf32>
    tpu.vector_store %arg17[%c112_104, %c0_105], %135 {strides = array<i32>} : memref<128x32xf32, #tpu.memory_space<vmem>>, vector<16x32xf32>,
    %c112_106 = arith.constant 112 : index
    %c0_107 = arith.constant 0 : index
    %137 = vector.load %arg17[%c112_106, %c0_107] : memref<128x32xf32, #tpu.memory_space<vmem>>, vector<16x32xf32>
    %c0_108 = arith.constant 0 : index
    %c0_109 = arith.constant 0 : index
    %138 = vector.load %arg14[%c0_108, %c0_109] : memref<32x4xf32, #tpu.memory_space<vmem>>, vector<32x4xf32>
    %cst_110 = arith.constant dense<0.000000e+00> : vector<16x4xf32>
    %139 = tpu.matmul %137, %138, %cst_110 {dimension_numbers = #tpu.dot_dimension_numbers<[1], [0], [0], [1], [0, 0, 1, 1], [], []>} : vector<16x32xf32>, vector<32x4xf32>, vector<16x4xf32> -> vector<16x4xf32>
    %c0_111 = arith.constant 0 : index
    %c0_112 = arith.constant 0 : index
    %140 = vector.load %arg15[%c0_111, %c0_112] : memref<1x4xf32, #tpu.memory_space<vmem>>, vector<1x4xf32>
    %141 = vector.broadcast %140 : vector<1x4xf32> to vector<16x4xf32>
    %142 = arith.addf %139, %141 : vector<16x4xf32>
    %c0_113 = arith.constant 0 : index
    %c0_114 = arith.constant 0 : index
    %c0_115 = arith.constant 0 : index
    %143 = vector.load %arg16[%c0_113, %c0_114, %c0_115] : memref<1x16x4xf32, #tpu.memory_space<vmem>>, vector<1x16x4xf32>
    %144 = vector.shape_cast %143 : vector<1x16x4xf32> to vector<16x4xf32>
    %145 = vector.shape_cast %142 : vector<16x4xf32> to vector<1x16x4xf32>
    tpu.vector_store %arg16[%c0_113, %c0_114, %c0_115], %145 {strides = array<i32>} : memref<1x16x4xf32, #tpu.memory_space<vmem>>, vector<1x16x4xf32>,
    return
  }
  func.func @transform_0(%arg0: i32) -> (i32, i32, i32) {
    %c0_i32 = arith.constant 0 : i32
    %c0_i32_0 = arith.constant 0 : i32
    %c0_i32_1 = arith.constant 0 : i32
    return %arg0, %c0_i32, %c0_i32_0 : i32, i32, i32
  }
  func.func @transform_1(%arg0: i32) -> (i32, i32) {
    %c0_i32 = arith.constant 0 : i32
    %c0_i32_0 = arith.constant 0 : i32
    %c0_i32_1 = arith.constant 0 : i32
    return %c0_i32, %c0_i32_0 : i32, i32
  }
  func.func @transform_2(%arg0: i32) -> (i32, i32) {
    %c0_i32 = arith.constant 0 : i32
    %c0_i32_0 = arith.constant 0 : i32
    %c0_i32_1 = arith.constant 0 : i32
    return %c0_i32, %c0_i32_0 : i32, i32
  }
  func.func @transform_3(%arg0: i32) -> (i32, i32) {
    %c0_i32 = arith.constant 0 : i32
    %c0_i32_0 = arith.constant 0 : i32
    %c0_i32_1 = arith.constant 0 : i32
    return %c0_i32, %c0_i32_0 : i32, i32
  }
  func.func @transform_4(%arg0: i32) -> (i32, i32) {
    %c0_i32 = arith.constant 0 : i32
    %c0_i32_0 = arith.constant 0 : i32
    %c0_i32_1 = arith.constant 0 : i32
    return %c0_i32, %c0_i32_0 : i32, i32
  }
  func.func @transform_5(%arg0: i32) -> (i32, i32, i32) {
    %c0_i32 = arith.constant 0 : i32
    %c0_i32_0 = arith.constant 0 : i32
    %c0_i32_1 = arith.constant 0 : i32
    %c0_i32_2 = arith.constant 0 : i32
    return %c0_i32, %c0_i32_0, %c0_i32_1 : i32, i32, i32
  }
  func.func @transform_6(%arg0: i32) -> (i32, i32, i32) {
    %c0_i32 = arith.constant 0 : i32
    %c0_i32_0 = arith.constant 0 : i32
    %c0_i32_1 = arith.constant 0 : i32
    %c0_i32_2 = arith.constant 0 : i32
    return %c0_i32, %c0_i32_0, %c0_i32_1 : i32, i32, i32
  }
  func.func @transform_7(%arg0: i32) -> (i32, i32, i32, i32) {
    %c0_i32 = arith.constant 0 : i32
    %c0_i32_0 = arith.constant 0 : i32
    %c0_i32_1 = arith.constant 0 : i32
    %c0_i32_2 = arith.constant 0 : i32
    %c0_i32_3 = arith.constant 0 : i32
    return %c0_i32, %c0_i32_0, %c0_i32_1, %c0_i32_2 : i32, i32, i32, i32
  }
  func.func @transform_8(%arg0: i32) -> (i32, i32, i32) {
    %c0_i32 = arith.constant 0 : i32
    %c0_i32_0 = arith.constant 0 : i32
    %c0_i32_1 = arith.constant 0 : i32
    %c0_i32_2 = arith.constant 0 : i32
    return %c0_i32, %c0_i32_0, %c0_i32_1 : i32, i32, i32
  }
  func.func @transform_9(%arg0: i32) -> (i32, i32, i32) {
    %c0_i32 = arith.constant 0 : i32
    %c0_i32_0 = arith.constant 0 : i32
    %c0_i32_1 = arith.constant 0 : i32
    %c0_i32_2 = arith.constant 0 : i32
    return %c0_i32, %c0_i32_0, %c0_i32_1 : i32, i32, i32
  }
  func.func @transform_10(%arg0: i32) -> (i32, i32, i32) {
    %c0_i32 = arith.constant 0 : i32
    %c0_i32_0 = arith.constant 0 : i32
    %c0_i32_1 = arith.constant 0 : i32
    %c0_i32_2 = arith.constant 0 : i32
    return %c0_i32, %c0_i32_0, %c0_i32_1 : i32, i32, i32
  }
  func.func @transform_11(%arg0: i32) -> (i32, i32) {
    %c0_i32 = arith.constant 0 : i32
    %c0_i32_0 = arith.constant 0 : i32
    %c0_i32_1 = arith.constant 0 : i32
    return %c0_i32, %c0_i32_0 : i32, i32
  }
  func.func @transform_12(%arg0: i32) -> (i32, i32) {
    %c0_i32 = arith.constant 0 : i32
    %c0_i32_0 = arith.constant 0 : i32
    %c0_i32_1 = arith.constant 0 : i32
    return %c0_i32, %c0_i32_0 : i32, i32
  }
  func.func @transform_13(%arg0: i32) -> (i32, i32) {
    %c0_i32 = arith.constant 0 : i32
    %c0_i32_0 = arith.constant 0 : i32
    %c0_i32_1 = arith.constant 0 : i32
    return %c0_i32, %c0_i32_0 : i32, i32
  }
  func.func @transform_14(%arg0: i32) -> (i32, i32) {
    %c0_i32 = arith.constant 0 : i32
    %c0_i32_0 = arith.constant 0 : i32
    %c0_i32_1 = arith.constant 0 : i32
    return %c0_i32, %c0_i32_0 : i32, i32
  }
  func.func @transform_15(%arg0: i32) -> (i32, i32, i32) {
    %c0_i32 = arith.constant 0 : i32
    %c0_i32_0 = arith.constant 0 : i32
    %c0_i32_1 = arith.constant 0 : i32
    return %arg0, %c0_i32, %c0_i32_0 : i32, i32, i32
  }
}

</mosaic_0001>

<llo_original>
// kernel: tpu_custom_call.1
$region0: #{tpu_custom_call.1}
  #allocation0 [shape = 'u32[]', space=smem, size = 0x4, offset = 0x4, fixed_abs, tag = 'smem constant byte address 0x4 - core index']
  #allocation1 [shape = 'u32[144,128]{1,0:T(1,128)}', space=vmem, size = 0x12000, scoped, tag = 'internal scratch']
  #allocation2 [shape = 'f32[128,32]{1,0:T(8,128)}', space=vmem, size = 0x10000, scoped, tag = 'scratch operand']
  #allocation3 [shape = 'f32[128,32]{1,0:T(8,128)}', space=vmem, size = 0x10000, scoped, tag = 'scratch operand']
  %s0 = inlined_call_operand.vmem [shape: f32[2,128,4], index: 0, kind: input, shape index: {}]
  %s1 = inlined_call_operand.vmem [shape: f32[16,16], index: 1, kind: input, shape index: {}]
  %s2 = inlined_call_operand.hbm [shape: f32[128,128], index: 2, kind: input, shape index: {}]
  %s3 = inlined_call_operand.vmem [shape: f32[4,32], index: 3, kind: input, shape index: {}]
  %s4 = inlined_call_operand.vmem [shape: f32[1,32], index: 4, kind: input, shape index: {}]
  %s5 = inlined_call_operand.vmem [shape: f32[2,32,32], index: 5, kind: input, shape index: {}]
  %s6 = inlined_call_operand.vmem [shape: f32[2,1,32], index: 6, kind: input, shape index: {}]
  %s7 = inlined_call_operand.vmem [shape: f32[2,3,32,32], index: 7, kind: input, shape index: {}]
  %s8 = inlined_call_operand.vmem [shape: f32[2,1,32], index: 8, kind: input, shape index: {}]
  %s9 = inlined_call_operand.vmem [shape: f32[2,1,32], index: 9, kind: input, shape index: {}]
  %s10 = inlined_call_operand.vmem [shape: f32[2,1,32], index: 10, kind: input, shape index: {}]
  %s11 = inlined_call_operand.vmem [shape: f32[1,32], index: 11, kind: input, shape index: {}]
  %s12 = inlined_call_operand.vmem [shape: f32[1,32], index: 12, kind: input, shape index: {}]
  %s13 = inlined_call_operand.vmem [shape: f32[32,4], index: 13, kind: input, shape index: {}]
  %s14 = inlined_call_operand.vmem [shape: f32[1,4], index: 14, kind: input, shape index: {}]
  %s15 = inlined_call_operand.vmem [shape: f32[2,16,4], index: 15, kind: output, shape index: {}]
  %s16 = sld [smem:[#allocation0]]
  $region97: #{tpu_custom_call.1} parent=0
    _
  %s18 = ssub.s32 1, %s16
  %s19 = scalar_select 0, %s18, %s16
  $region1: #{tpu_custom_call.1} parent=0
    #allocation4 [shape = 'u8[65536]{0}', space=vmem, size = 0x10000, scoped, tag = 'input window, operand 2, single buffered']
    #allocation5 [shape = 's32[2]{0}', space=sflag, size = 0x8, scoped, tag = 'scoped memory for tpu_custom_call.1']
    %20 = vsyncpa [#allocation5], 0
    loop: start=0, step=1, limit=4
    $region2: #{tpu_custom_call.1} parent=1 // loop_pre_header
      _
    $region3: #{tpu_custom_call.1} parent=1 // loop_header
      %s22 = sphi 0, %s26
      %p23 = scmp.ge.s32.totalorder %s22, 4
      %s32 = sphi 0, %s34
      %s35 = sphi 0, %s32
      %s36 = sphi 0, %s35
      %s52 = sphi 0, %s36
      %s56 = sphi 0, %s56
      %s58 = sphi 0, %s56
      %s59 = sphi 0, %s58
      %s73 = sphi 0, %s59
      %s77 = sphi 0, %s77
      %s79 = sphi 0, %s77
      %s80 = sphi 0, %s79
      %s94 = sphi 0, %s80
      %s98 = sphi 0, %s98
      %s100 = sphi 0, %s98
      %s101 = sphi 0, %s100
      %s115 = sphi 0, %s101
      %s119 = sphi 0, %s119
      %s121 = sphi 0, %s119
      %s122 = sphi 0, %s121
      %s136 = sphi 0, %s122
      %s140 = sphi 0, %s140
      %s142 = sphi 0, %s140
      %s143 = sphi 0, %s142
      %s157 = sphi 0, %s143
      %s161 = sphi 0, %s161
      %s163 = sphi 0, %s161
      %s164 = sphi 0, %s163
      %s178 = sphi 0, %s164
      %s182 = sphi 0, %s182
      %s184 = sphi 0, %s182
      %s185 = sphi 0, %s184
      %s199 = sphi 0, %s185
      %s203 = sphi 0, %s203
      %s205 = sphi 0, %s203
      %s206 = sphi 0, %s205
      %s220 = sphi 0, %s206
      %s224 = sphi 0, %s224
      %s226 = sphi 0, %s224
      %s227 = sphi 0, %s226
      %s241 = sphi 0, %s227
      %s245 = sphi 0, %s245
      %s247 = sphi 0, %s245
      %s248 = sphi 0, %s247
      %s262 = sphi 0, %s248
      %s266 = sphi 0, %s266
      %s268 = sphi 0, %s266
      %s269 = sphi 0, %s268
      %s283 = sphi 0, %s269
      %s287 = sphi 0, %s287
      %s289 = sphi 0, %s287
      %s290 = sphi 0, %s289
      %s304 = sphi 0, %s290
      %s308 = sphi 0, %s308
      %s310 = sphi 0, %s308
      %s311 = sphi 0, %s310
      %s325 = sphi 0, %s311
      %s329 = sphi 0, %s329
      %s331 = sphi 0, %s329
      %s332 = sphi 0, %s331
      %s346 = sphi 0, %s332
      %s352 = sphi 0, %s354
      %s355 = sphi 0, %s352
      %s356 = sphi 0, %s355
      %s372 = sphi 0, %s356
    $region4: #{tpu_custom_call.1} parent=1 // loop_header_branch
      %25 = sbr.rel (%p23) target = $region8
    $region5: #{tpu_custom_call.1} parent=1 // loop_body
      %s27 = ssub.s32 %s22, 1
      %s28 = ssub.s32 %s22, 2
      %s29 = sadd.s32 %s22, 1
      %s30 = ssub.s32 %s22, %s29
      %p31 = scmp.eq.s32.totalorder %s30, 0
      %s33 = sadd.s32 %s32, 1
      %s34 = scalar_select %p31, %s32, %s33
      %p37 = pneg %p31
      %p38 = scmp.eq.s32.totalorder %s22, 1
      %p39 = por %p37, %p38
      %p40 = scmp.ne.s32.totalorder %s32, %s35
      %p41 = scmp.eq.s32.totalorder %s22, 0
      %p42 = por %p40, %p41
      %p43 = scmp.ne.s32.totalorder %s32, %s35
      %p44 = scmp.eq.s32.totalorder %s27, 1
      %p45 = por %p43, %p44
      %p46 = scmp.ne.s32.totalorder %s35, %s36
      %p47 = scmp.eq.s32.totalorder %s27, 0
      %p48 = por %p46, %p47
      %p49 = scmp.ne.s32.totalorder %s35, %s36
      %p50 = scmp.eq.s32.totalorder %s28, 1
      %p51 = por %p49, %p50
      %p53 = scmp.ne.s32.totalorder %s36, %s52
      %p54 = scmp.eq.s32.totalorder %s28, 0
      %p55 = por %p53, %p54
      %s57 = sadd.s32 %s56, 1
      %p60 = scmp.eq.s32.totalorder %s22, 1
      %p61 = scmp.ne.s32.totalorder %s56, %s58
      %p62 = scmp.eq.s32.totalorder %s22, 0
      %p63 = por %p61, %p62
      %p64 = scmp.ne.s32.totalorder %s56, %s58
      %p65 = scmp.eq.s32.totalorder %s27, 1
      %p66 = por %p64, %p65
      %p67 = scmp.ne.s32.totalorder %s58, %s59
      %p68 = scmp.eq.s32.totalorder %s27, 0
      %p69 = por %p67, %p68
      %p70 = scmp.ne.s32.totalorder %s58, %s59
      %p71 = scmp.eq.s32.totalorder %s28, 1
      %p72 = por %p70, %p71
      %p74 = scmp.ne.s32.totalorder %s59, %s73
      %p75 = scmp.eq.s32.totalorder %s28, 0
      %p76 = por %p74, %p75
      %s78 = sadd.s32 %s77, 1
      %p81 = scmp.eq.s32.totalorder %s22, 1
      %p82 = scmp.ne.s32.totalorder %s77, %s79
      %p83 = scmp.eq.s32.totalorder %s22, 0
      %p84 = por %p82, %p83
      %p85 = scmp.ne.s32.totalorder %s77, %s79
      %p86 = scmp.eq.s32.totalorder %s27, 1
      %p87 = por %p85, %p86
      %p88 = scmp.ne.s32.totalorder %s79, %s80
      %p89 = scmp.eq.s32.totalorder %s27, 0
      %p90 = por %p88, %p89
      %p91 = scmp.ne.s32.totalorder %s79, %s80
      %p92 = scmp.eq.s32.totalorder %s28, 1
      %p93 = por %p91, %p92
      %p95 = scmp.ne.s32.totalorder %s80, %s94
      %p96 = scmp.eq.s32.totalorder %s28, 0
      %p97 = por %p95, %p96
      %s99 = sadd.s32 %s98, 1
      %p102 = scmp.eq.s32.totalorder %s22, 1
      %p103 = scmp.ne.s32.totalorder %s98, %s100
      %p104 = scmp.eq.s32.totalorder %s22, 0
      %p105 = por %p103, %p104
      %p106 = scmp.ne.s32.totalorder %s98, %s100
      %p107 = scmp.eq.s32.totalorder %s27, 1
      %p108 = por %p106, %p107
      %p109 = scmp.ne.s32.totalorder %s100, %s101
      %p110 = scmp.eq.s32.totalorder %s27, 0
      %p111 = por %p109, %p110
      %p112 = scmp.ne.s32.totalorder %s100, %s101
      %p113 = scmp.eq.s32.totalorder %s28, 1
      %p114 = por %p112, %p113
      %p116 = scmp.ne.s32.totalorder %s101, %s115
      %p117 = scmp.eq.s32.totalorder %s28, 0
      %p118 = por %p116, %p117
      %s120 = sadd.s32 %s119, 1
      %p123 = scmp.eq.s32.totalorder %s22, 1
      %p124 = scmp.ne.s32.totalorder %s119, %s121
      %p125 = scmp.eq.s32.totalorder %s22, 0
      %p126 = por %p124, %p125
      %p127 = scmp.ne.s32.totalorder %s119, %s121
      %p128 = scmp.eq.s32.totalorder %s27, 1
      %p129 = por %p127, %p128
      %p130 = scmp.ne.s32.totalorder %s121, %s122
      %p131 = scmp.eq.s32.totalorder %s27, 0
      %p132 = por %p130, %p131
      %p133 = scmp.ne.s32.totalorder %s121, %s122
      %p134 = scmp.eq.s32.totalorder %s28, 1
      %p135 = por %p133, %p134
      %p137 = scmp.ne.s32.totalorder %s122, %s136
      %p138 = scmp.eq.s32.totalorder %s28, 0
      %p139 = por %p137, %p138
      %s141 = sadd.s32 %s140, 1
      %p144 = scmp.eq.s32.totalorder %s22, 1
      %p145 = scmp.ne.s32.totalorder %s140, %s142
      %p146 = scmp.eq.s32.totalorder %s22, 0
      %p147 = por %p145, %p146
      %p148 = scmp.ne.s32.totalorder %s140, %s142
      %p149 = scmp.eq.s32.totalorder %s27, 1
      %p150 = por %p148, %p149
      %p151 = scmp.ne.s32.totalorder %s142, %s143
      %p152 = scmp.eq.s32.totalorder %s27, 0
      %p153 = por %p151, %p152
      %p154 = scmp.ne.s32.totalorder %s142, %s143
      %p155 = scmp.eq.s32.totalorder %s28, 1
      %p156 = por %p154, %p155
      %p158 = scmp.ne.s32.totalorder %s143, %s157
      %p159 = scmp.eq.s32.totalorder %s28, 0
      %p160 = por %p158, %p159
      %s162 = sadd.s32 %s161, 1
      %p165 = scmp.eq.s32.totalorder %s22, 1
      %p166 = scmp.ne.s32.totalorder %s161, %s163
      %p167 = scmp.eq.s32.totalorder %s22, 0
      %p168 = por %p166, %p167
      %p169 = scmp.ne.s32.totalorder %s161, %s163
      %p170 = scmp.eq.s32.totalorder %s27, 1
      %p171 = por %p169, %p170
      %p172 = scmp.ne.s32.totalorder %s163, %s164
      %p173 = scmp.eq.s32.totalorder %s27, 0
      %p174 = por %p172, %p173
      %p175 = scmp.ne.s32.totalorder %s163, %s164
      %p176 = scmp.eq.s32.totalorder %s28, 1
      %p177 = por %p175, %p176
      %p179 = scmp.ne.s32.totalorder %s164, %s178
      %p180 = scmp.eq.s32.totalorder %s28, 0
      %p181 = por %p179, %p180
      %s183 = sadd.s32 %s182, 1
      %p186 = scmp.eq.s32.totalorder %s22, 1
      %p187 = scmp.ne.s32.totalorder %s182, %s184
      %p188 = scmp.eq.s32.totalorder %s22, 0
      %p189 = por %p187, %p188
      %p190 = scmp.ne.s32.totalorder %s182, %s184
      %p191 = scmp.eq.s32.totalorder %s27, 1
      %p192 = por %p190, %p191
      %p193 = scmp.ne.s32.totalorder %s184, %s185
      %p194 = scmp.eq.s32.totalorder %s27, 0
      %p195 = por %p193, %p194
      %p196 = scmp.ne.s32.totalorder %s184, %s185
      %p197 = scmp.eq.s32.totalorder %s28, 1
      %p198 = por %p196, %p197
      %p200 = scmp.ne.s32.totalorder %s185, %s199
      %p201 = scmp.eq.s32.totalorder %s28, 0
      %p202 = por %p200, %p201
      %s204 = sadd.s32 %s203, 1
      %p207 = scmp.eq.s32.totalorder %s22, 1
      %p208 = scmp.ne.s32.totalorder %s203, %s205
      %p209 = scmp.eq.s32.totalorder %s22, 0
      %p210 = por %p208, %p209
      %p211 = scmp.ne.s32.totalorder %s203, %s205
      %p212 = scmp.eq.s32.totalorder %s27, 1
      %p213 = por %p211, %p212
      %p214 = scmp.ne.s32.totalorder %s205, %s206
      %p215 = scmp.eq.s32.totalorder %s27, 0
      %p216 = por %p214, %p215
      %p217 = scmp.ne.s32.totalorder %s205, %s206
      %p218 = scmp.eq.s32.totalorder %s28, 1
      %p219 = por %p217, %p218
      %p221 = scmp.ne.s32.totalorder %s206, %s220
      %p222 = scmp.eq.s32.totalorder %s28, 0
      %p223 = por %p221, %p222
      %s225 = sadd.s32 %s224, 1
      %p228 = scmp.eq.s32.totalorder %s22, 1
      %p229 = scmp.ne.s32.totalorder %s224, %s226
      %p230 = scmp.eq.s32.totalorder %s22, 0
      %p231 = por %p229, %p230
      %p232 = scmp.ne.s32.totalorder %s224, %s226
      %p233 = scmp.eq.s32.totalorder %s27, 1
      %p234 = por %p232, %p233
      %p235 = scmp.ne.s32.totalorder %s226, %s227
      %p236 = scmp.eq.s32.totalorder %s27, 0
      %p237 = por %p235, %p236
      %p238 = scmp.ne.s32.totalorder %s226, %s227
      %p239 = scmp.eq.s32.totalorder %s28, 1
      %p240 = por %p238, %p239
      %p242 = scmp.ne.s32.totalorder %s227, %s241
      %p243 = scmp.eq.s32.totalorder %s28, 0
      %p244 = por %p242, %p243
      %s246 = sadd.s32 %s245, 1
      %p249 = scmp.eq.s32.totalorder %s22, 1
      %p250 = scmp.ne.s32.totalorder %s245, %s247
      %p251 = scmp.eq.s32.totalorder %s22, 0
      %p252 = por %p250, %p251
      %p253 = scmp.ne.s32.totalorder %s245, %s247
      %p254 = scmp.eq.s32.totalorder %s27, 1
      %p255 = por %p253, %p254
      %p256 = scmp.ne.s32.totalorder %s247, %s248
      %p257 = scmp.eq.s32.totalorder %s27, 0
      %p258 = por %p256, %p257
      %p259 = scmp.ne.s32.totalorder %s247, %s248
      %p260 = scmp.eq.s32.totalorder %s28, 1
      %p261 = por %p259, %p260
      %p263 = scmp.ne.s32.totalorder %s248, %s262
      %p264 = scmp.eq.s32.totalorder %s28, 0
      %p265 = por %p263, %p264
      %s267 = sadd.s32 %s266, 1
      %p270 = scmp.eq.s32.totalorder %s22, 1
      %p271 = scmp.ne.s32.totalorder %s266, %s268
      %p272 = scmp.eq.s32.totalorder %s22, 0
      %p273 = por %p271, %p272
      %p274 = scmp.ne.s32.totalorder %s266, %s268
      %p275 = scmp.eq.s32.totalorder %s27, 1
      %p276 = por %p274, %p275
      %p277 = scmp.ne.s32.totalorder %s268, %s269
      %p278 = scmp.eq.s32.totalorder %s27, 0
      %p279 = por %p277, %p278
      %p280 = scmp.ne.s32.totalorder %s268, %s269
      %p281 = scmp.eq.s32.totalorder %s28, 1
      %p282 = por %p280, %p281
      %p284 = scmp.ne.s32.totalorder %s269, %s283
      %p285 = scmp.eq.s32.totalorder %s28, 0
      %p286 = por %p284, %p285
      %s288 = sadd.s32 %s287, 1
      %p291 = scmp.eq.s32.totalorder %s22, 1
      %p292 = scmp.ne.s32.totalorder %s287, %s289
      %p293 = scmp.eq.s32.totalorder %s22, 0
      %p294 = por %p292, %p293
      %p295 = scmp.ne.s32.totalorder %s287, %s289
      %p296 = scmp.eq.s32.totalorder %s27, 1
      %p297 = por %p295, %p296
      %p298 = scmp.ne.s32.totalorder %s289, %s290
      %p299 = scmp.eq.s32.totalorder %s27, 0
      %p300 = por %p298, %p299
      %p301 = scmp.ne.s32.totalorder %s289, %s290
      %p302 = scmp.eq.s32.totalorder %s28, 1
      %p303 = por %p301, %p302
      %p305 = scmp.ne.s32.totalorder %s290, %s304
      %p306 = scmp.eq.s32.totalorder %s28, 0
      %p307 = por %p305, %p306
      %s309 = sadd.s32 %s308, 1
      %p312 = scmp.eq.s32.totalorder %s22, 1
      %p313 = scmp.ne.s32.totalorder %s308, %s310
      %p314 = scmp.eq.s32.totalorder %s22, 0
      %p315 = por %p313, %p314
      %p316 = scmp.ne.s32.totalorder %s308, %s310
      %p317 = scmp.eq.s32.totalorder %s27, 1
      %p318 = por %p316, %p317
      %p319 = scmp.ne.s32.totalorder %s310, %s311
      %p320 = scmp.eq.s32.totalorder %s27, 0
      %p321 = por %p319, %p320
      %p322 = scmp.ne.s32.totalorder %s310, %s311
      %p323 = scmp.eq.s32.totalorder %s28, 1
      %p324 = por %p322, %p323
      %p326 = scmp.ne.s32.totalorder %s311, %s325
      %p327 = scmp.eq.s32.totalorder %s28, 0
      %p328 = por %p326, %p327
      %s330 = sadd.s32 %s329, 1
      %p333 = scmp.eq.s32.totalorder %s22, 1
      %p334 = scmp.ne.s32.totalorder %s329, %s331
      %p335 = scmp.eq.s32.totalorder %s22, 0
      %p336 = por %p334, %p335
      %p337 = scmp.ne.s32.totalorder %s329, %s331
      %p338 = scmp.eq.s32.totalorder %s27, 1
      %p339 = por %p337, %p338
      %p340 = scmp.ne.s32.totalorder %s331, %s332
      %p341 = scmp.eq.s32.totalorder %s27, 0
      %p342 = por %p340, %p341
      %p343 = scmp.ne.s32.totalorder %s331, %s332
      %p344 = scmp.eq.s32.totalorder %s28, 1
      %p345 = por %p343, %p344
      %p347 = scmp.ne.s32.totalorder %s332, %s346
      %p348 = scmp.eq.s32.totalorder %s28, 0
      %p349 = por %p347, %p348
      %s350 = ssub.s32 %s22, %s29
      %p351 = scmp.eq.s32.totalorder %s350, 0
      %s353 = sadd.s32 %s352, 1
      %s354 = scalar_select %p351, %s352, %s353
      %p357 = pneg %p351
      %p358 = scmp.eq.s32.totalorder %s22, 1
      %p359 = por %p357, %p358
      %p360 = scmp.ne.s32.totalorder %s352, %s355
      %p361 = scmp.eq.s32.totalorder %s22, 0
      %p362 = por %p360, %p361
      %p363 = scmp.ne.s32.totalorder %s352, %s355
      %p364 = scmp.eq.s32.totalorder %s27, 1
      %p365 = por %p363, %p364
      %p366 = scmp.ne.s32.totalorder %s355, %s356
      %p367 = scmp.eq.s32.totalorder %s27, 0
      %p368 = por %p366, %p367
      %p369 = scmp.ne.s32.totalorder %s355, %s356
      %p370 = scmp.eq.s32.totalorder %s28, 1
      %p371 = por %p369, %p370
      %p373 = scmp.ne.s32.totalorder %s356, %s372
      %p374 = scmp.eq.s32.totalorder %s28, 0
      %p375 = por %p373, %p374
      %p376 = scmp.le.s32.totalorder 1, %s22
      %p377 = scmp.lt.s32.totalorder %s22, 3
      %p378 = pnand %p376, %p377
      %p379 = pneg %p378
      // Predicated region
      $region9: #{tpu_custom_call.1} parent=5 // pred_check
        _
      $region10: #{tpu_custom_call.1} parent=5 // pred_check_branch
        %381 = sbr.rel (%p378) target = $region12
      $region11: #{tpu_custom_call.1} parent=5 // pred_region
        %s382 = ssub.s32 %s22, 1
        // Predicated region
        $region13: #{tpu_custom_call.1} parent=11 // pred_check
          %p383 = pneg %p69
        $region14: #{tpu_custom_call.1} parent=11 // pred_check_branch
          %385 = sbr.rel (%p383) target = $region16
        $region15: #{tpu_custom_call.1} parent=11 // pred_region
          _
        $region16: #{tpu_custom_call.1} parent=11 // pred_fallthru
          _
        // Predicated region
        $region17: #{tpu_custom_call.1} parent=11 // pred_check
          %p386 = pneg %p90
        $region18: #{tpu_custom_call.1} parent=11 // pred_check_branch
          %388 = sbr.rel (%p386) target = $region20
        $region19: #{tpu_custom_call.1} parent=11 // pred_region
          %s390 = ssub.s32 2048, 2048
          %391 = vsyncadd [#allocation5], %s390
          %s392 = sshll.u32 [#allocation4], 4
          %s393 = int_to_ptr.vmem [resolvable:$true] %s392
          %398 = dma.hbm_to_vmem [thread:$0]  %s2, 2048, %s393, [#allocation5], 128, 128, 8
        $region20: #{tpu_custom_call.1} parent=11 // pred_fallthru
          _
        // Predicated region
        $region21: #{tpu_custom_call.1} parent=11 // pred_check
          %p399 = pneg %p111
        $region22: #{tpu_custom_call.1} parent=11 // pred_check_branch
          %401 = sbr.rel (%p399) target = $region24
        $region23: #{tpu_custom_call.1} parent=11 // pred_region
          _
        $region24: #{tpu_custom_call.1} parent=11 // pred_fallthru
          _
        // Predicated region
        $region25: #{tpu_custom_call.1} parent=11 // pred_check
          %p402 = pneg %p132
        $region26: #{tpu_custom_call.1} parent=11 // pred_check_branch
          %404 = sbr.rel (%p402) target = $region28
        $region27: #{tpu_custom_call.1} parent=11 // pred_region
          _
        $region28: #{tpu_custom_call.1} parent=11 // pred_fallthru
          _
        // Predicated region
        $region29: #{tpu_custom_call.1} parent=11 // pred_check
          %p405 = pneg %p153
        $region30: #{tpu_custom_call.1} parent=11 // pred_check_branch
          %407 = sbr.rel (%p405) target = $region32
        $region31: #{tpu_custom_call.1} parent=11 // pred_region
          _
        $region32: #{tpu_custom_call.1} parent=11 // pred_fallthru
          _
        // Predicated region
        $region33: #{tpu_custom_call.1} parent=11 // pred_check
          %p408 = pneg %p174
        $region34: #{tpu_custom_call.1} parent=11 // pred_check_branch
          %410 = sbr.rel (%p408) target = $region36
        $region35: #{tpu_custom_call.1} parent=11 // pred_region
          _
        $region36: #{tpu_custom_call.1} parent=11 // pred_fallthru
          _
        // Predicated region
        $region37: #{tpu_custom_call.1} parent=11 // pred_check
          %p411 = pneg %p195
        $region38: #{tpu_custom_call.1} parent=11 // pred_check_branch
          %413 = sbr.rel (%p411) target = $region40
        $region39: #{tpu_custom_call.1} parent=11 // pred_region
          _
        $region40: #{tpu_custom_call.1} parent=11 // pred_fallthru
          _
        // Predicated region
        $region41: #{tpu_custom_call.1} parent=11 // pred_check
          %p414 = pneg %p216
        $region42: #{tpu_custom_call.1} parent=11 // pred_check_branch
          %416 = sbr.rel (%p414) target = $region44
        $region43: #{tpu_custom_call.1} parent=11 // pred_region
          _
        $region44: #{tpu_custom_call.1} parent=11 // pred_fallthru
          _
        // Predicated region
        $region45: #{tpu_custom_call.1} parent=11 // pred_check
          %p417 = pneg %p237
        $region46: #{tpu_custom_call.1} parent=11 // pred_check_branch
          %419 = sbr.rel (%p417) target = $region48
        $region47: #{tpu_custom_call.1} parent=11 // pred_region
          _
        $region48: #{tpu_custom_call.1} parent=11 // pred_fallthru
          _
        // Predicated region
        $region49: #{tpu_custom_call.1} parent=11 // pred_check
          %p420 = pneg %p258
        $region50: #{tpu_custom_call.1} parent=11 // pred_check_branch
          %422 = sbr.rel (%p420) target = $region52
        $region51: #{tpu_custom_call.1} parent=11 // pred_region
          _
        $region52: #{tpu_custom_call.1} parent=11 // pred_fallthru
          _
        // Predicated region
        $region53: #{tpu_custom_call.1} parent=11 // pred_check
          %p423 = pneg %p279
        $region54: #{tpu_custom_call.1} parent=11 // pred_check_branch
          %425 = sbr.rel (%p423) target = $region56
        $region55: #{tpu_custom_call.1} parent=11 // pred_region
          _
        $region56: #{tpu_custom_call.1} parent=11 // pred_fallthru
          _
        // Predicated region
        $region57: #{tpu_custom_call.1} parent=11 // pred_check
          %p426 = pneg %p300
        $region58: #{tpu_custom_call.1} parent=11 // pred_check_branch
          %428 = sbr.rel (%p426) target = $region60
        $region59: #{tpu_custom_call.1} parent=11 // pred_region
          _
        $region60: #{tpu_custom_call.1} parent=11 // pred_fallthru
          _
        // Predicated region
        $region61: #{tpu_custom_call.1} parent=11 // pred_check
          %p429 = pneg %p321
        $region62: #{tpu_custom_call.1} parent=11 // pred_check_branch
          %431 = sbr.rel (%p429) target = $region64
        $region63: #{tpu_custom_call.1} parent=11 // pred_region
          _
        $region64: #{tpu_custom_call.1} parent=11 // pred_fallthru
          _
        // Predicated region
        $region65: #{tpu_custom_call.1} parent=11 // pred_check
          %p432 = pneg %p342
        $region66: #{tpu_custom_call.1} parent=11 // pred_check_branch
          %434 = sbr.rel (%p432) target = $region68
        $region67: #{tpu_custom_call.1} parent=11 // pred_region
          _
        $region68: #{tpu_custom_call.1} parent=11 // pred_fallthru
          _
      $region12: #{tpu_custom_call.1} parent=5 // pred_fallthru
        _
      %p435 = scmp.lt.s32.totalorder %s22, 2
      // Predicated region
      $region69: #{tpu_custom_call.1} parent=5 // pred_check
        %p436 = pneg %p435
      $region70: #{tpu_custom_call.1} parent=5 // pred_check_branch
        %438 = sbr.rel (%p436) target = $region72
      $region71: #{tpu_custom_call.1} parent=5 // pred_region
        // Predicated region
        $region73: #{tpu_custom_call.1} parent=71 // pred_check
          %p439 = pneg %p42
        $region74: #{tpu_custom_call.1} parent=71 // pred_check_branch
          %441 = sbr.rel (%p439) target = $region76
        $region75: #{tpu_custom_call.1} parent=71 // pred_region
          %p442 = scmp.lt.s32.totalorder %s22, 1
          %s443 = scalar_select %p442, %s22, 1
          %s444 = smul.addr %s443, 16
          %s445 = smul.addr %s444, 8
          %s446 = scalar_lea.vmem %s0, %s445
        $region76: #{tpu_custom_call.1} parent=71 // pred_fallthru
          _
      $region72: #{tpu_custom_call.1} parent=5 // pred_fallthru
        _
      %p447 = scmp.le.s32.totalorder 1, %s22
      %p448 = scmp.lt.s32.totalorder %s22, 3
      %p449 = pnand %p447, %p448
      %p450 = pneg %p449
      // Predicated region
      $region77: #{tpu_custom_call.1} parent=5 // pred_check
        _
      $region78: #{tpu_custom_call.1} parent=5 // pred_check_branch
        %452 = sbr.rel (%p449) target = $region80
      $region79: #{tpu_custom_call.1} parent=5 // pred_region
        %s453 = ssub.s32 %s22, 1
        // Predicated region
        $region81: #{tpu_custom_call.1} parent=79 // pred_check
          %p454 = pneg %p90
        $region82: #{tpu_custom_call.1} parent=79 // pred_check_branch
          %456 = sbr.rel (%p454) target = $region84
        $region83: #{tpu_custom_call.1} parent=79 // pred_region
          %457 = dma.done [#allocation5], 2048
        $region84: #{tpu_custom_call.1} parent=79 // pred_fallthru
          _
        %p458 = scmp.lt.s32.totalorder %s27, 1
        %s459 = scalar_select %p458, %s27, 1
        %s460 = smul.addr %s459, 16
        %s461 = smul.addr %s460, 8
        %s462 = scalar_lea.vmem %s0, %s461
        %p463 = pneg %p48
        %p464 = pneg %p45
        %p465 = pneg %p69
        %p466 = pneg %p66
        %p467 = pneg %p90
        %p468 = pneg %p87
        %p469 = pneg %p111
        %p470 = pneg %p108
        %p471 = pneg %p132
        %p472 = pneg %p129
        %p473 = pneg %p153
        %p474 = pneg %p150
        %p475 = pneg %p174
        %p476 = pneg %p171
        %p477 = pneg %p195
        %p478 = pneg %p192
        %p479 = pneg %p216
        %p480 = pneg %p213
        %p481 = pneg %p237
        %p482 = pneg %p234
        %p483 = pneg %p258
        %p484 = pneg %p255
        %p485 = pneg %p279
        %p486 = pneg %p276
        %p487 = pneg %p300
        %p488 = pneg %p297
        %p489 = pneg %p321
        %p490 = pneg %p318
        %p491 = pneg %p342
        %p492 = pneg %p339
        %p493 = pneg %p368
        %p494 = pneg %p365
        %p495 = scmp.lt.s32.totalorder %s27, 1
        %s496 = scalar_select %p495, %s27, 1
        %s497 = smul.addr %s496, 2
        %s498 = smul.addr %s497, 8
        %s499 = scalar_lea.vmem %s15, %s498
        %p500 = scmp.lt.s32.totalorder %s27, 1
        %s501 = scalar_select %p500, %s27, 1
        %s502 = smul.addr %s501, 16
        %s503 = smul.addr %s502, 8
        %s504 = scalar_lea.vmem %s0, %s503
        %p505 = scmp.lt.s32.totalorder %s27, 1
        %s506 = scalar_select %p505, %s27, 1
        %s507 = smul.addr %s506, 2
        %s508 = smul.addr %s507, 8
        %s509 = scalar_lea.vmem %s15, %s508
        %v510 = vld [vmem:[%s11] sm:$0x1]
        %v511 = vld [vmem:[%s12] sm:$0x1]
        %v512 = vld [vmem:[%s504] sm:$0xff]
        %v513 = vld [vmem:[%s504 + $0x8] sm:$0xff]
        %v514 = vld [vmem:[%s504 + $0x10] sm:$0xff]
        %v515 = vld [vmem:[%s504 + $0x18] sm:$0xff]
        %v516 = vld [vmem:[%s504 + $0x20] sm:$0xff]
        %v517 = vld [vmem:[%s504 + $0x28] sm:$0xff]
        %v518 = vld [vmem:[%s504 + $0x30] sm:$0xff]
        %v519 = vld [vmem:[%s504 + $0x38] sm:$0xff]
        %v520 = vld [vmem:[%s504 + $0x40] sm:$0xff]
        %v521 = vld [vmem:[%s504 + $0x48] sm:$0xff]
        %v522 = vld [vmem:[%s504 + $0x50] sm:$0xff]
        %v523 = vld [vmem:[%s504 + $0x58] sm:$0xff]
        %v524 = vld [vmem:[%s504 + $0x60] sm:$0xff]
        %v525 = vld [vmem:[%s504 + $0x68] sm:$0xff]
        %v526 = vld [vmem:[%s504 + $0x70] sm:$0xff]
        %v527 = vld [vmem:[%s504 + $0x78] sm:$0xff]
        %v528 = vld [vmem:[%s3] sm:$0xf]
        %v529 = vld [vmem:[%s4] sm:$0x1]
        %v531 = vlaneseq
        %v532 = vshrl.u32 %v531, 7
        %v533 = vsub.s32 0, %v532
        %v534 = vrot.slane %v529, %v533
        %vm536 = vcmask 31744
        %v538 = vsel %vm536, %v512, 0
        %v541 = vsel %vm536, %v513, 0
        %v544 = vsel %vm536, %v514, 0
        %v547 = vsel %vm536, %v515, 0
        %v550 = vsel %vm536, %v516, 0
        %v553 = vsel %vm536, %v517, 0
        %v556 = vsel %vm536, %v518, 0
        %v559 = vsel %vm536, %v519, 0
        %v562 = vsel %vm536, %v520, 0
        %v565 = vsel %vm536, %v521, 0
        %v568 = vsel %vm536, %v522, 0
        %v571 = vsel %vm536, %v523, 0
        %v574 = vsel %vm536, %v524, 0
        %v577 = vsel %vm536, %v525, 0
        %v580 = vsel %vm536, %v526, 0
        %v583 = vsel %vm536, %v527, 0
        %vm585 = vcmask 1043456
        %v587 = vsel %vm585, %v528, 0
        %589 = vmatprep.subr.mxu0 0.0
        %590 = vmatpush1.msra.mxu0 0.0
        %591 = vmatprep.subr.mxu0 0.0
        %592 = vmatpush1.msra.mxu0 0.0
        %593 = vmatprep.subr.mxu0 0.0
        %594 = vmatpush1.msra.mxu0 0.0
        %595 = vmatprep.subr.mxu0 0.0
        %596 = vmatpush1.msra.mxu0 0.0
        %597 = vmatprep.subr.mxu0 0.0
        %598 = vmatpush1.msra.mxu0 0.0
        %599 = vmatprep.subr.mxu0 0.0
        %600 = vmatpush1.msra.mxu0 0.0
        %601 = vmatprep.subr.mxu0 0.0
        %602 = vmatpush1.msra.mxu0 0.0
        %603 = vmatprep.subr.mxu0 0.0
        %604 = vmatpush1.msra.mxu0 0.0
        %605 = vmatprep.subr.mxu0 0.0
        %606 = vmatpush1.msra.mxu0 0.0
        %607 = vmatprep.subr.mxu0 0.0
        %608 = vmatpush1.msra.mxu0 0.0
        %609 = vmatprep.subr.mxu0 0.0
        %610 = vmatpush1.msra.mxu0 0.0
        %611 = vmatprep.subr.mxu0 0.0
        %612 = vmatpush1.msra.mxu0 0.0
        %613 = vmatprep.subr.mxu0 0.0
        %614 = vmatpush1.msra.mxu0 0.0
        %615 = vmatprep.subr.mxu0 0.0
        %616 = vmatpush1.msra.mxu0 0.0
        %617 = vmatprep.subr.mxu0 0.0
        %618 = vmatpush1.msra.mxu0 0.0
        %619 = vmatprep.subr.mxu0 0.0
        %620 = vmatpush1.msra.mxu0 %v587
        %621 = vmatprep.subr.mxu0 0.0
        %622 = vmatpush2.msra.mxu0 0.0
        %623 = vmatprep.subr.mxu0 0.0
        %624 = vmatpush2.msra.mxu0 0.0
        %625 = vmatprep.subr.mxu0 0.0
        %626 = vmatpush2.msra.mxu0 0.0
        %627 = vmatprep.subr.mxu0 0.0
        %628 = vmatpush2.msra.mxu0 0.0
        %629 = vmatprep.subr.mxu0 0.0
        %630 = vmatpush2.msra.mxu0 0.0
        %631 = vmatprep.subr.mxu0 0.0
        %632 = vmatpush2.msra.mxu0 0.0
        %633 = vmatprep.subr.mxu0 0.0
        %634 = vmatpush2.msra.mxu0 0.0
        %635 = vmatprep.subr.mxu0 0.0
        %636 = vmatpush2.msra.mxu0 0.0
        %637 = vmatprep.subr.mxu0 0.0
        %638 = vmatpush2.msra.mxu0 0.0
        %639 = vmatprep.subr.mxu0 0.0
        %640 = vmatpush2.msra.mxu0 0.0
        %641 = vmatprep.subr.mxu0 0.0
        %642 = vmatpush2.msra.mxu0 0.0
        %643 = vmatprep.subr.mxu0 0.0
        %644 = vmatpush2.msra.mxu0 0.0
        %645 = vmatprep.subr.mxu0 0.0
        %646 = vmatpush2.msra.mxu0 0.0
        %647 = vmatprep.subr.mxu0 0.0
        %648 = vmatpush2.msra.mxu0 0.0
        %649 = vmatprep.subr.mxu0 0.0
        %650 = vmatpush2.msra.mxu0 0.0
        %651 = vmatprep.subr.mxu0 0.0
        %652 = vmatpush2.msra.mxu0 0.0
        %653 = vmatprep.mubr.f32.mxu0 0.0
        %654 = vmatmul.mubr.f32.gmra.mxu0 %v538
        %v655 = vpop.f32.mrf.mxu0
        %v656 = vadd.f32 %v534, %v655
        %v657 = vpop.f32.mrf.mxu0
        %658 = vmatprep.mubr.f32.mxu0 0.0
        %659 = vmatmul.mubr.f32.gmra.mxu0 %v541
        %v660 = vpop.f32.mrf.mxu0
        %v661 = vadd.f32 %v534, %v660
        %v662 = vpop.f32.mrf.mxu0
        %663 = vmatprep.mubr.f32.mxu0 0.0
        %664 = vmatmul.mubr.f32.gmra.mxu0 %v544
        %v665 = vpop.f32.mrf.mxu0
        %v666 = vadd.f32 %v534, %v665
        %v667 = vpop.f32.mrf.mxu0
        %668 = vmatprep.mubr.f32.mxu0 0.0
        %669 = vmatmul.mubr.f32.gmra.mxu0 %v547
        %v670 = vpop.f32.mrf.mxu0
        %v671 = vadd.f32 %v534, %v670
        %v672 = vpop.f32.mrf.mxu0
        %673 = vmatprep.mubr.f32.mxu0 0.0
        %674 = vmatmul.mubr.f32.gmra.mxu0 %v550
        %v675 = vpop.f32.mrf.mxu0
        %v676 = vadd.f32 %v534, %v675
        %v677 = vpop.f32.mrf.mxu0
        %678 = vmatprep.mubr.f32.mxu0 0.0
        %679 = vmatmul.mubr.f32.gmra.mxu0 %v553
        %v680 = vpop.f32.mrf.mxu0
        %v681 = vadd.f32 %v534, %v680
        %v682 = vpop.f32.mrf.mxu0
        %683 = vmatprep.mubr.f32.mxu0 0.0
        %684 = vmatmul.mubr.f32.gmra.mxu0 %v556
        %v685 = vpop.f32.mrf.mxu0
        %v686 = vadd.f32 %v534, %v685
        %v687 = vpop.f32.mrf.mxu0
        %688 = vmatprep.mubr.f32.mxu0 0.0
        %689 = vmatmul.mubr.f32.gmra.mxu0 %v559
        %v690 = vpop.f32.mrf.mxu0
        %v691 = vadd.f32 %v534, %v690
        %v692 = vpop.f32.mrf.mxu0
        %693 = vmatprep.mubr.f32.mxu0 0.0
        %694 = vmatmul.mubr.f32.gmra.mxu0 %v562
        %v695 = vpop.f32.mrf.mxu0
        %v696 = vadd.f32 %v534, %v695
        %v697 = vpop.f32.mrf.mxu0
        %698 = vmatprep.mubr.f32.mxu0 0.0
        %699 = vmatmul.mubr.f32.gmra.mxu0 %v565
        %v700 = vpop.f32.mrf.mxu0
        %v701 = vadd.f32 %v534, %v700
        %v702 = vpop.f32.mrf.mxu0
        %703 = vmatprep.mubr.f32.mxu0 0.0
        %704 = vmatmul.mubr.f32.gmra.mxu0 %v568
        %v705 = vpop.f32.mrf.mxu0
        %v706 = vadd.f32 %v534, %v705
        %v707 = vpop.f32.mrf.mxu0
        %708 = vmatprep.mubr.f32.mxu0 0.0
        %709 = vmatmul.mubr.f32.gmra.mxu0 %v571
        %v710 = vpop.f32.mrf.mxu0
        %v711 = vadd.f32 %v534, %v710
        %v712 = vpop.f32.mrf.mxu0
        %713 = vmatprep.mubr.f32.mxu0 0.0
        %714 = vmatmul.mubr.f32.gmra.mxu0 %v574
        %v715 = vpop.f32.mrf.mxu0
        %v716 = vadd.f32 %v534, %v715
        %v717 = vpop.f32.mrf.mxu0
        %718 = vmatprep.mubr.f32.mxu0 0.0
        %719 = vmatmul.mubr.f32.gmra.mxu0 %v577
        %v720 = vpop.f32.mrf.mxu0
        %v721 = vadd.f32 %v534, %v720
        %v722 = vpop.f32.mrf.mxu0
        %723 = vmatprep.mubr.f32.mxu0 0.0
        %724 = vmatmul.mubr.f32.gmra.mxu0 %v580
        %v725 = vpop.f32.mrf.mxu0
        %v726 = vadd.f32 %v534, %v725
        %v727 = vpop.f32.mrf.mxu0
        %728 = vmatprep.mubr.f32.mxu0 0.0
        %729 = vmatmul.mubr.f32.gmra.mxu0 %v583
        %v730 = vpop.f32.mrf.mxu0
        %v731 = vadd.f32 %v534, %v730
        %v732 = vpop.f32.mrf.mxu0
        %733 = vdwg.mxu0
        %vm734 = vcmask 261120
        %735 = vst.msk [vmem:[#allocation2] sm:$0xff] %vm734, %v656
        %736 = vst.msk [vmem:[#allocation2 + $0x8] sm:$0xff] %vm734, %v661
        %737 = vst.msk [vmem:[#allocation2 + $0x10] sm:$0xff] %vm734, %v666
        %738 = vst.msk [vmem:[#allocation2 + $0x18] sm:$0xff] %vm734, %v671
        %739 = vst.msk [vmem:[#allocation2 + $0x20] sm:$0xff] %vm734, %v676
        %740 = vst.msk [vmem:[#allocation2 + $0x28] sm:$0xff] %vm734, %v681
        %741 = vst.msk [vmem:[#allocation2 + $0x30] sm:$0xff] %vm734, %v686
        %742 = vst.msk [vmem:[#allocation2 + $0x38] sm:$0xff] %vm734, %v691
        %743 = vst.msk [vmem:[#allocation2 + $0x40] sm:$0xff] %vm734, %v696
        %744 = vst.msk [vmem:[#allocation2 + $0x48] sm:$0xff] %vm734, %v701
        %745 = vst.msk [vmem:[#allocation2 + $0x50] sm:$0xff] %vm734, %v706
        %746 = vst.msk [vmem:[#allocation2 + $0x58] sm:$0xff] %vm734, %v711
        %747 = vst.msk [vmem:[#allocation2 + $0x60] sm:$0xff] %vm734, %v716
        %748 = vst.msk [vmem:[#allocation2 + $0x68] sm:$0xff] %vm734, %v721
        %749 = vst.msk [vmem:[#allocation2 + $0x70] sm:$0xff] %vm734, %v726
        %750 = vst.msk [vmem:[#allocation2 + $0x78] sm:$0xff] %vm734, %v731
        %v751 = vld [vmem:[%s5] sm:$0xff]
        %v752 = vld [vmem:[%s5 + $0x8] sm:$0xff]
        %v753 = vld [vmem:[%s5 + $0x10] sm:$0xff]
        %v754 = vld [vmem:[%s5 + $0x18] sm:$0xff]
        %v755 = vld [vmem:[%s6] sm:$0x1]
        %v756 = vld [vmem:[%s7] sm:$0xff]
        %v757 = vld [vmem:[%s7 + $0x8] sm:$0xff]
        %v758 = vld [vmem:[%s7 + $0x10] sm:$0xff]
        %v759 = vld [vmem:[%s7 + $0x18] sm:$0xff]
        %s760 = scalar_lea.vmem %s7, 32
        %v761 = vld [vmem:[%s760] sm:$0xff]
        %v762 = vld [vmem:[%s760 + $0x8] sm:$0xff]
        %v763 = vld [vmem:[%s760 + $0x10] sm:$0xff]
        %v764 = vld [vmem:[%s760 + $0x18] sm:$0xff]
        %s765 = scalar_lea.vmem %s7, 64
        %v766 = vld [vmem:[%s765] sm:$0xff]
        %v767 = vld [vmem:[%s765 + $0x8] sm:$0xff]
        %v768 = vld [vmem:[%s765 + $0x10] sm:$0xff]
        %v769 = vld [vmem:[%s765 + $0x18] sm:$0xff]
        %v770 = vld [vmem:[%s8] sm:$0x1]
        %v771 = vld [vmem:[%s9] sm:$0x1]
        %v772 = vld [vmem:[%s10] sm:$0x1]
        %v773 = vld [vmem:[#allocation2] sm:$0xff]
        %v774 = vld [vmem:[#allocation2 + $0x8] sm:$0xff]
        %v775 = vld [vmem:[#allocation2 + $0x10] sm:$0xff]
        %v776 = vld [vmem:[#allocation2 + $0x18] sm:$0xff]
        %v777 = vld [vmem:[#allocation2 + $0x20] sm:$0xff]
        %v778 = vld [vmem:[#allocation2 + $0x28] sm:$0xff]
        %v779 = vld [vmem:[#allocation2 + $0x30] sm:$0xff]
        %v780 = vld [vmem:[#allocation2 + $0x38] sm:$0xff]
        %v781 = vld [vmem:[#allocation2 + $0x40] sm:$0xff]
        %v782 = vld [vmem:[#allocation2 + $0x48] sm:$0xff]
        %v783 = vld [vmem:[#allocation2 + $0x50] sm:$0xff]
        %v784 = vld [vmem:[#allocation2 + $0x58] sm:$0xff]
        %v785 = vld [vmem:[#allocation2 + $0x60] sm:$0xff]
        %v786 = vld [vmem:[#allocation2 + $0x68] sm:$0xff]
        %v787 = vld [vmem:[#allocation2 + $0x70] sm:$0xff]
        %v788 = vld [vmem:[#allocation2 + $0x78] sm:$0xff]
        %v790 = vsel %vm734, %v773, 0
        %v793 = vsel %vm734, %v774, 0
        %v796 = vsel %vm734, %v775, 0
        %v799 = vsel %vm734, %v776, 0
        %v802 = vsel %vm734, %v777, 0
        %v805 = vsel %vm734, %v778, 0
        %v808 = vsel %vm734, %v779, 0
        %v811 = vsel %vm734, %v780, 0
        %v814 = vsel %vm734, %v781, 0
        %v817 = vsel %vm734, %v782, 0
        %v820 = vsel %vm734, %v783, 0
        %v823 = vsel %vm734, %v784, 0
        %v826 = vsel %vm734, %v785, 0
        %v829 = vsel %vm734, %v786, 0
        %v832 = vsel %vm734, %v787, 0
        %v835 = vsel %vm734, %v788, 0
        %837 = vmatprep.subr.mxu0 0.0
        %838 = vmatpush1.msra.mxu0 0.0
        %839 = vmatprep.subr.mxu0 0.0
        %840 = vmatpush1.msra.mxu0 0.0
        %841 = vmatprep.subr.mxu0 0.0
        %842 = vmatpush1.msra.mxu0 0.0
        %843 = vmatprep.subr.mxu0 0.0
        %844 = vmatpush1.msra.mxu0 0.0
        %845 = vmatprep.subr.mxu0 0.0
        %846 = vmatpush1.msra.mxu0 0.0
        %847 = vmatprep.subr.mxu0 0.0
        %848 = vmatpush1.msra.mxu0 0.0
        %849 = vmatprep.subr.mxu0 0.0
        %850 = vmatpush1.msra.mxu0 0.0
        %851 = vmatprep.subr.mxu0 0.0
        %852 = vmatpush1.msra.mxu0 0.0
        %853 = vmatprep.subr.mxu0 0.0
        %854 = vmatpush1.msra.mxu0 0.0
        %855 = vmatprep.subr.mxu0 0.0
        %856 = vmatpush1.msra.mxu0 0.0
        %857 = vmatprep.subr.mxu0 0.0
        %858 = vmatpush1.msra.mxu0 0.0
        %859 = vmatprep.subr.mxu0 0.0
        %860 = vmatpush1.msra.mxu0 0.0
        %861 = vmatprep.subr.mxu0 0.0
        %862 = vmatpush1.msra.mxu0 %v754
        %863 = vmatprep.subr.mxu0 0.0
        %864 = vmatpush1.msra.mxu0 %v753
        %865 = vmatprep.subr.mxu0 0.0
        %866 = vmatpush1.msra.mxu0 %v752
        %867 = vmatprep.subr.mxu0 0.0
        %868 = vmatpush1.msra.mxu0 %v751
        %869 = vmatprep.subr.mxu0 0.0
        %870 = vmatpush2.msra.mxu0 0.0
        %871 = vmatprep.subr.mxu0 0.0
        %872 = vmatpush2.msra.mxu0 0.0
        %873 = vmatprep.subr.mxu0 0.0
        %874 = vmatpush2.msra.mxu0 0.0
        %875 = vmatprep.subr.mxu0 0.0
        %876 = vmatpush2.msra.mxu0 0.0
        %877 = vmatprep.subr.mxu0 0.0
        %878 = vmatpush2.msra.mxu0 0.0
        %879 = vmatprep.subr.mxu0 0.0
        %880 = vmatpush2.msra.mxu0 0.0
        %881 = vmatprep.subr.mxu0 0.0
        %882 = vmatpush2.msra.mxu0 0.0
        %883 = vmatprep.subr.mxu0 0.0
        %884 = vmatpush2.msra.mxu0 0.0
        %885 = vmatprep.subr.mxu0 0.0
        %886 = vmatpush2.msra.mxu0 0.0
        %887 = vmatprep.subr.mxu0 0.0
        %888 = vmatpush2.msra.mxu0 0.0
        %889 = vmatprep.subr.mxu0 0.0
        %890 = vmatpush2.msra.mxu0 0.0
        %891 = vmatprep.subr.mxu0 0.0
        %892 = vmatpush2.msra.mxu0 0.0
        %893 = vmatprep.subr.mxu0 0.0
        %894 = vmatpush2.msra.mxu0 0.0
        %895 = vmatprep.subr.mxu0 0.0
        %896 = vmatpush2.msra.mxu0 0.0
        %897 = vmatprep.subr.mxu0 0.0
        %898 = vmatpush2.msra.mxu0 0.0
        %899 = vmatprep.subr.mxu0 0.0
        %900 = vmatpush2.msra.mxu0 0.0
        %901 = vmatprep.mubr.f32.mxu0 0.0
        %902 = vmatmul.mubr.f32.gmra.mxu0 %v790
        %v903 = vpop.f32.mrf.mxu0
        %v904 = vadd.f32 0.0, %v903
        %v905 = vpop.f32.mrf.mxu0
        %906 = vmatprep.mubr.f32.mxu0 0.0
        %907 = vmatmul.mubr.f32.gmra.mxu0 %v793
        %v908 = vpop.f32.mrf.mxu0
        %v909 = vadd.f32 0.0, %v908
        %v910 = vpop.f32.mrf.mxu0
        %911 = vmatprep.mubr.f32.mxu0 0.0
        %912 = vmatmul.mubr.f32.gmra.mxu0 %v796
        %v913 = vpop.f32.mrf.mxu0
        %v914 = vadd.f32 0.0, %v913
        %v915 = vpop.f32.mrf.mxu0
        %916 = vmatprep.mubr.f32.mxu0 0.0
        %917 = vmatmul.mubr.f32.gmra.mxu0 %v799
        %v918 = vpop.f32.mrf.mxu0
        %v919 = vadd.f32 0.0, %v918
        %v920 = vpop.f32.mrf.mxu0
        %921 = vmatprep.mubr.f32.mxu0 0.0
        %922 = vmatmul.mubr.f32.gmra.mxu0 %v802
        %v923 = vpop.f32.mrf.mxu0
        %v924 = vadd.f32 0.0, %v923
        %v925 = vpop.f32.mrf.mxu0
        %926 = vmatprep.mubr.f32.mxu0 0.0
        %927 = vmatmul.mubr.f32.gmra.mxu0 %v805
        %v928 = vpop.f32.mrf.mxu0
        %v929 = vadd.f32 0.0, %v928
        %v930 = vpop.f32.mrf.mxu0
        %931 = vmatprep.mubr.f32.mxu0 0.0
        %932 = vmatmul.mubr.f32.gmra.mxu0 %v808
        %v933 = vpop.f32.mrf.mxu0
        %v934 = vadd.f32 0.0, %v933
        %v935 = vpop.f32.mrf.mxu0
        %936 = vmatprep.mubr.f32.mxu0 0.0
        %937 = vmatmul.mubr.f32.gmra.mxu0 %v811
        %v938 = vpop.f32.mrf.mxu0
        %v939 = vadd.f32 0.0, %v938
        %v940 = vpop.f32.mrf.mxu0
        %941 = vmatprep.mubr.f32.mxu0 0.0
        %942 = vmatmul.mubr.f32.gmra.mxu0 %v814
        %v943 = vpop.f32.mrf.mxu0
        %v944 = vadd.f32 0.0, %v943
        %v945 = vpop.f32.mrf.mxu0
        %946 = vmatprep.mubr.f32.mxu0 0.0
        %947 = vmatmul.mubr.f32.gmra.mxu0 %v817
        %v948 = vpop.f32.mrf.mxu0
        %v949 = vadd.f32 0.0, %v948
        %v950 = vpop.f32.mrf.mxu0
        %951 = vmatprep.mubr.f32.mxu0 0.0
        %952 = vmatmul.mubr.f32.gmra.mxu0 %v820
        %v953 = vpop.f32.mrf.mxu0
        %v954 = vadd.f32 0.0, %v953
        %v955 = vpop.f32.mrf.mxu0
        %956 = vmatprep.mubr.f32.mxu0 0.0
        %957 = vmatmul.mubr.f32.gmra.mxu0 %v823
        %v958 = vpop.f32.mrf.mxu0
        %v959 = vadd.f32 0.0, %v958
        %v960 = vpop.f32.mrf.mxu0
        %961 = vmatprep.mubr.f32.mxu0 0.0
        %962 = vmatmul.mubr.f32.gmra.mxu0 %v826
        %v963 = vpop.f32.mrf.mxu0
        %v964 = vadd.f32 0.0, %v963
        %v965 = vpop.f32.mrf.mxu0
        %966 = vmatprep.mubr.f32.mxu0 0.0
        %967 = vmatmul.mubr.f32.gmra.mxu0 %v829
        %v968 = vpop.f32.mrf.mxu0
        %v969 = vadd.f32 0.0, %v968
        %v970 = vpop.f32.mrf.mxu0
        %971 = vmatprep.mubr.f32.mxu0 0.0
        %972 = vmatmul.mubr.f32.gmra.mxu0 %v832
        %v973 = vpop.f32.mrf.mxu0
        %v974 = vadd.f32 0.0, %v973
        %v975 = vpop.f32.mrf.mxu0
        %976 = vmatprep.mubr.f32.mxu0 0.0
        %977 = vmatmul.mubr.f32.gmra.mxu0 %v835
        %v978 = vpop.f32.mrf.mxu0
        %v979 = vadd.f32 0.0, %v978
        %v980 = vpop.f32.mrf.mxu0
        %981 = vdwg.mxu0
        %v982 = vld [vmem:[#allocation4] sm:$0xff]
        %v983 = vld [vmem:[#allocation4 + $0x8] sm:$0xff]
        %v984 = vld [vmem:[#allocation4 + $0x10] sm:$0xff]
        %v985 = vld [vmem:[#allocation4 + $0x18] sm:$0xff]
        %v986 = vld [vmem:[#allocation4 + $0x20] sm:$0xff]
        %v987 = vld [vmem:[#allocation4 + $0x28] sm:$0xff]
        %v988 = vld [vmem:[#allocation4 + $0x30] sm:$0xff]
        %v989 = vld [vmem:[#allocation4 + $0x38] sm:$0xff]
        %v990 = vld [vmem:[#allocation4 + $0x40] sm:$0xff]
        %v991 = vld [vmem:[#allocation4 + $0x48] sm:$0xff]
        %v992 = vld [vmem:[#allocation4 + $0x50] sm:$0xff]
        %v993 = vld [vmem:[#allocation4 + $0x58] sm:$0xff]
        %v994 = vld [vmem:[#allocation4 + $0x60] sm:$0xff]
        %v995 = vld [vmem:[#allocation4 + $0x68] sm:$0xff]
        %v996 = vld [vmem:[#allocation4 + $0x70] sm:$0xff]
        %v997 = vld [vmem:[#allocation4 + $0x78] sm:$0xff]
        %v999 = vlaneseq
        %v1000 = vshrl.u32 %v999, 7
        %v1001 = vsub.s32 0, %v1000
        %v1002 = vrot.slane %v755, %v1001
        %1004 = vmatprep.subr.mxu0 0.0
        %1005 = vmatpush1.msra.mxu0 %v979
        %1006 = vmatprep.subr.mxu0 0.0
        %1007 = vmatpush1.msra.mxu0 %v974
        %1008 = vmatprep.subr.mxu0 0.0
        %1009 = vmatpush1.msra.mxu0 %v969
        %1010 = vmatprep.subr.mxu0 0.0
        %1011 = vmatpush1.msra.mxu0 %v964
        %1012 = vmatprep.subr.mxu0 0.0
        %1013 = vmatpush1.msra.mxu0 %v959
        %1014 = vmatprep.subr.mxu0 0.0
        %1015 = vmatpush1.msra.mxu0 %v954
        %1016 = vmatprep.subr.mxu0 0.0
        %1017 = vmatpush1.msra.mxu0 %v949
        %1018 = vmatprep.subr.mxu0 0.0
        %1019 = vmatpush1.msra.mxu0 %v944
        %1020 = vmatprep.subr.mxu0 0.0
        %1021 = vmatpush1.msra.mxu0 %v939
        %1022 = vmatprep.subr.mxu0 0.0
        %1023 = vmatpush1.msra.mxu0 %v934
        %1024 = vmatprep.subr.mxu0 0.0
        %1025 = vmatpush1.msra.mxu0 %v929
        %1026 = vmatprep.subr.mxu0 0.0
        %1027 = vmatpush1.msra.mxu0 %v924
        %1028 = vmatprep.subr.mxu0 0.0
        %1029 = vmatpush1.msra.mxu0 %v919
        %1030 = vmatprep.subr.mxu0 0.0
        %1031 = vmatpush1.msra.mxu0 %v914
        %1032 = vmatprep.subr.mxu0 0.0
        %1033 = vmatpush1.msra.mxu0 %v909
        %1034 = vmatprep.subr.mxu0 0.0
        %1035 = vmatpush1.msra.mxu0 %v904
        %1036 = vmatprep.subr.mxu0 0.0
        %1037 = vmatpush2.msra.mxu0 0.0
        %1038 = vmatprep.subr.mxu0 0.0
        %1039 = vmatpush2.msra.mxu0 0.0
        %1040 = vmatprep.subr.mxu0 0.0
        %1041 = vmatpush2.msra.mxu0 0.0
        %1042 = vmatprep.subr.mxu0 0.0
        %1043 = vmatpush2.msra.mxu0 0.0
        %1044 = vmatprep.subr.mxu0 0.0
        %1045 = vmatpush2.msra.mxu0 0.0
        %1046 = vmatprep.subr.mxu0 0.0
        %1047 = vmatpush2.msra.mxu0 0.0
        %1048 = vmatprep.subr.mxu0 0.0
        %1049 = vmatpush2.msra.mxu0 0.0
        %1050 = vmatprep.subr.mxu0 0.0
        %1051 = vmatpush2.msra.mxu0 0.0
        %1052 = vmatprep.subr.mxu0 0.0
        %1053 = vmatpush2.msra.mxu0 0.0
        %1054 = vmatprep.subr.mxu0 0.0
        %1055 = vmatpush2.msra.mxu0 0.0
        %1056 = vmatprep.subr.mxu0 0.0
        %1057 = vmatpush2.msra.mxu0 0.0
        %1058 = vmatprep.subr.mxu0 0.0
        %1059 = vmatpush2.msra.mxu0 0.0
        %1060 = vmatprep.subr.mxu0 0.0
        %1061 = vmatpush2.msra.mxu0 0.0
        %1062 = vmatprep.subr.mxu0 0.0
        %1063 = vmatpush2.msra.mxu0 0.0
        %1064 = vmatprep.subr.mxu0 0.0
        %1065 = vmatpush2.msra.mxu0 0.0
        %1066 = vmatprep.subr.mxu0 0.0
        %1067 = vmatpush2.msra.mxu0 0.0
        %1068 = vmatprep.mubr.f32.mxu0 0.0
        %1069 = vmatmul.mubr.f32.gmra.mxu0 %v982
        %v1070 = vpop.f32.mrf.mxu0
        %v1071 = vadd.f32 %v1002, %v1070
        %v1072 = vpop.f32.mrf.mxu0
        %1073 = vmatprep.mubr.f32.mxu0 0.0
        %1074 = vmatmul.mubr.f32.gmra.mxu0 %v983
        %v1075 = vpop.f32.mrf.mxu0
        %v1076 = vadd.f32 %v1002, %v1075
        %v1077 = vpop.f32.mrf.mxu0
        %1078 = vmatprep.mubr.f32.mxu0 0.0
        %1079 = vmatmul.mubr.f32.gmra.mxu0 %v984
        %v1080 = vpop.f32.mrf.mxu0
        %v1081 = vadd.f32 %v1002, %v1080
        %v1082 = vpop.f32.mrf.mxu0
        %1083 = vmatprep.mubr.f32.mxu0 0.0
        %1084 = vmatmul.mubr.f32.gmra.mxu0 %v985
        %v1085 = vpop.f32.mrf.mxu0
        %v1086 = vadd.f32 %v1002, %v1085
        %v1087 = vpop.f32.mrf.mxu0
        %1088 = vmatprep.mubr.f32.mxu0 0.0
        %1089 = vmatmul.mubr.f32.gmra.mxu0 %v986
        %v1090 = vpop.f32.mrf.mxu0
        %v1091 = vadd.f32 %v1002, %v1090
        %v1092 = vpop.f32.mrf.mxu0
        %1093 = vmatprep.mubr.f32.mxu0 0.0
        %1094 = vmatmul.mubr.f32.gmra.mxu0 %v987
        %v1095 = vpop.f32.mrf.mxu0
        %v1096 = vadd.f32 %v1002, %v1095
        %v1097 = vpop.f32.mrf.mxu0
        %1098 = vmatprep.mubr.f32.mxu0 0.0
        %1099 = vmatmul.mubr.f32.gmra.mxu0 %v988
        %v1100 = vpop.f32.mrf.mxu0
        %v1101 = vadd.f32 %v1002, %v1100
        %v1102 = vpop.f32.mrf.mxu0
        %1103 = vmatprep.mubr.f32.mxu0 0.0
        %1104 = vmatmul.mubr.f32.gmra.mxu0 %v989
        %v1105 = vpop.f32.mrf.mxu0
        %v1106 = vadd.f32 %v1002, %v1105
        %v1107 = vpop.f32.mrf.mxu0
        %1108 = vmatprep.mubr.f32.mxu0 0.0
        %1109 = vmatmul.mubr.f32.gmra.mxu0 %v990
        %v1110 = vpop.f32.mrf.mxu0
        %v1111 = vadd.f32 %v1002, %v1110
        %v1112 = vpop.f32.mrf.mxu0
        %1113 = vmatprep.mubr.f32.mxu0 0.0
        %1114 = vmatmul.mubr.f32.gmra.mxu0 %v991
        %v1115 = vpop.f32.mrf.mxu0
        %v1116 = vadd.f32 %v1002, %v1115
        %v1117 = vpop.f32.mrf.mxu0
        %1118 = vmatprep.mubr.f32.mxu0 0.0
        %1119 = vmatmul.mubr.f32.gmra.mxu0 %v992
        %v1120 = vpop.f32.mrf.mxu0
        %v1121 = vadd.f32 %v1002, %v1120
        %v1122 = vpop.f32.mrf.mxu0
        %1123 = vmatprep.mubr.f32.mxu0 0.0
        %1124 = vmatmul.mubr.f32.gmra.mxu0 %v993
        %v1125 = vpop.f32.mrf.mxu0
        %v1126 = vadd.f32 %v1002, %v1125
        %v1127 = vpop.f32.mrf.mxu0
        %1128 = vmatprep.mubr.f32.mxu0 0.0
        %1129 = vmatmul.mubr.f32.gmra.mxu0 %v994
        %v1130 = vpop.f32.mrf.mxu0
        %v1131 = vadd.f32 %v1002, %v1130
        %v1132 = vpop.f32.mrf.mxu0
        %1133 = vmatprep.mubr.f32.mxu0 0.0
        %1134 = vmatmul.mubr.f32.gmra.mxu0 %v995
        %v1135 = vpop.f32.mrf.mxu0
        %v1136 = vadd.f32 %v1002, %v1135
        %v1137 = vpop.f32.mrf.mxu0
        %1138 = vmatprep.mubr.f32.mxu0 0.0
        %1139 = vmatmul.mubr.f32.gmra.mxu0 %v996
        %v1140 = vpop.f32.mrf.mxu0
        %v1141 = vadd.f32 %v1002, %v1140
        %v1142 = vpop.f32.mrf.mxu0
        %1143 = vmatprep.mubr.f32.mxu0 0.0
        %1144 = vmatmul.mubr.f32.gmra.mxu0 %v997
        %v1145 = vpop.f32.mrf.mxu0
        %v1146 = vadd.f32 %v1002, %v1145
        %v1147 = vpop.f32.mrf.mxu0
        %1148 = vdwg.mxu0
        %v1150 = vlaneseq
        %v1151 = vshrl.u32 %v1150, 7
        %v1152 = vsub.s32 0, %v1151
        %v1153 = vrot.slane %v770, %v1152
        %v1156 = vsel %vm734, %v1071, 0
        %v1159 = vsel %vm734, %v1076, 0
        %v1162 = vsel %vm734, %v1081, 0
        %v1165 = vsel %vm734, %v1086, 0
        %v1168 = vsel %vm734, %v1091, 0
        %v1171 = vsel %vm734, %v1096, 0
        %v1174 = vsel %vm734, %v1101, 0
        %v1177 = vsel %vm734, %v1106, 0
        %v1180 = vsel %vm734, %v1111, 0
        %v1183 = vsel %vm734, %v1116, 0
        %v1186 = vsel %vm734, %v1121, 0
        %v1189 = vsel %vm734, %v1126, 0
        %v1192 = vsel %vm734, %v1131, 0
        %v1195 = vsel %vm734, %v1136, 0
        %v1198 = vsel %vm734, %v1141, 0
        %v1201 = vsel %vm734, %v1146, 0
        %1203 = vmatprep.subr.mxu0 0.0
        %1204 = vmatpush1.msra.mxu0 0.0
        %1205 = vmatprep.subr.mxu0 0.0
        %1206 = vmatpush1.msra.mxu0 0.0
        %1207 = vmatprep.subr.mxu0 0.0
        %1208 = vmatpush1.msra.mxu0 0.0
        %1209 = vmatprep.subr.mxu0 0.0
        %1210 = vmatpush1.msra.mxu0 0.0
        %1211 = vmatprep.subr.mxu0 0.0
        %1212 = vmatpush1.msra.mxu0 0.0
        %1213 = vmatprep.subr.mxu0 0.0
        %1214 = vmatpush1.msra.mxu0 0.0
        %1215 = vmatprep.subr.mxu0 0.0
        %1216 = vmatpush1.msra.mxu0 0.0
        %1217 = vmatprep.subr.mxu0 0.0
        %1218 = vmatpush1.msra.mxu0 0.0
        %1219 = vmatprep.subr.mxu0 0.0
        %1220 = vmatpush1.msra.mxu0 0.0
        %1221 = vmatprep.subr.mxu0 0.0
        %1222 = vmatpush1.msra.mxu0 0.0
        %1223 = vmatprep.subr.mxu0 0.0
        %1224 = vmatpush1.msra.mxu0 0.0
        %1225 = vmatprep.subr.mxu0 0.0
        %1226 = vmatpush1.msra.mxu0 0.0
        %1227 = vmatprep.subr.mxu0 0.0
        %1228 = vmatpush1.msra.mxu0 %v764
        %1229 = vmatprep.subr.mxu0 0.0
        %1230 = vmatpush1.msra.mxu0 %v763
        %1231 = vmatprep.subr.mxu0 0.0
        %1232 = vmatpush1.msra.mxu0 %v762
        %1233 = vmatprep.subr.mxu0 0.0
        %1234 = vmatpush1.msra.mxu0 %v761
        %1235 = vmatprep.subr.mxu0 0.0
        %1236 = vmatpush2.msra.mxu0 0.0
        %1237 = vmatprep.subr.mxu0 0.0
        %1238 = vmatpush2.msra.mxu0 0.0
        %1239 = vmatprep.subr.mxu0 0.0
        %1240 = vmatpush2.msra.mxu0 0.0
        %1241 = vmatprep.subr.mxu0 0.0
        %1242 = vmatpush2.msra.mxu0 0.0
        %1243 = vmatprep.subr.mxu0 0.0
        %1244 = vmatpush2.msra.mxu0 0.0
        %1245 = vmatprep.subr.mxu0 0.0
        %1246 = vmatpush2.msra.mxu0 0.0
        %1247 = vmatprep.subr.mxu0 0.0
        %1248 = vmatpush2.msra.mxu0 0.0
        %1249 = vmatprep.subr.mxu0 0.0
        %1250 = vmatpush2.msra.mxu0 0.0
        %1251 = vmatprep.subr.mxu0 0.0
        %1252 = vmatpush2.msra.mxu0 0.0
        %1253 = vmatprep.subr.mxu0 0.0
        %1254 = vmatpush2.msra.mxu0 0.0
        %1255 = vmatprep.subr.mxu0 0.0
        %1256 = vmatpush2.msra.mxu0 0.0
        %1257 = vmatprep.subr.mxu0 0.0
        %1258 = vmatpush2.msra.mxu0 0.0
        %1259 = vmatprep.subr.mxu0 0.0
        %1260 = vmatpush2.msra.mxu0 0.0
        %1261 = vmatprep.subr.mxu0 0.0
        %1262 = vmatpush2.msra.mxu0 0.0
        %1263 = vmatprep.subr.mxu0 0.0
        %1264 = vmatpush2.msra.mxu0 0.0
        %1265 = vmatprep.subr.mxu0 0.0
        %1266 = vmatpush2.msra.mxu0 0.0
        %1267 = vmatprep.mubr.f32.mxu0 0.0
        %1268 = vmatmul.mubr.f32.gmra.mxu0 %v1156
        %v1269 = vpop.f32.mrf.mxu0
        %v1270 = vadd.f32 %v1153, %v1269
        %v1271 = vpop.f32.mrf.mxu0
        %1272 = vmatprep.mubr.f32.mxu0 0.0
        %1273 = vmatmul.mubr.f32.gmra.mxu0 %v1159
        %v1274 = vpop.f32.mrf.mxu0
        %v1275 = vadd.f32 %v1153, %v1274
        %v1276 = vpop.f32.mrf.mxu0
        %1277 = vmatprep.mubr.f32.mxu0 0.0
        %1278 = vmatmul.mubr.f32.gmra.mxu0 %v1162
        %v1279 = vpop.f32.mrf.mxu0
        %v1280 = vadd.f32 %v1153, %v1279
        %v1281 = vpop.f32.mrf.mxu0
        %1282 = vmatprep.mubr.f32.mxu0 0.0
        %1283 = vmatmul.mubr.f32.gmra.mxu0 %v1165
        %v1284 = vpop.f32.mrf.mxu0
        %v1285 = vadd.f32 %v1153, %v1284
        %v1286 = vpop.f32.mrf.mxu0
        %1287 = vmatprep.mubr.f32.mxu0 0.0
        %1288 = vmatmul.mubr.f32.gmra.mxu0 %v1168
        %v1289 = vpop.f32.mrf.mxu0
        %v1290 = vadd.f32 %v1153, %v1289
        %v1291 = vpop.f32.mrf.mxu0
        %1292 = vmatprep.mubr.f32.mxu0 0.0
        %1293 = vmatmul.mubr.f32.gmra.mxu0 %v1171
        %v1294 = vpop.f32.mrf.mxu0
        %v1295 = vadd.f32 %v1153, %v1294
        %v1296 = vpop.f32.mrf.mxu0
        %1297 = vmatprep.mubr.f32.mxu0 0.0
        %1298 = vmatmul.mubr.f32.gmra.mxu0 %v1174
        %v1299 = vpop.f32.mrf.mxu0
        %v1300 = vadd.f32 %v1153, %v1299
        %v1301 = vpop.f32.mrf.mxu0
        %1302 = vmatprep.mubr.f32.mxu0 0.0
        %1303 = vmatmul.mubr.f32.gmra.mxu0 %v1177
        %v1304 = vpop.f32.mrf.mxu0
        %v1305 = vadd.f32 %v1153, %v1304
        %v1306 = vpop.f32.mrf.mxu0
        %1307 = vmatprep.mubr.f32.mxu0 0.0
        %1308 = vmatmul.mubr.f32.gmra.mxu0 %v1180
        %v1309 = vpop.f32.mrf.mxu0
        %v1310 = vadd.f32 %v1153, %v1309
        %v1311 = vpop.f32.mrf.mxu0
        %1312 = vmatprep.mubr.f32.mxu0 0.0
        %1313 = vmatmul.mubr.f32.gmra.mxu0 %v1183
        %v1314 = vpop.f32.mrf.mxu0
        %v1315 = vadd.f32 %v1153, %v1314
        %v1316 = vpop.f32.mrf.mxu0
        %1317 = vmatprep.mubr.f32.mxu0 0.0
        %1318 = vmatmul.mubr.f32.gmra.mxu0 %v1186
        %v1319 = vpop.f32.mrf.mxu0
        %v1320 = vadd.f32 %v1153, %v1319
        %v1321 = vpop.f32.mrf.mxu0
        %1322 = vmatprep.mubr.f32.mxu0 0.0
        %1323 = vmatmul.mubr.f32.gmra.mxu0 %v1189
        %v1324 = vpop.f32.mrf.mxu0
        %v1325 = vadd.f32 %v1153, %v1324
        %v1326 = vpop.f32.mrf.mxu0
        %1327 = vmatprep.mubr.f32.mxu0 0.0
        %1328 = vmatmul.mubr.f32.gmra.mxu0 %v1192
        %v1329 = vpop.f32.mrf.mxu0
        %v1330 = vadd.f32 %v1153, %v1329
        %v1331 = vpop.f32.mrf.mxu0
        %1332 = vmatprep.mubr.f32.mxu0 0.0
        %1333 = vmatmul.mubr.f32.gmra.mxu0 %v1195
        %v1334 = vpop.f32.mrf.mxu0
        %v1335 = vadd.f32 %v1153, %v1334
        %v1336 = vpop.f32.mrf.mxu0
        %1337 = vmatprep.mubr.f32.mxu0 0.0
        %1338 = vmatmul.mubr.f32.gmra.mxu0 %v1198
        %v1339 = vpop.f32.mrf.mxu0
        %v1340 = vadd.f32 %v1153, %v1339
        %v1341 = vpop.f32.mrf.mxu0
        %1342 = vmatprep.mubr.f32.mxu0 0.0
        %1343 = vmatmul.mubr.f32.gmra.mxu0 %v1201
        %v1344 = vpop.f32.mrf.mxu0
        %v1345 = vadd.f32 %v1153, %v1344
        %v1346 = vpop.f32.mrf.mxu0
        %1347 = vdwg.mxu0
        %1348 = vst.msk [vmem:[#allocation3] sm:$0xff] %vm734, %v1270
        %1349 = vst.msk [vmem:[#allocation3 + $0x8] sm:$0xff] %vm734, %v1275
        %1350 = vst.msk [vmem:[#allocation3 + $0x10] sm:$0xff] %vm734, %v1280
        %1351 = vst.msk [vmem:[#allocation3 + $0x18] sm:$0xff] %vm734, %v1285
        %1352 = vst.msk [vmem:[#allocation3 + $0x20] sm:$0xff] %vm734, %v1290
        %1353 = vst.msk [vmem:[#allocation3 + $0x28] sm:$0xff] %vm734, %v1295
        %1354 = vst.msk [vmem:[#allocation3 + $0x30] sm:$0xff] %vm734, %v1300
        %1355 = vst.msk [vmem:[#allocation3 + $0x38] sm:$0xff] %vm734, %v1305
        %1356 = vst.msk [vmem:[#allocation3 + $0x40] sm:$0xff] %vm734, %v1310
        %1357 = vst.msk [vmem:[#allocation3 + $0x48] sm:$0xff] %vm734, %v1315
        %1358 = vst.msk [vmem:[#allocation3 + $0x50] sm:$0xff] %vm734, %v1320
        %1359 = vst.msk [vmem:[#allocation3 + $0x58] sm:$0xff] %vm734, %v1325
        %1360 = vst.msk [vmem:[#allocation3 + $0x60] sm:$0xff] %vm734, %v1330
        %1361 = vst.msk [vmem:[#allocation3 + $0x68] sm:$0xff] %vm734, %v1335
        %1362 = vst.msk [vmem:[#allocation3 + $0x70] sm:$0xff] %vm734, %v1340
        %1363 = vst.msk [vmem:[#allocation3 + $0x78] sm:$0xff] %vm734, %v1345
        %v1364 = vld [vmem:[#allocation3 + $0x10] sm:$0xff]
        %v1365 = vld [vmem:[#allocation3 + $0x18] sm:$0xff]
        %v1366 = vld [vmem:[#allocation3 + $0x20] sm:$0xff]
        %v1367 = vld [vmem:[#allocation3 + $0x28] sm:$0xff]
        %v1368 = vld [vmem:[#allocation3 + $0x30] sm:$0xff]
        %v1369 = vld [vmem:[#allocation3 + $0x38] sm:$0xff]
        %v1370 = vld [vmem:[#allocation3 + $0x40] sm:$0xff]
        %v1371 = vld [vmem:[#allocation3 + $0x48] sm:$0xff]
        %v1372 = vld [vmem:[#allocation3 + $0x50] sm:$0xff]
        %v1373 = vld [vmem:[#allocation3 + $0x58] sm:$0xff]
        %v1374 = vld [vmem:[#allocation3 + $0x60] sm:$0xff]
        %v1375 = vld [vmem:[#allocation3 + $0x68] sm:$0xff]
        %v1376 = vld [vmem:[#allocation3 + $0x70] sm:$0xff]
        %v1377 = vld [vmem:[#allocation3 + $0x78] sm:$0xff]
        %1378 = vmatprep.subr.mxu0 0.0
        %1379 = vmatpush1.msra.mxu0 0.0
        %1380 = vmatprep.subr.mxu0 0.0
        %1381 = vmatpush1.msra.mxu0 0.0
        %1382 = vmatprep.subr.mxu0 0.0
        %1383 = vmatpush1.msra.mxu0 0.0
        %1384 = vmatprep.subr.mxu0 0.0
        %1385 = vmatpush1.msra.mxu0 0.0
        %1386 = vmatprep.subr.mxu0 0.0
        %1387 = vmatpush1.msra.mxu0 0.0
        %1388 = vmatprep.subr.mxu0 0.0
        %1389 = vmatpush1.msra.mxu0 0.0
        %1390 = vmatprep.subr.mxu0 0.0
        %1391 = vmatpush1.msra.mxu0 0.0
        %1392 = vmatprep.subr.mxu0 0.0
        %1393 = vmatpush1.msra.mxu0 0.0
        %1394 = vmatprep.subr.mxu0 0.0
        %1395 = vmatpush1.msra.mxu0 0.0
        %1396 = vmatprep.subr.mxu0 0.0
        %1397 = vmatpush1.msra.mxu0 0.0
        %1398 = vmatprep.subr.mxu0 0.0
        %1399 = vmatpush1.msra.mxu0 0.0
        %1400 = vmatprep.subr.mxu0 0.0
        %1401 = vmatpush1.msra.mxu0 0.0
        %1402 = vmatprep.subr.mxu0 0.0
        %1403 = vmatpush1.msra.mxu0 %v759
        %1404 = vmatprep.subr.mxu0 0.0
        %1405 = vmatpush1.msra.mxu0 %v758
        %1406 = vmatprep.subr.mxu0 0.0
        %1407 = vmatpush1.msra.mxu0 %v757
        %1408 = vmatprep.subr.mxu0 0.0
        %1409 = vmatpush1.msra.mxu0 %v756
        %1410 = vmatprep.subr.mxu0 0.0
        %1411 = vmatpush2.msra.mxu0 0.0
        %1412 = vmatprep.subr.mxu0 0.0
        %1413 = vmatpush2.msra.mxu0 0.0
        %1414 = vmatprep.subr.mxu0 0.0
        %1415 = vmatpush2.msra.mxu0 0.0
        %1416 = vmatprep.subr.mxu0 0.0
        %1417 = vmatpush2.msra.mxu0 0.0
        %1418 = vmatprep.subr.mxu0 0.0
        %1419 = vmatpush2.msra.mxu0 0.0
        %1420 = vmatprep.subr.mxu0 0.0
        %1421 = vmatpush2.msra.mxu0 0.0
        %1422 = vmatprep.subr.mxu0 0.0
        %1423 = vmatpush2.msra.mxu0 0.0
        %1424 = vmatprep.subr.mxu0 0.0
        %1425 = vmatpush2.msra.mxu0 0.0
        %1426 = vmatprep.subr.mxu0 0.0
        %1427 = vmatpush2.msra.mxu0 0.0
        %1428 = vmatprep.subr.mxu0 0.0
        %1429 = vmatpush2.msra.mxu0 0.0
        %1430 = vmatprep.subr.mxu0 0.0
        %1431 = vmatpush2.msra.mxu0 0.0
        %1432 = vmatprep.subr.mxu0 0.0
        %1433 = vmatpush2.msra.mxu0 0.0
        %1434 = vmatprep.subr.mxu0 0.0
        %1435 = vmatpush2.msra.mxu0 0.0
        %1436 = vmatprep.subr.mxu0 0.0
        %1437 = vmatpush2.msra.mxu0 0.0
        %1438 = vmatprep.subr.mxu0 0.0
        %1439 = vmatpush2.msra.mxu0 0.0
        %1440 = vmatprep.subr.mxu0 0.0
        %1441 = vmatpush2.msra.mxu0 0.0
        %1442 = vmatprep.mubr.f32.mxu0 0.0
        %1443 = vmatmul.mubr.f32.gmra.mxu0 %v1156
        %v1444 = vpop.f32.mrf.mxu0
        %v1445 = vadd.f32 0.0, %v1444
        %v1446 = vpop.f32.mrf.mxu0
        %1447 = vmatprep.mubr.f32.mxu0 0.0
        %1448 = vmatmul.mubr.f32.gmra.mxu0 %v1159
        %v1449 = vpop.f32.mrf.mxu0
        %v1450 = vadd.f32 0.0, %v1449
        %v1451 = vpop.f32.mrf.mxu0
        %1452 = vmatprep.mubr.f32.mxu0 0.0
        %1453 = vmatmul.mubr.f32.gmra.mxu0 %v1162
        %v1454 = vpop.f32.mrf.mxu0
        %v1455 = vadd.f32 0.0, %v1454
        %v1456 = vpop.f32.mrf.mxu0
        %1457 = vmatprep.mubr.f32.mxu0 0.0
        %1458 = vmatmul.mubr.f32.gmra.mxu0 %v1165
        %v1459 = vpop.f32.mrf.mxu0
        %v1460 = vadd.f32 0.0, %v1459
        %v1461 = vpop.f32.mrf.mxu0
        %1462 = vmatprep.mubr.f32.mxu0 0.0
        %1463 = vmatmul.mubr.f32.gmra.mxu0 %v1168
        %v1464 = vpop.f32.mrf.mxu0
        %v1465 = vadd.f32 0.0, %v1464
        %v1466 = vpop.f32.mrf.mxu0
        %1467 = vmatprep.mubr.f32.mxu0 0.0
        %1468 = vmatmul.mubr.f32.gmra.mxu0 %v1171
        %v1469 = vpop.f32.mrf.mxu0
        %v1470 = vadd.f32 0.0, %v1469
        %v1471 = vpop.f32.mrf.mxu0
        %1472 = vmatprep.mubr.f32.mxu0 0.0
        %1473 = vmatmul.mubr.f32.gmra.mxu0 %v1174
        %v1474 = vpop.f32.mrf.mxu0
        %v1475 = vadd.f32 0.0, %v1474
        %v1476 = vpop.f32.mrf.mxu0
        %1477 = vmatprep.mubr.f32.mxu0 0.0
        %1478 = vmatmul.mubr.f32.gmra.mxu0 %v1177
        %v1479 = vpop.f32.mrf.mxu0
        %v1480 = vadd.f32 0.0, %v1479
        %v1481 = vpop.f32.mrf.mxu0
        %1482 = vmatprep.mubr.f32.mxu0 0.0
        %1483 = vmatmul.mubr.f32.gmra.mxu0 %v1180
        %v1484 = vpop.f32.mrf.mxu0
        %v1485 = vadd.f32 0.0, %v1484
        %v1486 = vpop.f32.mrf.mxu0
        %1487 = vmatprep.mubr.f32.mxu0 0.0
        %1488 = vmatmul.mubr.f32.gmra.mxu0 %v1183
        %v1489 = vpop.f32.mrf.mxu0
        %v1490 = vadd.f32 0.0, %v1489
        %v1491 = vpop.f32.mrf.mxu0
        %1492 = vmatprep.mubr.f32.mxu0 0.0
        %1493 = vmatmul.mubr.f32.gmra.mxu0 %v1186
        %v1494 = vpop.f32.mrf.mxu0
        %v1495 = vadd.f32 0.0, %v1494
        %v1496 = vpop.f32.mrf.mxu0
        %1497 = vmatprep.mubr.f32.mxu0 0.0
        %1498 = vmatmul.mubr.f32.gmra.mxu0 %v1189
        %v1499 = vpop.f32.mrf.mxu0
        %v1500 = vadd.f32 0.0, %v1499
        %v1501 = vpop.f32.mrf.mxu0
        %1502 = vmatprep.mubr.f32.mxu0 0.0
        %1503 = vmatmul.mubr.f32.gmra.mxu0 %v1192
        %v1504 = vpop.f32.mrf.mxu0
        %v1505 = vadd.f32 0.0, %v1504
        %v1506 = vpop.f32.mrf.mxu0
        %1507 = vmatprep.mubr.f32.mxu0 0.0
        %1508 = vmatmul.mubr.f32.gmra.mxu0 %v1195
        %v1509 = vpop.f32.mrf.mxu0
        %v1510 = vadd.f32 0.0, %v1509
        %v1511 = vpop.f32.mrf.mxu0
        %1512 = vdwg.mxu0
        %v1513 = vadd.f32 %v1364, %v1445
        %v1514 = vadd.f32 %v1365, %v1450
        %v1515 = vadd.f32 %v1366, %v1455
        %v1516 = vadd.f32 %v1367, %v1460
        %v1517 = vadd.f32 %v1368, %v1465
        %v1518 = vadd.f32 %v1369, %v1470
        %v1519 = vadd.f32 %v1370, %v1475
        %v1520 = vadd.f32 %v1371, %v1480
        %v1521 = vadd.f32 %v1372, %v1485
        %v1522 = vadd.f32 %v1373, %v1490
        %v1523 = vadd.f32 %v1374, %v1495
        %v1524 = vadd.f32 %v1375, %v1500
        %v1525 = vadd.f32 %v1376, %v1505
        %v1526 = vadd.f32 %v1377, %v1510
        %1527 = vst.msk [vmem:[#allocation3 + $0x10] sm:$0xff] %vm734, %v1513
        %1528 = vst.msk [vmem:[#allocation3 + $0x18] sm:$0xff] %vm734, %v1514
        %1529 = vst.msk [vmem:[#allocation3 + $0x20] sm:$0xff] %vm734, %v1515
        %1530 = vst.msk [vmem:[#allocation3 + $0x28] sm:$0xff] %vm734, %v1516
        %1531 = vst.msk [vmem:[#allocation3 + $0x30] sm:$0xff] %vm734, %v1517
        %1532 = vst.msk [vmem:[#allocation3 + $0x38] sm:$0xff] %vm734, %v1518
        %1533 = vst.msk [vmem:[#allocation3 + $0x40] sm:$0xff] %vm734, %v1519
        %1534 = vst.msk [vmem:[#allocation3 + $0x48] sm:$0xff] %vm734, %v1520
        %1535 = vst.msk [vmem:[#allocation3 + $0x50] sm:$0xff] %vm734, %v1521
        %1536 = vst.msk [vmem:[#allocation3 + $0x58] sm:$0xff] %vm734, %v1522
        %1537 = vst.msk [vmem:[#allocation3 + $0x60] sm:$0xff] %vm734, %v1523
        %1538 = vst.msk [vmem:[#allocation3 + $0x68] sm:$0xff] %vm734, %v1524
        %1539 = vst.msk [vmem:[#allocation3 + $0x70] sm:$0xff] %vm734, %v1525
        %1540 = vst.msk [vmem:[#allocation3 + $0x78] sm:$0xff] %vm734, %v1526
        %v1541 = vld [vmem:[#allocation3] sm:$0xff]
        %v1542 = vld [vmem:[#allocation3 + $0x8] sm:$0xff]
        %v1543 = vld [vmem:[#allocation3 + $0x10] sm:$0xff]
        %v1544 = vld [vmem:[#allocation3 + $0x18] sm:$0xff]
        %v1545 = vld [vmem:[#allocation3 + $0x20] sm:$0xff]
        %v1546 = vld [vmem:[#allocation3 + $0x28] sm:$0xff]
        %v1547 = vld [vmem:[#allocation3 + $0x30] sm:$0xff]
        %v1548 = vld [vmem:[#allocation3 + $0x38] sm:$0xff]
        %v1549 = vld [vmem:[#allocation3 + $0x40] sm:$0xff]
        %v1550 = vld [vmem:[#allocation3 + $0x48] sm:$0xff]
        %v1551 = vld [vmem:[#allocation3 + $0x50] sm:$0xff]
        %v1552 = vld [vmem:[#allocation3 + $0x58] sm:$0xff]
        %v1553 = vld [vmem:[#allocation3 + $0x60] sm:$0xff]
        %v1554 = vld [vmem:[#allocation3 + $0x68] sm:$0xff]
        %1555 = vmatprep.subr.mxu0 0.0
        %1556 = vmatpush1.msra.mxu0 0.0
        %1557 = vmatprep.subr.mxu0 0.0
        %1558 = vmatpush1.msra.mxu0 0.0
        %1559 = vmatprep.subr.mxu0 0.0
        %1560 = vmatpush1.msra.mxu0 0.0
        %1561 = vmatprep.subr.mxu0 0.0
        %1562 = vmatpush1.msra.mxu0 0.0
        %1563 = vmatprep.subr.mxu0 0.0
        %1564 = vmatpush1.msra.mxu0 0.0
        %1565 = vmatprep.subr.mxu0 0.0
        %1566 = vmatpush1.msra.mxu0 0.0
        %1567 = vmatprep.subr.mxu0 0.0
        %1568 = vmatpush1.msra.mxu0 0.0
        %1569 = vmatprep.subr.mxu0 0.0
        %1570 = vmatpush1.msra.mxu0 0.0
        %1571 = vmatprep.subr.mxu0 0.0
        %1572 = vmatpush1.msra.mxu0 0.0
        %1573 = vmatprep.subr.mxu0 0.0
        %1574 = vmatpush1.msra.mxu0 0.0
        %1575 = vmatprep.subr.mxu0 0.0
        %1576 = vmatpush1.msra.mxu0 0.0
        %1577 = vmatprep.subr.mxu0 0.0
        %1578 = vmatpush1.msra.mxu0 0.0
        %1579 = vmatprep.subr.mxu0 0.0
        %1580 = vmatpush1.msra.mxu0 %v769
        %1581 = vmatprep.subr.mxu0 0.0
        %1582 = vmatpush1.msra.mxu0 %v768
        %1583 = vmatprep.subr.mxu0 0.0
        %1584 = vmatpush1.msra.mxu0 %v767
        %1585 = vmatprep.subr.mxu0 0.0
        %1586 = vmatpush1.msra.mxu0 %v766
        %1587 = vmatprep.subr.mxu0 0.0
        %1588 = vmatpush2.msra.mxu0 0.0
        %1589 = vmatprep.subr.mxu0 0.0
        %1590 = vmatpush2.msra.mxu0 0.0
        %1591 = vmatprep.subr.mxu0 0.0
        %1592 = vmatpush2.msra.mxu0 0.0
        %1593 = vmatprep.subr.mxu0 0.0
        %1594 = vmatpush2.msra.mxu0 0.0
        %1595 = vmatprep.subr.mxu0 0.0
        %1596 = vmatpush2.msra.mxu0 0.0
        %1597 = vmatprep.subr.mxu0 0.0
        %1598 = vmatpush2.msra.mxu0 0.0
        %1599 = vmatprep.subr.mxu0 0.0
        %1600 = vmatpush2.msra.mxu0 0.0
        %1601 = vmatprep.subr.mxu0 0.0
        %1602 = vmatpush2.msra.mxu0 0.0
        %1603 = vmatprep.subr.mxu0 0.0
        %1604 = vmatpush2.msra.mxu0 0.0
        %1605 = vmatprep.subr.mxu0 0.0
        %1606 = vmatpush2.msra.mxu0 0.0
        %1607 = vmatprep.subr.mxu0 0.0
        %1608 = vmatpush2.msra.mxu0 0.0
        %1609 = vmatprep.subr.mxu0 0.0
        %1610 = vmatpush2.msra.mxu0 0.0
        %1611 = vmatprep.subr.mxu0 0.0
        %1612 = vmatpush2.msra.mxu0 0.0
        %1613 = vmatprep.subr.mxu0 0.0
        %1614 = vmatpush2.msra.mxu0 0.0
        %1615 = vmatprep.subr.mxu0 0.0
        %1616 = vmatpush2.msra.mxu0 0.0
        %1617 = vmatprep.subr.mxu0 0.0
        %1618 = vmatpush2.msra.mxu0 0.0
        %1619 = vmatprep.mubr.f32.mxu0 0.0
        %1620 = vmatmul.mubr.f32.gmra.mxu0 %v1162
        %v1621 = vpop.f32.mrf.mxu0
        %v1622 = vadd.f32 0.0, %v1621
        %v1623 = vpop.f32.mrf.mxu0
        %1624 = vmatprep.mubr.f32.mxu0 0.0
        %1625 = vmatmul.mubr.f32.gmra.mxu0 %v1165
        %v1626 = vpop.f32.mrf.mxu0
        %v1627 = vadd.f32 0.0, %v1626
        %v1628 = vpop.f32.mrf.mxu0
        %1629 = vmatprep.mubr.f32.mxu0 0.0
        %1630 = vmatmul.mubr.f32.gmra.mxu0 %v1168
        %v1631 = vpop.f32.mrf.mxu0
        %v1632 = vadd.f32 0.0, %v1631
        %v1633 = vpop.f32.mrf.mxu0
        %1634 = vmatprep.mubr.f32.mxu0 0.0
        %1635 = vmatmul.mubr.f32.gmra.mxu0 %v1171
        %v1636 = vpop.f32.mrf.mxu0
        %v1637 = vadd.f32 0.0, %v1636
        %v1638 = vpop.f32.mrf.mxu0
        %1639 = vmatprep.mubr.f32.mxu0 0.0
        %1640 = vmatmul.mubr.f32.gmra.mxu0 %v1174
        %v1641 = vpop.f32.mrf.mxu0
        %v1642 = vadd.f32 0.0, %v1641
        %v1643 = vpop.f32.mrf.mxu0
        %1644 = vmatprep.mubr.f32.mxu0 0.0
        %1645 = vmatmul.mubr.f32.gmra.mxu0 %v1177
        %v1646 = vpop.f32.mrf.mxu0
        %v1647 = vadd.f32 0.0, %v1646
        %v1648 = vpop.f32.mrf.mxu0
        %1649 = vmatprep.mubr.f32.mxu0 0.0
        %1650 = vmatmul.mubr.f32.gmra.mxu0 %v1180
        %v1651 = vpop.f32.mrf.mxu0
        %v1652 = vadd.f32 0.0, %v1651
        %v1653 = vpop.f32.mrf.mxu0
        %1654 = vmatprep.mubr.f32.mxu0 0.0
        %1655 = vmatmul.mubr.f32.gmra.mxu0 %v1183
        %v1656 = vpop.f32.mrf.mxu0
        %v1657 = vadd.f32 0.0, %v1656
        %v1658 = vpop.f32.mrf.mxu0
        %1659 = vmatprep.mubr.f32.mxu0 0.0
        %1660 = vmatmul.mubr.f32.gmra.mxu0 %v1186
        %v1661 = vpop.f32.mrf.mxu0
        %v1662 = vadd.f32 0.0, %v1661
        %v1663 = vpop.f32.mrf.mxu0
        %1664 = vmatprep.mubr.f32.mxu0 0.0
        %1665 = vmatmul.mubr.f32.gmra.mxu0 %v1189
        %v1666 = vpop.f32.mrf.mxu0
        %v1667 = vadd.f32 0.0, %v1666
        %v1668 = vpop.f32.mrf.mxu0
        %1669 = vmatprep.mubr.f32.mxu0 0.0
        %1670 = vmatmul.mubr.f32.gmra.mxu0 %v1192
        %v1671 = vpop.f32.mrf.mxu0
        %v1672 = vadd.f32 0.0, %v1671
        %v1673 = vpop.f32.mrf.mxu0
        %1674 = vmatprep.mubr.f32.mxu0 0.0
        %1675 = vmatmul.mubr.f32.gmra.mxu0 %v1195
        %v1676 = vpop.f32.mrf.mxu0
        %v1677 = vadd.f32 0.0, %v1676
        %v1678 = vpop.f32.mrf.mxu0
        %1679 = vmatprep.mubr.f32.mxu0 0.0
        %1680 = vmatmul.mubr.f32.gmra.mxu0 %v1198
        %v1681 = vpop.f32.mrf.mxu0
        %v1682 = vadd.f32 0.0, %v1681
        %v1683 = vpop.f32.mrf.mxu0
        %1684 = vmatprep.mubr.f32.mxu0 0.0
        %1685 = vmatmul.mubr.f32.gmra.mxu0 %v1201
        %v1686 = vpop.f32.mrf.mxu0
        %v1687 = vadd.f32 0.0, %v1686
        %v1688 = vpop.f32.mrf.mxu0
        %1689 = vdwg.mxu0
        %v1690 = vadd.f32 %v1541, %v1622
        %v1691 = vadd.f32 %v1542, %v1627
        %v1692 = vadd.f32 %v1543, %v1632
        %v1693 = vadd.f32 %v1544, %v1637
        %v1694 = vadd.f32 %v1545, %v1642
        %v1695 = vadd.f32 %v1546, %v1647
        %v1696 = vadd.f32 %v1547, %v1652
        %v1697 = vadd.f32 %v1548, %v1657
        %v1698 = vadd.f32 %v1549, %v1662
        %v1699 = vadd.f32 %v1550, %v1667
        %v1700 = vadd.f32 %v1551, %v1672
        %v1701 = vadd.f32 %v1552, %v1677
        %v1702 = vadd.f32 %v1553, %v1682
        %v1703 = vadd.f32 %v1554, %v1687
        %1704 = vst.msk [vmem:[#allocation3] sm:$0xff] %vm734, %v1690
        %1705 = vst.msk [vmem:[#allocation3 + $0x8] sm:$0xff] %vm734, %v1691
        %1706 = vst.msk [vmem:[#allocation3 + $0x10] sm:$0xff] %vm734, %v1692
        %1707 = vst.msk [vmem:[#allocation3 + $0x18] sm:$0xff] %vm734, %v1693
        %1708 = vst.msk [vmem:[#allocation3 + $0x20] sm:$0xff] %vm734, %v1694
        %1709 = vst.msk [vmem:[#allocation3 + $0x28] sm:$0xff] %vm734, %v1695
        %1710 = vst.msk [vmem:[#allocation3 + $0x30] sm:$0xff] %vm734, %v1696
        %1711 = vst.msk [vmem:[#allocation3 + $0x38] sm:$0xff] %vm734, %v1697
        %1712 = vst.msk [vmem:[#allocation3 + $0x40] sm:$0xff] %vm734, %v1698
        %1713 = vst.msk [vmem:[#allocation3 + $0x48] sm:$0xff] %vm734, %v1699
        %1714 = vst.msk [vmem:[#allocation3 + $0x50] sm:$0xff] %vm734, %v1700
        %1715 = vst.msk [vmem:[#allocation3 + $0x58] sm:$0xff] %vm734, %v1701
        %1716 = vst.msk [vmem:[#allocation3 + $0x60] sm:$0xff] %vm734, %v1702
        %1717 = vst.msk [vmem:[#allocation3 + $0x68] sm:$0xff] %vm734, %v1703
        %v1718 = vld [vmem:[#allocation3] sm:$0xff]
        %v1719 = vld [vmem:[#allocation3 + $0x8] sm:$0xff]
        %v1720 = vld [vmem:[#allocation3 + $0x10] sm:$0xff]
        %v1721 = vld [vmem:[#allocation3 + $0x18] sm:$0xff]
        %v1722 = vld [vmem:[#allocation3 + $0x20] sm:$0xff]
        %v1723 = vld [vmem:[#allocation3 + $0x28] sm:$0xff]
        %v1724 = vld [vmem:[#allocation3 + $0x30] sm:$0xff]
        %v1725 = vld [vmem:[#allocation3 + $0x38] sm:$0xff]
        %v1726 = vld [vmem:[#allocation3 + $0x40] sm:$0xff]
        %v1727 = vld [vmem:[#allocation3 + $0x48] sm:$0xff]
        %v1728 = vld [vmem:[#allocation3 + $0x50] sm:$0xff]
        %v1729 = vld [vmem:[#allocation3 + $0x58] sm:$0xff]
        %v1730 = vld [vmem:[#allocation3 + $0x60] sm:$0xff]
        %v1731 = vld [vmem:[#allocation3 + $0x68] sm:$0xff]
        %v1732 = vld [vmem:[#allocation3 + $0x70] sm:$0xff]
        %v1733 = vld [vmem:[#allocation3 + $0x78] sm:$0xff]
        %v1735 = vlaneseq
        %v1736 = vshrl.u32 %v1735, 7
        %v1737 = vsub.s32 0, %v1736
        %v1738 = vrot.slane %v771, %v1737
        %v1740 = vmul.f32 %v1718, %v1738
        %v1741 = vmul.f32 %v1719, %v1738
        %v1742 = vmul.f32 %v1720, %v1738
        %v1743 = vmul.f32 %v1721, %v1738
        %v1744 = vmul.f32 %v1722, %v1738
        %v1745 = vmul.f32 %v1723, %v1738
        %v1746 = vmul.f32 %v1724, %v1738
        %v1747 = vmul.f32 %v1725, %v1738
        %v1748 = vmul.f32 %v1726, %v1738
        %v1749 = vmul.f32 %v1727, %v1738
        %v1750 = vmul.f32 %v1728, %v1738
        %v1751 = vmul.f32 %v1729, %v1738
        %v1752 = vmul.f32 %v1730, %v1738
        %v1753 = vmul.f32 %v1731, %v1738
        %v1754 = vmul.f32 %v1732, %v1738
        %v1755 = vmul.f32 %v1733, %v1738
        %v1757 = vlaneseq
        %v1758 = vshrl.u32 %v1757, 7
        %v1759 = vsub.s32 0, %v1758
        %v1760 = vrot.slane %v772, %v1759
        %v1762 = vadd.f32 %v1740, %v1760
        %v1763 = vadd.f32 %v1741, %v1760
        %v1764 = vadd.f32 %v1742, %v1760
        %v1765 = vadd.f32 %v1743, %v1760
        %v1766 = vadd.f32 %v1744, %v1760
        %v1767 = vadd.f32 %v1745, %v1760
        %v1768 = vadd.f32 %v1746, %v1760
        %v1769 = vadd.f32 %v1747, %v1760
        %v1770 = vadd.f32 %v1748, %v1760
        %v1771 = vadd.f32 %v1749, %v1760
        %v1772 = vadd.f32 %v1750, %v1760
        %v1773 = vadd.f32 %v1751, %v1760
        %v1774 = vadd.f32 %v1752, %v1760
        %v1775 = vadd.f32 %v1753, %v1760
        %v1776 = vadd.f32 %v1754, %v1760
        %v1777 = vadd.f32 %v1755, %v1760
        %v1778 = vmax.f32 %v1762, 0.0
        %v1779 = vmax.f32 %v1763, 0.0
        %v1780 = vmax.f32 %v1764, 0.0
        %v1781 = vmax.f32 %v1765, 0.0
        %v1782 = vmax.f32 %v1766, 0.0
        %v1783 = vmax.f32 %v1767, 0.0
        %v1784 = vmax.f32 %v1768, 0.0
        %v1785 = vmax.f32 %v1769, 0.0
        %v1786 = vmax.f32 %v1770, 0.0
        %v1787 = vmax.f32 %v1771, 0.0
        %v1788 = vmax.f32 %v1772, 0.0
        %v1789 = vmax.f32 %v1773, 0.0
        %v1790 = vmax.f32 %v1774, 0.0
        %v1791 = vmax.f32 %v1775, 0.0
        %v1792 = vmax.f32 %v1776, 0.0
        %v1793 = vmax.f32 %v1777, 0.0
        %v1794 = vadd.f32 %v773, %v1778
        %v1795 = vadd.f32 %v774, %v1779
        %v1796 = vadd.f32 %v775, %v1780
        %v1797 = vadd.f32 %v776, %v1781
        %v1798 = vadd.f32 %v777, %v1782
        %v1799 = vadd.f32 %v778, %v1783
        %v1800 = vadd.f32 %v779, %v1784
        %v1801 = vadd.f32 %v780, %v1785
        %v1802 = vadd.f32 %v781, %v1786
        %v1803 = vadd.f32 %v782, %v1787
        %v1804 = vadd.f32 %v783, %v1788
        %v1805 = vadd.f32 %v784, %v1789
        %v1806 = vadd.f32 %v785, %v1790
        %v1807 = vadd.f32 %v786, %v1791
        %v1808 = vadd.f32 %v787, %v1792
        %v1809 = vadd.f32 %v788, %v1793
        %v1810 = vsel %vm734, %v1794, 0.0
        %1811 = vadd.xlane.f32.xlu0 %v1810
        %v1812 = vpop.xlane.xlu0 %1811
        %v1813 = vsel %vm734, %v1795, 0.0
        %1814 = vadd.xlane.f32.xlu0 %v1813
        %v1815 = vpop.xlane.xlu0 %1814
        %v1816 = vsel %vm734, %v1796, 0.0
        %1817 = vadd.xlane.f32.xlu0 %v1816
        %v1818 = vpop.xlane.xlu0 %1817
        %v1819 = vsel %vm734, %v1797, 0.0
        %1820 = vadd.xlane.f32.xlu0 %v1819
        %v1821 = vpop.xlane.xlu0 %1820
        %v1822 = vsel %vm734, %v1798, 0.0
        %1823 = vadd.xlane.f32.xlu0 %v1822
        %v1824 = vpop.xlane.xlu0 %1823
        %v1825 = vsel %vm734, %v1799, 0.0
        %1826 = vadd.xlane.f32.xlu0 %v1825
        %v1827 = vpop.xlane.xlu0 %1826
        %v1828 = vsel %vm734, %v1800, 0.0
        %1829 = vadd.xlane.f32.xlu0 %v1828
        %v1830 = vpop.xlane.xlu0 %1829
        %v1831 = vsel %vm734, %v1801, 0.0
        %1832 = vadd.xlane.f32.xlu0 %v1831
        %v1833 = vpop.xlane.xlu0 %1832
        %v1834 = vsel %vm734, %v1802, 0.0
        %1835 = vadd.xlane.f32.xlu0 %v1834
        %v1836 = vpop.xlane.xlu0 %1835
        %v1837 = vsel %vm734, %v1803, 0.0
        %1838 = vadd.xlane.f32.xlu0 %v1837
        %v1839 = vpop.xlane.xlu0 %1838
        %v1840 = vsel %vm734, %v1804, 0.0
        %1841 = vadd.xlane.f32.xlu0 %v1840
        %v1842 = vpop.xlane.xlu0 %1841
        %v1843 = vsel %vm734, %v1805, 0.0
        %1844 = vadd.xlane.f32.xlu0 %v1843
        %v1845 = vpop.xlane.xlu0 %1844
        %v1846 = vsel %vm734, %v1806, 0.0
        %1847 = vadd.xlane.f32.xlu0 %v1846
        %v1848 = vpop.xlane.xlu0 %1847
        %v1849 = vsel %vm734, %v1807, 0.0
        %1850 = vadd.xlane.f32.xlu0 %v1849
        %v1851 = vpop.xlane.xlu0 %1850
        %v1852 = vsel %vm734, %v1808, 0.0
        %1853 = vadd.xlane.f32.xlu0 %v1852
        %v1854 = vpop.xlane.xlu0 %1853
        %v1855 = vsel %vm734, %v1809, 0.0
        %1856 = vadd.xlane.f32.xlu0 %v1855
        %v1857 = vpop.xlane.xlu0 %1856
        %v1858 = vrcp.pop 32.0
        %v1859 = vmul.f32 %v1812, %v1858
        %v1860 = vmul.f32 %v1815, %v1858
        %v1861 = vmul.f32 %v1818, %v1858
        %v1862 = vmul.f32 %v1821, %v1858
        %v1863 = vmul.f32 %v1824, %v1858
        %v1864 = vmul.f32 %v1827, %v1858
        %v1865 = vmul.f32 %v1830, %v1858
        %v1866 = vmul.f32 %v1833, %v1858
        %v1867 = vmul.f32 %v1836, %v1858
        %v1868 = vmul.f32 %v1839, %v1858
        %v1869 = vmul.f32 %v1842, %v1858
        %v1870 = vmul.f32 %v1845, %v1858
        %v1871 = vmul.f32 %v1848, %v1858
        %v1872 = vmul.f32 %v1851, %v1858
        %v1873 = vmul.f32 %v1854, %v1858
        %v1874 = vmul.f32 %v1857, %v1858
        %v1875 = vsub.f32 %v1794, %v1859
        %v1876 = vsub.f32 %v1795, %v1860
        %v1877 = vsub.f32 %v1796, %v1861
        %v1878 = vsub.f32 %v1797, %v1862
        %v1879 = vsub.f32 %v1798, %v1863
        %v1880 = vsub.f32 %v1799, %v1864
        %v1881 = vsub.f32 %v1800, %v1865
        %v1882 = vsub.f32 %v1801, %v1866
        %v1883 = vsub.f32 %v1802, %v1867
        %v1884 = vsub.f32 %v1803, %v1868
        %v1885 = vsub.f32 %v1804, %v1869
        %v1886 = vsub.f32 %v1805, %v1870
        %v1887 = vsub.f32 %v1806, %v1871
        %v1888 = vsub.f32 %v1807, %v1872
        %v1889 = vsub.f32 %v1808, %v1873
        %v1890 = vsub.f32 %v1809, %v1874
        %v1891 = vmul.f32 %v1875, %v1875
        %v1892 = vmul.f32 %v1876, %v1876
        %v1893 = vmul.f32 %v1877, %v1877
        %v1894 = vmul.f32 %v1878, %v1878
        %v1895 = vmul.f32 %v1879, %v1879
        %v1896 = vmul.f32 %v1880, %v1880
        %v1897 = vmul.f32 %v1881, %v1881
        %v1898 = vmul.f32 %v1882, %v1882
        %v1899 = vmul.f32 %v1883, %v1883
        %v1900 = vmul.f32 %v1884, %v1884
        %v1901 = vmul.f32 %v1885, %v1885
        %v1902 = vmul.f32 %v1886, %v1886
        %v1903 = vmul.f32 %v1887, %v1887
        %v1904 = vmul.f32 %v1888, %v1888
        %v1905 = vmul.f32 %v1889, %v1889
        %v1906 = vmul.f32 %v1890, %v1890
        %v1907 = vsel %vm734, %v1891, 0.0
        %1908 = vadd.xlane.f32.xlu0 %v1907
        %v1909 = vpop.xlane.xlu0 %1908
        %v1910 = vsel %vm734, %v1892, 0.0
        %1911 = vadd.xlane.f32.xlu0 %v1910
        %v1912 = vpop.xlane.xlu0 %1911
        %v1913 = vsel %vm734, %v1893, 0.0
        %1914 = vadd.xlane.f32.xlu0 %v1913
        %v1915 = vpop.xlane.xlu0 %1914
        %v1916 = vsel %vm734, %v1894, 0.0
        %1917 = vadd.xlane.f32.xlu0 %v1916
        %v1918 = vpop.xlane.xlu0 %1917
        %v1919 = vsel %vm734, %v1895, 0.0
        %1920 = vadd.xlane.f32.xlu0 %v1919
        %v1921 = vpop.xlane.xlu0 %1920
        %v1922 = vsel %vm734, %v1896, 0.0
        %1923 = vadd.xlane.f32.xlu0 %v1922
        %v1924 = vpop.xlane.xlu0 %1923
        %v1925 = vsel %vm734, %v1897, 0.0
        %1926 = vadd.xlane.f32.xlu0 %v1925
        %v1927 = vpop.xlane.xlu0 %1926
        %v1928 = vsel %vm734, %v1898, 0.0
        %1929 = vadd.xlane.f32.xlu0 %v1928
        %v1930 = vpop.xlane.xlu0 %1929
        %v1931 = vsel %vm734, %v1899, 0.0
        %1932 = vadd.xlane.f32.xlu0 %v1931
        %v1933 = vpop.xlane.xlu0 %1932
        %v1934 = vsel %vm734, %v1900, 0.0
        %1935 = vadd.xlane.f32.xlu0 %v1934
        %v1936 = vpop.xlane.xlu0 %1935
        %v1937 = vsel %vm734, %v1901, 0.0
        %1938 = vadd.xlane.f32.xlu0 %v1937
        %v1939 = vpop.xlane.xlu0 %1938
        %v1940 = vsel %vm734, %v1902, 0.0
        %1941 = vadd.xlane.f32.xlu0 %v1940
        %v1942 = vpop.xlane.xlu0 %1941
        %v1943 = vsel %vm734, %v1903, 0.0
        %1944 = vadd.xlane.f32.xlu0 %v1943
        %v1945 = vpop.xlane.xlu0 %1944
        %v1946 = vsel %vm734, %v1904, 0.0
        %1947 = vadd.xlane.f32.xlu0 %v1946
        %v1948 = vpop.xlane.xlu0 %1947
        %v1949 = vsel %vm734, %v1905, 0.0
        %1950 = vadd.xlane.f32.xlu0 %v1949
        %v1951 = vpop.xlane.xlu0 %1950
        %v1952 = vsel %vm734, %v1906, 0.0
        %1953 = vadd.xlane.f32.xlu0 %v1952
        %v1954 = vpop.xlane.xlu0 %1953
        %v1955 = vmul.f32 %v1909, %v1858
        %v1956 = vmul.f32 %v1912, %v1858
        %v1957 = vmul.f32 %v1915, %v1858
        %v1958 = vmul.f32 %v1918, %v1858
        %v1959 = vmul.f32 %v1921, %v1858
        %v1960 = vmul.f32 %v1924, %v1858
        %v1961 = vmul.f32 %v1927, %v1858
        %v1962 = vmul.f32 %v1930, %v1858
        %v1963 = vmul.f32 %v1933, %v1858
        %v1964 = vmul.f32 %v1936, %v1858
        %v1965 = vmul.f32 %v1939, %v1858
        %v1966 = vmul.f32 %v1942, %v1858
        %v1967 = vmul.f32 %v1945, %v1858
        %v1968 = vmul.f32 %v1948, %v1858
        %v1969 = vmul.f32 %v1951, %v1858
        %v1970 = vmul.f32 %v1954, %v1858
        %v1971 = vadd.f32 %v1955, 1e-05
        %v1972 = vadd.f32 %v1956, 1e-05
        %v1973 = vadd.f32 %v1957, 1e-05
        %v1974 = vadd.f32 %v1958, 1e-05
        %v1975 = vadd.f32 %v1959, 1e-05
        %v1976 = vadd.f32 %v1960, 1e-05
        %v1977 = vadd.f32 %v1961, 1e-05
        %v1978 = vadd.f32 %v1962, 1e-05
        %v1979 = vadd.f32 %v1963, 1e-05
        %v1980 = vadd.f32 %v1964, 1e-05
        %v1981 = vadd.f32 %v1965, 1e-05
        %v1982 = vadd.f32 %v1966, 1e-05
        %v1983 = vadd.f32 %v1967, 1e-05
        %v1984 = vadd.f32 %v1968, 1e-05
        %v1985 = vadd.f32 %v1969, 1e-05
        %v1986 = vadd.f32 %v1970, 1e-05
        %v1987 = vrsqrt.pop %v1971
        %v1988 = vrsqrt.pop %v1972
        %v1989 = vrsqrt.pop %v1973
        %v1990 = vrsqrt.pop %v1974
        %v1991 = vrsqrt.pop %v1975
        %v1992 = vrsqrt.pop %v1976
        %v1993 = vrsqrt.pop %v1977
        %v1994 = vrsqrt.pop %v1978
        %v1995 = vrsqrt.pop %v1979
        %v1996 = vrsqrt.pop %v1980
        %v1997 = vrsqrt.pop %v1981
        %v1998 = vrsqrt.pop %v1982
        %v1999 = vrsqrt.pop %v1983
        %v2000 = vrsqrt.pop %v1984
        %v2001 = vrsqrt.pop %v1985
        %v2002 = vrsqrt.pop %v1986
        %v2003 = vmul.f32 %v1875, %v1987
        %v2004 = vmul.f32 %v1876, %v1988
        %v2005 = vmul.f32 %v1877, %v1989
        %v2006 = vmul.f32 %v1878, %v1990
        %v2007 = vmul.f32 %v1879, %v1991
        %v2008 = vmul.f32 %v1880, %v1992
        %v2009 = vmul.f32 %v1881, %v1993
        %v2010 = vmul.f32 %v1882, %v1994
        %v2011 = vmul.f32 %v1883, %v1995
        %v2012 = vmul.f32 %v1884, %v1996
        %v2013 = vmul.f32 %v1885, %v1997
        %v2014 = vmul.f32 %v1886, %v1998
        %v2015 = vmul.f32 %v1887, %v1999
        %v2016 = vmul.f32 %v1888, %v2000
        %v2017 = vmul.f32 %v1889, %v2001
        %v2018 = vmul.f32 %v1890, %v2002
        %v2020 = vlaneseq
        %v2021 = vshrl.u32 %v2020, 7
        %v2022 = vsub.s32 0, %v2021
        %v2023 = vrot.slane %v510, %v2022
        %v2025 = vmul.f32 %v2003, %v2023
        %v2026 = vmul.f32 %v2004, %v2023
        %v2027 = vmul.f32 %v2005, %v2023
        %v2028 = vmul.f32 %v2006, %v2023
        %v2029 = vmul.f32 %v2007, %v2023
        %v2030 = vmul.f32 %v2008, %v2023
        %v2031 = vmul.f32 %v2009, %v2023
        %v2032 = vmul.f32 %v2010, %v2023
        %v2033 = vmul.f32 %v2011, %v2023
        %v2034 = vmul.f32 %v2012, %v2023
        %v2035 = vmul.f32 %v2013, %v2023
        %v2036 = vmul.f32 %v2014, %v2023
        %v2037 = vmul.f32 %v2015, %v2023
        %v2038 = vmul.f32 %v2016, %v2023
        %v2039 = vmul.f32 %v2017, %v2023
        %v2040 = vmul.f32 %v2018, %v2023
        %v2042 = vlaneseq
        %v2043 = vshrl.u32 %v2042, 7
        %v2044 = vsub.s32 0, %v2043
        %v2045 = vrot.slane %v511, %v2044
        %v2047 = vadd.f32 %v2025, %v2045
        %v2048 = vadd.f32 %v2026, %v2045
        %v2049 = vadd.f32 %v2027, %v2045
        %v2050 = vadd.f32 %v2028, %v2045
        %v2051 = vadd.f32 %v2029, %v2045
        %v2052 = vadd.f32 %v2030, %v2045
        %v2053 = vadd.f32 %v2031, %v2045
        %v2054 = vadd.f32 %v2032, %v2045
        %v2055 = vadd.f32 %v2033, %v2045
        %v2056 = vadd.f32 %v2034, %v2045
        %v2057 = vadd.f32 %v2035, %v2045
        %v2058 = vadd.f32 %v2036, %v2045
        %v2059 = vadd.f32 %v2037, %v2045
        %v2060 = vadd.f32 %v2038, %v2045
        %v2061 = vadd.f32 %v2039, %v2045
        %v2062 = vadd.f32 %v2040, %v2045
        %2063 = vst.msk [vmem:[#allocation2] sm:$0xff] %vm734, %v2047
        %2064 = vst.msk [vmem:[#allocation2 + $0x8] sm:$0xff] %vm734, %v2048
        %2065 = vst.msk [vmem:[#allocation2 + $0x10] sm:$0xff] %vm734, %v2049
        %2066 = vst.msk [vmem:[#allocation2 + $0x18] sm:$0xff] %vm734, %v2050
        %2067 = vst.msk [vmem:[#allocation2 + $0x20] sm:$0xff] %vm734, %v2051
        %2068 = vst.msk [vmem:[#allocation2 + $0x28] sm:$0xff] %vm734, %v2052
        %2069 = vst.msk [vmem:[#allocation2 + $0x30] sm:$0xff] %vm734, %v2053
        %2070 = vst.msk [vmem:[#allocation2 + $0x38] sm:$0xff] %vm734, %v2054
        %2071 = vst.msk [vmem:[#allocation2 + $0x40] sm:$0xff] %vm734, %v2055
        %2072 = vst.msk [vmem:[#allocation2 + $0x48] sm:$0xff] %vm734, %v2056
        %2073 = vst.msk [vmem:[#allocation2 + $0x50] sm:$0xff] %vm734, %v2057
        %2074 = vst.msk [vmem:[#allocation2 + $0x58] sm:$0xff] %vm734, %v2058
        %2075 = vst.msk [vmem:[#allocation2 + $0x60] sm:$0xff] %vm734, %v2059
        %2076 = vst.msk [vmem:[#allocation2 + $0x68] sm:$0xff] %vm734, %v2060
        %2077 = vst.msk [vmem:[#allocation2 + $0x70] sm:$0xff] %vm734, %v2061
        %2078 = vst.msk [vmem:[#allocation2 + $0x78] sm:$0xff] %vm734, %v2062
        %s2079 = scalar_lea.vmem %s5, 32
        %v2080 = vld [vmem:[%s2079] sm:$0xff]
        %v2081 = vld [vmem:[%s2079 + $0x8] sm:$0xff]
        %v2082 = vld [vmem:[%s2079 + $0x10] sm:$0xff]
        %v2083 = vld [vmem:[%s2079 + $0x18] sm:$0xff]
        %s2084 = scalar_lea.vmem %s6, 1
        %v2085 = vld [vmem:[%s2084] sm:$0x1]
        %s2086 = scalar_lea.vmem %s7, 96
        %v2087 = vld [vmem:[%s2086] sm:$0xff]
        %v2088 = vld [vmem:[%s2086 + $0x8] sm:$0xff]
        %v2089 = vld [vmem:[%s2086 + $0x10] sm:$0xff]
        %v2090 = vld [vmem:[%s2086 + $0x18] sm:$0xff]
        %s2091 = scalar_lea.vmem %s7, 128
        %v2092 = vld [vmem:[%s2091] sm:$0xff]
        %v2093 = vld [vmem:[%s2091 + $0x8] sm:$0xff]
        %v2094 = vld [vmem:[%s2091 + $0x10] sm:$0xff]
        %v2095 = vld [vmem:[%s2091 + $0x18] sm:$0xff]
        %s2096 = scalar_lea.vmem %s8, 1
        %v2097 = vld [vmem:[%s2096] sm:$0x1]
        %s2098 = scalar_lea.vmem %s9, 1
        %v2099 = vld [vmem:[%s2098] sm:$0x1]
        %s2100 = scalar_lea.vmem %s10, 1
        %v2101 = vld [vmem:[%s2100] sm:$0x1]
        %v2102 = vld [vmem:[%s1] sm:$0xff]
        %v2103 = vld [vmem:[%s1 + $0x8] sm:$0xff]
        %v2104 = vld [vmem:[#allocation2 + $0x70] sm:$0xff]
        %v2105 = vld [vmem:[#allocation2 + $0x78] sm:$0xff]
        %v2107 = vsel %vm734, %v2104, 0
        %v2110 = vsel %vm734, %v2105, 0
        %2112 = vmatprep.subr.mxu0 0.0
        %2113 = vmatpush1.msra.mxu0 0.0
        %2114 = vmatprep.subr.mxu0 0.0
        %2115 = vmatpush1.msra.mxu0 0.0
        %2116 = vmatprep.subr.mxu0 0.0
        %2117 = vmatpush1.msra.mxu0 0.0
        %2118 = vmatprep.subr.mxu0 0.0
        %2119 = vmatpush1.msra.mxu0 0.0
        %2120 = vmatprep.subr.mxu0 0.0
        %2121 = vmatpush1.msra.mxu0 0.0
        %2122 = vmatprep.subr.mxu0 0.0
        %2123 = vmatpush1.msra.mxu0 0.0
        %2124 = vmatprep.subr.mxu0 0.0
        %2125 = vmatpush1.msra.mxu0 0.0
        %2126 = vmatprep.subr.mxu0 0.0
        %2127 = vmatpush1.msra.mxu0 0.0
        %2128 = vmatprep.subr.mxu0 0.0
        %2129 = vmatpush1.msra.mxu0 0.0
        %2130 = vmatprep.subr.mxu0 0.0
        %2131 = vmatpush1.msra.mxu0 0.0
        %2132 = vmatprep.subr.mxu0 0.0
        %2133 = vmatpush1.msra.mxu0 0.0
        %2134 = vmatprep.subr.mxu0 0.0
        %2135 = vmatpush1.msra.mxu0 0.0
        %2136 = vmatprep.subr.mxu0 0.0
        %2137 = vmatpush1.msra.mxu0 %v2083
        %2138 = vmatprep.subr.mxu0 0.0
        %2139 = vmatpush1.msra.mxu0 %v2082
        %2140 = vmatprep.subr.mxu0 0.0
        %2141 = vmatpush1.msra.mxu0 %v2081
        %2142 = vmatprep.subr.mxu0 0.0
        %2143 = vmatpush1.msra.mxu0 %v2080
        %2144 = vmatprep.subr.mxu0 0.0
        %2145 = vmatpush2.msra.mxu0 0.0
        %2146 = vmatprep.subr.mxu0 0.0
        %2147 = vmatpush2.msra.mxu0 0.0
        %2148 = vmatprep.subr.mxu0 0.0
        %2149 = vmatpush2.msra.mxu0 0.0
        %2150 = vmatprep.subr.mxu0 0.0
        %2151 = vmatpush2.msra.mxu0 0.0
        %2152 = vmatprep.subr.mxu0 0.0
        %2153 = vmatpush2.msra.mxu0 0.0
        %2154 = vmatprep.subr.mxu0 0.0
        %2155 = vmatpush2.msra.mxu0 0.0
        %2156 = vmatprep.subr.mxu0 0.0
        %2157 = vmatpush2.msra.mxu0 0.0
        %2158 = vmatprep.subr.mxu0 0.0
        %2159 = vmatpush2.msra.mxu0 0.0
        %2160 = vmatprep.subr.mxu0 0.0
        %2161 = vmatpush2.msra.mxu0 0.0
        %2162 = vmatprep.subr.mxu0 0.0
        %2163 = vmatpush2.msra.mxu0 0.0
        %2164 = vmatprep.subr.mxu0 0.0
        %2165 = vmatpush2.msra.mxu0 0.0
        %2166 = vmatprep.subr.mxu0 0.0
        %2167 = vmatpush2.msra.mxu0 0.0
        %2168 = vmatprep.subr.mxu0 0.0
        %2169 = vmatpush2.msra.mxu0 0.0
        %2170 = vmatprep.subr.mxu0 0.0
        %2171 = vmatpush2.msra.mxu0 0.0
        %2172 = vmatprep.subr.mxu0 0.0
        %2173 = vmatpush2.msra.mxu0 0.0
        %2174 = vmatprep.subr.mxu0 0.0
        %2175 = vmatpush2.msra.mxu0 0.0
        %2176 = vmatprep.mubr.f32.mxu0 0.0
        %2177 = vmatmul.mubr.f32.gmra.mxu0 %v2107
        %v2178 = vpop.f32.mrf.mxu0
        %v2179 = vadd.f32 0.0, %v2178
        %v2180 = vpop.f32.mrf.mxu0
        %2181 = vmatprep.mubr.f32.mxu0 0.0
        %2182 = vmatmul.mubr.f32.gmra.mxu0 %v2110
        %v2183 = vpop.f32.mrf.mxu0
        %v2184 = vadd.f32 0.0, %v2183
        %v2185 = vpop.f32.mrf.mxu0
        %2186 = vdwg.mxu0
        %v2188 = vlaneseq
        %v2189 = vshrl.u32 %v2188, 7
        %v2190 = vsub.s32 0, %v2189
        %v2191 = vrot.slane %v2085, %v2190
        %vm2193 = vcmask 130048
        %v2195 = vsel %vm2193, %v2102, 0
        %v2198 = vsel %vm2193, %v2103, 0
        %2200 = vmatprep.subr.mxu0 0.0
        %2201 = vmatpush1.msra.mxu0 0.0
        %2202 = vmatprep.subr.mxu0 0.0
        %2203 = vmatpush1.msra.mxu0 0.0
        %2204 = vmatprep.subr.mxu0 0.0
        %2205 = vmatpush1.msra.mxu0 0.0
        %2206 = vmatprep.subr.mxu0 0.0
        %2207 = vmatpush1.msra.mxu0 0.0
        %2208 = vmatprep.subr.mxu0 0.0
        %2209 = vmatpush1.msra.mxu0 0.0
        %2210 = vmatprep.subr.mxu0 0.0
        %2211 = vmatpush1.msra.mxu0 0.0
        %2212 = vmatprep.subr.mxu0 0.0
        %2213 = vmatpush1.msra.mxu0 0.0
        %2214 = vmatprep.subr.mxu0 0.0
        %2215 = vmatpush1.msra.mxu0 0.0
        %2216 = vmatprep.subr.mxu0 0.0
        %2217 = vmatpush1.msra.mxu0 0.0
        %2218 = vmatprep.subr.mxu0 0.0
        %2219 = vmatpush1.msra.mxu0 0.0
        %2220 = vmatprep.subr.mxu0 0.0
        %2221 = vmatpush1.msra.mxu0 0.0
        %2222 = vmatprep.subr.mxu0 0.0
        %2223 = vmatpush1.msra.mxu0 0.0
        %2224 = vmatprep.subr.mxu0 0.0
        %2225 = vmatpush1.msra.mxu0 0.0
        %2226 = vmatprep.subr.mxu0 0.0
        %2227 = vmatpush1.msra.mxu0 0.0
        %2228 = vmatprep.subr.mxu0 0.0
        %2229 = vmatpush1.msra.mxu0 %v2184
        %2230 = vmatprep.subr.mxu0 0.0
        %2231 = vmatpush1.msra.mxu0 %v2179
        %2232 = vmatprep.subr.mxu0 0.0
        %2233 = vmatpush2.msra.mxu0 0.0
        %2234 = vmatprep.subr.mxu0 0.0
        %2235 = vmatpush2.msra.mxu0 0.0
        %2236 = vmatprep.subr.mxu0 0.0
        %2237 = vmatpush2.msra.mxu0 0.0
        %2238 = vmatprep.subr.mxu0 0.0
        %2239 = vmatpush2.msra.mxu0 0.0
        %2240 = vmatprep.subr.mxu0 0.0
        %2241 = vmatpush2.msra.mxu0 0.0
        %2242 = vmatprep.subr.mxu0 0.0
        %2243 = vmatpush2.msra.mxu0 0.0
        %2244 = vmatprep.subr.mxu0 0.0
        %2245 = vmatpush2.msra.mxu0 0.0
        %2246 = vmatprep.subr.mxu0 0.0
        %2247 = vmatpush2.msra.mxu0 0.0
        %2248 = vmatprep.subr.mxu0 0.0
        %2249 = vmatpush2.msra.mxu0 0.0
        %2250 = vmatprep.subr.mxu0 0.0
        %2251 = vmatpush2.msra.mxu0 0.0
        %2252 = vmatprep.subr.mxu0 0.0
        %2253 = vmatpush2.msra.mxu0 0.0
        %2254 = vmatprep.subr.mxu0 0.0
        %2255 = vmatpush2.msra.mxu0 0.0
        %2256 = vmatprep.subr.mxu0 0.0
        %2257 = vmatpush2.msra.mxu0 0.0
        %2258 = vmatprep.subr.mxu0 0.0
        %2259 = vmatpush2.msra.mxu0 0.0
        %2260 = vmatprep.subr.mxu0 0.0
        %2261 = vmatpush2.msra.mxu0 0.0
        %2262 = vmatprep.subr.mxu0 0.0
        %2263 = vmatpush2.msra.mxu0 0.0
        %2264 = vmatprep.mubr.f32.mxu0 0.0
        %2265 = vmatmul.mubr.f32.gmra.mxu0 %v2195
        %v2266 = vpop.f32.mrf.mxu0
        %v2267 = vadd.f32 %v2191, %v2266
        %v2268 = vpop.f32.mrf.mxu0
        %2269 = vmatprep.mubr.f32.mxu0 0.0
        %2270 = vmatmul.mubr.f32.gmra.mxu0 %v2198
        %v2271 = vpop.f32.mrf.mxu0
        %v2272 = vadd.f32 %v2191, %v2271
        %v2273 = vpop.f32.mrf.mxu0
        %2274 = vdwg.mxu0
        %v2276 = vlaneseq
        %v2277 = vshrl.u32 %v2276, 7
        %v2278 = vsub.s32 0, %v2277
        %v2279 = vrot.slane %v2097, %v2278
        %v2282 = vsel %vm734, %v2267, 0
        %v2285 = vsel %vm734, %v2272, 0
        %2287 = vmatprep.subr.mxu0 0.0
        %2288 = vmatpush1.msra.mxu0 0.0
        %2289 = vmatprep.subr.mxu0 0.0
        %2290 = vmatpush1.msra.mxu0 0.0
        %2291 = vmatprep.subr.mxu0 0.0
        %2292 = vmatpush1.msra.mxu0 0.0
        %2293 = vmatprep.subr.mxu0 0.0
        %2294 = vmatpush1.msra.mxu0 0.0
        %2295 = vmatprep.subr.mxu0 0.0
        %2296 = vmatpush1.msra.mxu0 0.0
        %2297 = vmatprep.subr.mxu0 0.0
        %2298 = vmatpush1.msra.mxu0 0.0
        %2299 = vmatprep.subr.mxu0 0.0
        %2300 = vmatpush1.msra.mxu0 0.0
        %2301 = vmatprep.subr.mxu0 0.0
        %2302 = vmatpush1.msra.mxu0 0.0
        %2303 = vmatprep.subr.mxu0 0.0
        %2304 = vmatpush1.msra.mxu0 0.0
        %2305 = vmatprep.subr.mxu0 0.0
        %2306 = vmatpush1.msra.mxu0 0.0
        %2307 = vmatprep.subr.mxu0 0.0
        %2308 = vmatpush1.msra.mxu0 0.0
        %2309 = vmatprep.subr.mxu0 0.0
        %2310 = vmatpush1.msra.mxu0 0.0
        %2311 = vmatprep.subr.mxu0 0.0
        %2312 = vmatpush1.msra.mxu0 %v2095
        %2313 = vmatprep.subr.mxu0 0.0
        %2314 = vmatpush1.msra.mxu0 %v2094
        %2315 = vmatprep.subr.mxu0 0.0
        %2316 = vmatpush1.msra.mxu0 %v2093
        %2317 = vmatprep.subr.mxu0 0.0
        %2318 = vmatpush1.msra.mxu0 %v2092
        %2319 = vmatprep.subr.mxu0 0.0
        %2320 = vmatpush2.msra.mxu0 0.0
        %2321 = vmatprep.subr.mxu0 0.0
        %2322 = vmatpush2.msra.mxu0 0.0
        %2323 = vmatprep.subr.mxu0 0.0
        %2324 = vmatpush2.msra.mxu0 0.0
        %2325 = vmatprep.subr.mxu0 0.0
        %2326 = vmatpush2.msra.mxu0 0.0
        %2327 = vmatprep.subr.mxu0 0.0
        %2328 = vmatpush2.msra.mxu0 0.0
        %2329 = vmatprep.subr.mxu0 0.0
        %2330 = vmatpush2.msra.mxu0 0.0
        %2331 = vmatprep.subr.mxu0 0.0
        %2332 = vmatpush2.msra.mxu0 0.0
        %2333 = vmatprep.subr.mxu0 0.0
        %2334 = vmatpush2.msra.mxu0 0.0
        %2335 = vmatprep.subr.mxu0 0.0
        %2336 = vmatpush2.msra.mxu0 0.0
        %2337 = vmatprep.subr.mxu0 0.0
        %2338 = vmatpush2.msra.mxu0 0.0
        %2339 = vmatprep.subr.mxu0 0.0
        %2340 = vmatpush2.msra.mxu0 0.0
        %2341 = vmatprep.subr.mxu0 0.0
        %2342 = vmatpush2.msra.mxu0 0.0
        %2343 = vmatprep.subr.mxu0 0.0
        %2344 = vmatpush2.msra.mxu0 0.0
        %2345 = vmatprep.subr.mxu0 0.0
        %2346 = vmatpush2.msra.mxu0 0.0
        %2347 = vmatprep.subr.mxu0 0.0
        %2348 = vmatpush2.msra.mxu0 0.0
        %2349 = vmatprep.subr.mxu0 0.0
        %2350 = vmatpush2.msra.mxu0 0.0
        %2351 = vmatprep.mubr.f32.mxu0 0.0
        %2352 = vmatmul.mubr.f32.gmra.mxu0 %v2282
        %v2353 = vpop.f32.mrf.mxu0
        %v2354 = vadd.f32 %v2279, %v2353
        %v2355 = vpop.f32.mrf.mxu0
        %2356 = vmatprep.mubr.f32.mxu0 0.0
        %2357 = vmatmul.mubr.f32.gmra.mxu0 %v2285
        %v2358 = vpop.f32.mrf.mxu0
        %v2359 = vadd.f32 %v2279, %v2358
        %v2360 = vpop.f32.mrf.mxu0
        %2361 = vdwg.mxu0
        %v2362 = vld [vmem:[#allocation2 + $0x50] sm:$0xff]
        %v2363 = vld [vmem:[#allocation2 + $0x58] sm:$0xff]
        %v2365 = vsel %vm734, %v2362, 0
        %v2368 = vsel %vm734, %v2363, 0
        %2370 = vmatprep.subr.mxu0 0.0
        %2371 = vmatpush1.msra.mxu0 0.0
        %2372 = vmatprep.subr.mxu0 0.0
        %2373 = vmatpush1.msra.mxu0 0.0
        %2374 = vmatprep.subr.mxu0 0.0
        %2375 = vmatpush1.msra.mxu0 0.0
        %2376 = vmatprep.subr.mxu0 0.0
        %2377 = vmatpush1.msra.mxu0 0.0
        %2378 = vmatprep.subr.mxu0 0.0
        %2379 = vmatpush1.msra.mxu0 0.0
        %2380 = vmatprep.subr.mxu0 0.0
        %2381 = vmatpush1.msra.mxu0 0.0
        %2382 = vmatprep.subr.mxu0 0.0
        %2383 = vmatpush1.msra.mxu0 0.0
        %2384 = vmatprep.subr.mxu0 0.0
        %2385 = vmatpush1.msra.mxu0 0.0
        %2386 = vmatprep.subr.mxu0 0.0
        %2387 = vmatpush1.msra.mxu0 0.0
        %2388 = vmatprep.subr.mxu0 0.0
        %2389 = vmatpush1.msra.mxu0 0.0
        %2390 = vmatprep.subr.mxu0 0.0
        %2391 = vmatpush1.msra.mxu0 0.0
        %2392 = vmatprep.subr.mxu0 0.0
        %2393 = vmatpush1.msra.mxu0 0.0
        %2394 = vmatprep.subr.mxu0 0.0
        %2395 = vmatpush1.msra.mxu0 %v2083
        %2396 = vmatprep.subr.mxu0 0.0
        %2397 = vmatpush1.msra.mxu0 %v2082
        %2398 = vmatprep.subr.mxu0 0.0
        %2399 = vmatpush1.msra.mxu0 %v2081
        %2400 = vmatprep.subr.mxu0 0.0
        %2401 = vmatpush1.msra.mxu0 %v2080
        %2402 = vmatprep.subr.mxu0 0.0
        %2403 = vmatpush2.msra.mxu0 0.0
        %2404 = vmatprep.subr.mxu0 0.0
        %2405 = vmatpush2.msra.mxu0 0.0
        %2406 = vmatprep.subr.mxu0 0.0
        %2407 = vmatpush2.msra.mxu0 0.0
        %2408 = vmatprep.subr.mxu0 0.0
        %2409 = vmatpush2.msra.mxu0 0.0
        %2410 = vmatprep.subr.mxu0 0.0
        %2411 = vmatpush2.msra.mxu0 0.0
        %2412 = vmatprep.subr.mxu0 0.0
        %2413 = vmatpush2.msra.mxu0 0.0
        %2414 = vmatprep.subr.mxu0 0.0
        %2415 = vmatpush2.msra.mxu0 0.0
        %2416 = vmatprep.subr.mxu0 0.0
        %2417 = vmatpush2.msra.mxu0 0.0
        %2418 = vmatprep.subr.mxu0 0.0
        %2419 = vmatpush2.msra.mxu0 0.0
        %2420 = vmatprep.subr.mxu0 0.0
        %2421 = vmatpush2.msra.mxu0 0.0
        %2422 = vmatprep.subr.mxu0 0.0
        %2423 = vmatpush2.msra.mxu0 0.0
        %2424 = vmatprep.subr.mxu0 0.0
        %2425 = vmatpush2.msra.mxu0 0.0
        %2426 = vmatprep.subr.mxu0 0.0
        %2427 = vmatpush2.msra.mxu0 0.0
        %2428 = vmatprep.subr.mxu0 0.0
        %2429 = vmatpush2.msra.mxu0 0.0
        %2430 = vmatprep.subr.mxu0 0.0
        %2431 = vmatpush2.msra.mxu0 0.0
        %2432 = vmatprep.subr.mxu0 0.0
        %2433 = vmatpush2.msra.mxu0 0.0
        %2434 = vmatprep.mubr.f32.mxu0 0.0
        %2435 = vmatmul.mubr.f32.gmra.mxu0 %v2365
        %v2436 = vpop.f32.mrf.mxu0
        %v2437 = vadd.f32 0.0, %v2436
        %v2438 = vpop.f32.mrf.mxu0
        %2439 = vmatprep.mubr.f32.mxu0 0.0
        %2440 = vmatmul.mubr.f32.gmra.mxu0 %v2368
        %v2441 = vpop.f32.mrf.mxu0
        %v2442 = vadd.f32 0.0, %v2441
        %v2443 = vpop.f32.mrf.mxu0
        %2444 = vdwg.mxu0
        %2445 = vmatprep.subr.mxu0 0.0
        %2446 = vmatpush1.msra.mxu0 0.0
        %2447 = vmatprep.subr.mxu0 0.0
        %2448 = vmatpush1.msra.mxu0 0.0
        %2449 = vmatprep.subr.mxu0 0.0
        %2450 = vmatpush1.msra.mxu0 0.0
        %2451 = vmatprep.subr.mxu0 0.0
        %2452 = vmatpush1.msra.mxu0 0.0
        %2453 = vmatprep.subr.mxu0 0.0
        %2454 = vmatpush1.msra.mxu0 0.0
        %2455 = vmatprep.subr.mxu0 0.0
        %2456 = vmatpush1.msra.mxu0 0.0
        %2457 = vmatprep.subr.mxu0 0.0
        %2458 = vmatpush1.msra.mxu0 0.0
        %2459 = vmatprep.subr.mxu0 0.0
        %2460 = vmatpush1.msra.mxu0 0.0
        %2461 = vmatprep.subr.mxu0 0.0
        %2462 = vmatpush1.msra.mxu0 0.0
        %2463 = vmatprep.subr.mxu0 0.0
        %2464 = vmatpush1.msra.mxu0 0.0
        %2465 = vmatprep.subr.mxu0 0.0
        %2466 = vmatpush1.msra.mxu0 0.0
        %2467 = vmatprep.subr.mxu0 0.0
        %2468 = vmatpush1.msra.mxu0 0.0
        %2469 = vmatprep.subr.mxu0 0.0
        %2470 = vmatpush1.msra.mxu0 0.0
        %2471 = vmatprep.subr.mxu0 0.0
        %2472 = vmatpush1.msra.mxu0 0.0
        %2473 = vmatprep.subr.mxu0 0.0
        %2474 = vmatpush1.msra.mxu0 %v2442
        %2475 = vmatprep.subr.mxu0 0.0
        %2476 = vmatpush1.msra.mxu0 %v2437
        %2477 = vmatprep.subr.mxu0 0.0
        %2478 = vmatpush2.msra.mxu0 0.0
        %2479 = vmatprep.subr.mxu0 0.0
        %2480 = vmatpush2.msra.mxu0 0.0
        %2481 = vmatprep.subr.mxu0 0.0
        %2482 = vmatpush2.msra.mxu0 0.0
        %2483 = vmatprep.subr.mxu0 0.0
        %2484 = vmatpush2.msra.mxu0 0.0
        %2485 = vmatprep.subr.mxu0 0.0
        %2486 = vmatpush2.msra.mxu0 0.0
        %2487 = vmatprep.subr.mxu0 0.0
        %2488 = vmatpush2.msra.mxu0 0.0
        %2489 = vmatprep.subr.mxu0 0.0
        %2490 = vmatpush2.msra.mxu0 0.0
        %2491 = vmatprep.subr.mxu0 0.0
        %2492 = vmatpush2.msra.mxu0 0.0
        %2493 = vmatprep.subr.mxu0 0.0
        %2494 = vmatpush2.msra.mxu0 0.0
        %2495 = vmatprep.subr.mxu0 0.0
        %2496 = vmatpush2.msra.mxu0 0.0
        %2497 = vmatprep.subr.mxu0 0.0
        %2498 = vmatpush2.msra.mxu0 0.0
        %2499 = vmatprep.subr.mxu0 0.0
        %2500 = vmatpush2.msra.mxu0 0.0
        %2501 = vmatprep.subr.mxu0 0.0
        %2502 = vmatpush2.msra.mxu0 0.0
        %2503 = vmatprep.subr.mxu0 0.0
        %2504 = vmatpush2.msra.mxu0 0.0
        %2505 = vmatprep.subr.mxu0 0.0
        %2506 = vmatpush2.msra.mxu0 0.0
        %2507 = vmatprep.subr.mxu0 0.0
        %2508 = vmatpush2.msra.mxu0 0.0
        %2509 = vmatprep.mubr.f32.mxu0 0.0
        %2510 = vmatmul.mubr.f32.gmra.mxu0 %v2195
        %v2511 = vpop.f32.mrf.mxu0
        %v2512 = vadd.f32 %v2191, %v2511
        %v2513 = vpop.f32.mrf.mxu0
        %2514 = vmatprep.mubr.f32.mxu0 0.0
        %2515 = vmatmul.mubr.f32.gmra.mxu0 %v2198
        %v2516 = vpop.f32.mrf.mxu0
        %v2517 = vadd.f32 %v2191, %v2516
        %v2518 = vpop.f32.mrf.mxu0
        %2519 = vdwg.mxu0
        %v2521 = vsel %vm734, %v2512, 0
        %v2524 = vsel %vm734, %v2517, 0
        %2526 = vmatprep.subr.mxu0 0.0
        %2527 = vmatpush1.msra.mxu0 0.0
        %2528 = vmatprep.subr.mxu0 0.0
        %2529 = vmatpush1.msra.mxu0 0.0
        %2530 = vmatprep.subr.mxu0 0.0
        %2531 = vmatpush1.msra.mxu0 0.0
        %2532 = vmatprep.subr.mxu0 0.0
        %2533 = vmatpush1.msra.mxu0 0.0
        %2534 = vmatprep.subr.mxu0 0.0
        %2535 = vmatpush1.msra.mxu0 0.0
        %2536 = vmatprep.subr.mxu0 0.0
        %2537 = vmatpush1.msra.mxu0 0.0
        %2538 = vmatprep.subr.mxu0 0.0
        %2539 = vmatpush1.msra.mxu0 0.0
        %2540 = vmatprep.subr.mxu0 0.0
        %2541 = vmatpush1.msra.mxu0 0.0
        %2542 = vmatprep.subr.mxu0 0.0
        %2543 = vmatpush1.msra.mxu0 0.0
        %2544 = vmatprep.subr.mxu0 0.0
        %2545 = vmatpush1.msra.mxu0 0.0
        %2546 = vmatprep.subr.mxu0 0.0
        %2547 = vmatpush1.msra.mxu0 0.0
        %2548 = vmatprep.subr.mxu0 0.0
        %2549 = vmatpush1.msra.mxu0 0.0
        %2550 = vmatprep.subr.mxu0 0.0
        %2551 = vmatpush1.msra.mxu0 %v2090
        %2552 = vmatprep.subr.mxu0 0.0
        %2553 = vmatpush1.msra.mxu0 %v2089
        %2554 = vmatprep.subr.mxu0 0.0
        %2555 = vmatpush1.msra.mxu0 %v2088
        %2556 = vmatprep.subr.mxu0 0.0
        %2557 = vmatpush1.msra.mxu0 %v2087
        %2558 = vmatprep.subr.mxu0 0.0
        %2559 = vmatpush2.msra.mxu0 0.0
        %2560 = vmatprep.subr.mxu0 0.0
        %2561 = vmatpush2.msra.mxu0 0.0
        %2562 = vmatprep.subr.mxu0 0.0
        %2563 = vmatpush2.msra.mxu0 0.0
        %2564 = vmatprep.subr.mxu0 0.0
        %2565 = vmatpush2.msra.mxu0 0.0
        %2566 = vmatprep.subr.mxu0 0.0
        %2567 = vmatpush2.msra.mxu0 0.0
        %2568 = vmatprep.subr.mxu0 0.0
        %2569 = vmatpush2.msra.mxu0 0.0
        %2570 = vmatprep.subr.mxu0 0.0
        %2571 = vmatpush2.msra.mxu0 0.0
        %2572 = vmatprep.subr.mxu0 0.0
        %2573 = vmatpush2.msra.mxu0 0.0
        %2574 = vmatprep.subr.mxu0 0.0
        %2575 = vmatpush2.msra.mxu0 0.0
        %2576 = vmatprep.subr.mxu0 0.0
        %2577 = vmatpush2.msra.mxu0 0.0
        %2578 = vmatprep.subr.mxu0 0.0
        %2579 = vmatpush2.msra.mxu0 0.0
        %2580 = vmatprep.subr.mxu0 0.0
        %2581 = vmatpush2.msra.mxu0 0.0
        %2582 = vmatprep.subr.mxu0 0.0
        %2583 = vmatpush2.msra.mxu0 0.0
        %2584 = vmatprep.subr.mxu0 0.0
        %2585 = vmatpush2.msra.mxu0 0.0
        %2586 = vmatprep.subr.mxu0 0.0
        %2587 = vmatpush2.msra.mxu0 0.0
        %2588 = vmatprep.subr.mxu0 0.0
        %2589 = vmatpush2.msra.mxu0 0.0
        %2590 = vmatprep.mubr.f32.mxu0 0.0
        %2591 = vmatmul.mubr.f32.gmra.mxu0 %v2521
        %v2592 = vpop.f32.mrf.mxu0
        %v2593 = vadd.f32 0.0, %v2592
        %v2594 = vpop.f32.mrf.mxu0
        %2595 = vmatprep.mubr.f32.mxu0 0.0
        %2596 = vmatmul.mubr.f32.gmra.mxu0 %v2524
        %v2597 = vpop.f32.mrf.mxu0
        %v2598 = vadd.f32 0.0, %v2597
        %v2599 = vpop.f32.mrf.mxu0
        %2600 = vdwg.mxu0
        %v2601 = vadd.f32 %v2354, %v2593
        %v2602 = vadd.f32 %v2359, %v2598
        %v2604 = vlaneseq
        %v2605 = vshrl.u32 %v2604, 7
        %v2606 = vsub.s32 0, %v2605
        %v2607 = vrot.slane %v2099, %v2606
        %v2609 = vmul.f32 %v2601, %v2607
        %v2610 = vmul.f32 %v2602, %v2607
        %v2612 = vlaneseq
        %v2613 = vshrl.u32 %v2612, 7
        %v2614 = vsub.s32 0, %v2613
        %v2615 = vrot.slane %v2101, %v2614
        %v2617 = vadd.f32 %v2609, %v2615
        %v2618 = vadd.f32 %v2610, %v2615
        %v2619 = vmax.f32 %v2617, 0.0
        %v2620 = vmax.f32 %v2618, 0.0
        %v2621 = vadd.f32 %v2104, %v2619
        %v2622 = vadd.f32 %v2105, %v2620
        %v2623 = vsel %vm734, %v2621, 0.0
        %2624 = vadd.xlane.f32.xlu0 %v2623
        %v2625 = vpop.xlane.xlu0 %2624
        %v2626 = vsel %vm734, %v2622, 0.0
        %2627 = vadd.xlane.f32.xlu0 %v2626
        %v2628 = vpop.xlane.xlu0 %2627
        %v2629 = vmul.f32 %v2625, %v1858
        %v2630 = vmul.f32 %v2628, %v1858
        %v2631 = vsub.f32 %v2621, %v2629
        %v2632 = vsub.f32 %v2622, %v2630
        %v2633 = vmul.f32 %v2631, %v2631
        %v2634 = vmul.f32 %v2632, %v2632
        %v2635 = vsel %vm734, %v2633, 0.0
        %2636 = vadd.xlane.f32.xlu0 %v2635
        %v2637 = vpop.xlane.xlu0 %2636
        %v2638 = vsel %vm734, %v2634, 0.0
        %2639 = vadd.xlane.f32.xlu0 %v2638
        %v2640 = vpop.xlane.xlu0 %2639
        %v2641 = vmul.f32 %v2637, %v1858
        %v2642 = vmul.f32 %v2640, %v1858
        %v2643 = vadd.f32 %v2641, 1e-05
        %v2644 = vadd.f32 %v2642, 1e-05
        %v2645 = vrsqrt.pop %v2643
        %v2646 = vrsqrt.pop %v2644
        %v2647 = vmul.f32 %v2631, %v2645
        %v2648 = vmul.f32 %v2632, %v2646
        %v2649 = vmul.f32 %v2647, %v2023
        %v2650 = vmul.f32 %v2648, %v2023
        %v2651 = vadd.f32 %v2649, %v2045
        %v2652 = vadd.f32 %v2650, %v2045
        %2653 = vst.msk [vmem:[#allocation2 + $0x70] sm:$0xff] %vm734, %v2651
        %2654 = vst.msk [vmem:[#allocation2 + $0x78] sm:$0xff] %vm734, %v2652
        %v2655 = vld [vmem:[#allocation2 + $0x70] sm:$0xff]
        %v2656 = vld [vmem:[#allocation2 + $0x78] sm:$0xff]
        %v2657 = vld [vmem:[%s13] sm:$0xff]
        %v2658 = vld [vmem:[%s13 + $0x8] sm:$0xff]
        %v2659 = vld [vmem:[%s13 + $0x10] sm:$0xff]
        %v2660 = vld [vmem:[%s13 + $0x18] sm:$0xff]
        %v2661 = vld [vmem:[%s14] sm:$0x1]
        %v2663 = vlaneseq
        %v2664 = vshrl.u32 %v2663, 7
        %v2665 = vsub.s32 0, %v2664
        %v2666 = vrot.slane %v2661, %v2665
        %v2669 = vsel %vm734, %v2655, 0
        %v2672 = vsel %vm734, %v2656, 0
        %2674 = vmatprep.subr.mxu0 0.0
        %2675 = vmatpush1.msra.mxu0 0.0
        %2676 = vmatprep.subr.mxu0 0.0
        %2677 = vmatpush1.msra.mxu0 0.0
        %2678 = vmatprep.subr.mxu0 0.0
        %2679 = vmatpush1.msra.mxu0 0.0
        %2680 = vmatprep.subr.mxu0 0.0
        %2681 = vmatpush1.msra.mxu0 0.0
        %2682 = vmatprep.subr.mxu0 0.0
        %2683 = vmatpush1.msra.mxu0 0.0
        %2684 = vmatprep.subr.mxu0 0.0
        %2685 = vmatpush1.msra.mxu0 0.0
        %2686 = vmatprep.subr.mxu0 0.0
        %2687 = vmatpush1.msra.mxu0 0.0
        %2688 = vmatprep.subr.mxu0 0.0
        %2689 = vmatpush1.msra.mxu0 0.0
        %2690 = vmatprep.subr.mxu0 0.0
        %2691 = vmatpush1.msra.mxu0 0.0
        %2692 = vmatprep.subr.mxu0 0.0
        %2693 = vmatpush1.msra.mxu0 0.0
        %2694 = vmatprep.subr.mxu0 0.0
        %2695 = vmatpush1.msra.mxu0 0.0
        %2696 = vmatprep.subr.mxu0 0.0
        %2697 = vmatpush1.msra.mxu0 0.0
        %2698 = vmatprep.subr.mxu0 0.0
        %2699 = vmatpush1.msra.mxu0 %v2660
        %2700 = vmatprep.subr.mxu0 0.0
        %2701 = vmatpush1.msra.mxu0 %v2659
        %2702 = vmatprep.subr.mxu0 0.0
        %2703 = vmatpush1.msra.mxu0 %v2658
        %2704 = vmatprep.subr.mxu0 0.0
        %2705 = vmatpush1.msra.mxu0 %v2657
        %2706 = vmatprep.subr.mxu0 0.0
        %2707 = vmatpush2.msra.mxu0 0.0
        %2708 = vmatprep.subr.mxu0 0.0
        %2709 = vmatpush2.msra.mxu0 0.0
        %2710 = vmatprep.subr.mxu0 0.0
        %2711 = vmatpush2.msra.mxu0 0.0
        %2712 = vmatprep.subr.mxu0 0.0
        %2713 = vmatpush2.msra.mxu0 0.0
        %2714 = vmatprep.subr.mxu0 0.0
        %2715 = vmatpush2.msra.mxu0 0.0
        %2716 = vmatprep.subr.mxu0 0.0
        %2717 = vmatpush2.msra.mxu0 0.0
        %2718 = vmatprep.subr.mxu0 0.0
        %2719 = vmatpush2.msra.mxu0 0.0
        %2720 = vmatprep.subr.mxu0 0.0
        %2721 = vmatpush2.msra.mxu0 0.0
        %2722 = vmatprep.subr.mxu0 0.0
        %2723 = vmatpush2.msra.mxu0 0.0
        %2724 = vmatprep.subr.mxu0 0.0
        %2725 = vmatpush2.msra.mxu0 0.0
        %2726 = vmatprep.subr.mxu0 0.0
        %2727 = vmatpush2.msra.mxu0 0.0
        %2728 = vmatprep.subr.mxu0 0.0
        %2729 = vmatpush2.msra.mxu0 0.0
        %2730 = vmatprep.subr.mxu0 0.0
        %2731 = vmatpush2.msra.mxu0 0.0
        %2732 = vmatprep.subr.mxu0 0.0
        %2733 = vmatpush2.msra.mxu0 0.0
        %2734 = vmatprep.subr.mxu0 0.0
        %2735 = vmatpush2.msra.mxu0 0.0
        %2736 = vmatprep.subr.mxu0 0.0
        %2737 = vmatpush2.msra.mxu0 0.0
        %2738 = vmatprep.mubr.f32.mxu0 0.0
        %2739 = vmatmul.mubr.f32.gmra.mxu0 %v2669
        %v2740 = vpop.f32.mrf.mxu0
        %v2741 = vadd.f32 %v2666, %v2740
        %v2742 = vpop.f32.mrf.mxu0
        %2743 = vmatprep.mubr.f32.mxu0 0.0
        %2744 = vmatmul.mubr.f32.gmra.mxu0 %v2672
        %v2745 = vpop.f32.mrf.mxu0
        %v2746 = vadd.f32 %v2666, %v2745
        %v2747 = vpop.f32.mrf.mxu0
        %2748 = vdwg.mxu0
        %2749 = vst.msk [vmem:[%s509] sm:$0xff] %vm536, %v2741
        %2750 = vst.msk [vmem:[%s509 + $0x8] sm:$0xff] %vm536, %v2746
        %p2751 = scmp.lt.s32.totalorder %s27, 1
        %s2752 = scalar_select %p2751, %s27, 1
        %s2753 = smul.addr %s2752, 2
        %s2754 = smul.addr %s2753, 8
        %s2755 = scalar_lea.vmem %s15, %s2754
        // Predicated region
        $region85: #{tpu_custom_call.1} parent=79 // pred_check
          %p2756 = pneg %p365
        $region86: #{tpu_custom_call.1} parent=79 // pred_check_branch
          %2758 = sbr.rel (%p2756) target = $region88
        $region87: #{tpu_custom_call.1} parent=79 // pred_region
          _
        $region88: #{tpu_custom_call.1} parent=79 // pred_fallthru
          _
      $region80: #{tpu_custom_call.1} parent=5 // pred_fallthru
        _
      %p2759 = scmp.le.s32.totalorder 2, %s22
      // Predicated region
      $region89: #{tpu_custom_call.1} parent=5 // pred_check
        %p2760 = pneg %p2759
      $region90: #{tpu_custom_call.1} parent=5 // pred_check_branch
        %2762 = sbr.rel (%p2760) target = $region92
      $region91: #{tpu_custom_call.1} parent=5 // pred_region
        %s2763 = ssub.s32 %s22, 2
        // Predicated region
        $region93: #{tpu_custom_call.1} parent=91 // pred_check
          %p2764 = pneg %p371
        $region94: #{tpu_custom_call.1} parent=91 // pred_check_branch
          %2766 = sbr.rel (%p2764) target = $region96
        $region95: #{tpu_custom_call.1} parent=91 // pred_region
          %p2767 = scmp.lt.s32.totalorder %s28, 1
          %s2768 = scalar_select %p2767, %s28, 1
          %s2769 = smul.addr %s2768, 2
          %s2770 = smul.addr %s2769, 8
          %s2771 = scalar_lea.vmem %s15, %s2770
        $region96: #{tpu_custom_call.1} parent=91 // pred_fallthru
          _
      $region92: #{tpu_custom_call.1} parent=5 // pred_fallthru
        _
    $region6: #{tpu_custom_call.1} parent=1 // loop_footer
      %s26 = sadd.s32 1, %s22
    $region7: #{tpu_custom_call.1} parent=1 // loop_footer_branch
      %21 = sbr.rel target = $region3
    $region8: #{tpu_custom_call.1} parent=1 // loop_exit
      _
    %2772 = vsyncpa [#allocation5], 1
    %s2773 = scalar_lea.sflag [#allocation5], 1
    %2774 = vsyncpa %s2773, 1

</llo_original>
